<compile_context>
chip_gen: v7x
topology: tpu7x:2x2x1
jax: 0.10.0
libtpu: 0.0.40
codegen_flags: <defaults>
</compile_context>

<pallas_src>
import functools

import jax
import jax.numpy as jnp
from jax.experimental import pallas as pl
from jax.experimental.pallas import tpu as pltpu


# ---------------------------------------------------------------------------
# Fused Pallas kernel: L LSTM layers + final Linear, all in VMEM.
# ---------------------------------------------------------------------------
def _fused_stacked_lstm_kernel(x_ref, *refs, L, S, B, H):
    """Fused StackedLSTM forward.

    x_ref          : (S*B, D)   time-major flattened input (rows t*B:(t+1)*B = step t)
    per layer l    : wih_ref (in_l, 4H), whh_ref (H, 4H), b_ref (1, 4H)
    fcw_ref        : (H, O)     final linear weight (pre-transposed)
    fcb_ref        : (1, O)     final linear bias
    out_ref        : (B, O)
    act_sc         : (S*B, H)   VMEM inter-layer activations
    gate_sc        : (S*B, 4H)  VMEM precomputed input projections for a layer
    h_sc, c_sc     : (B, H)     VMEM recurrent state
    """
    layer_refs = refs[: 3 * L]
    fcw_ref, fcb_ref, out_ref, act_sc, gate_sc, h_sc, c_sc = refs[3 * L:]

    for l in range(L):
        wih_ref = layer_refs[3 * l + 0]
        whh_ref = layer_refs[3 * l + 1]
        b_ref = layer_refs[3 * l + 2]
        src_ref = x_ref if l == 0 else act_sc

        # Hoisted, time-invariant input projection: one big GEMM for all S steps.
        gate_sc[...] = (
            jnp.dot(src_ref[...], wih_ref[...], preferred_element_type=jnp.float32)
            + b_ref[...]
        )

        h_sc[...] = jnp.zeros_like(h_sc)
        c_sc[...] = jnp.zeros_like(c_sc)

        last_layer = l == L - 1

        # Fully-unrolled static time loop: only h @ W_hh is on the serial path.
        for t in range(S):
            gates = gate_sc[t * B:(t + 1) * B, :] + jnp.dot(
                h_sc[...], whh_ref[...], preferred_element_type=jnp.float32
            )  # (B, 4H), PyTorch gate order: i, f, g, o

            # Two full-vreg EUP pushes (sigmoid, tanh) instead of four per-gate ones.
            sig = jax.nn.sigmoid(gates)
            tah = jnp.tanh(gates)
            i = sig[:, 0 * H:1 * H]
            f = sig[:, 1 * H:2 * H]
            g = tah[:, 2 * H:3 * H]
            o = sig[:, 3 * H:4 * H]

            c_new = f * c_sc[...] + i * g
            h_new = o * jnp.tanh(c_new)
            c_sc[...] = c_new
            h_sc[...] = h_new
            if not last_layer:
                act_sc[t * B:(t + 1) * B, :] = h_new  # stays in VMEM for next layer

    # FC head on the last timestep's hidden state of the last layer.
    out_ref[...] = (
        jnp.dot(h_sc[...], fcw_ref[...], preferred_element_type=jnp.float32)
        + fcb_ref[...]
    ).astype(out_ref.dtype)


# ---------------------------------------------------------------------------
# Wrappers
# ---------------------------------------------------------------------------
def prepare_params(lstm_params, fc_w, fc_b):
    """One-time parameter prep (transposes, combined bias, f32 casts).

    Hoisted out of the per-forward path so no XLA transpose/cast ops run per call.
    Returns a flat tuple: (wih0_t, whh0_t, b0, wih1_t, whh1_t, b1, ..., fcw_t, fcb).
    """
    flat = []
    for (w_ih, w_hh, b_ih, b_hh) in lstm_params:
        h4 = w_ih.shape[0]
        flat.append(jnp.asarray(w_ih.T, jnp.float32))                      # (in, 4H)
        flat.append(jnp.asarray(w_hh.T, jnp.float32))                      # (H, 4H)
        flat.append(jnp.asarray((b_ih + b_hh).reshape(1, h4), jnp.float32))  # (1, 4H)
    flat.append(jnp.asarray(fc_w.T, jnp.float32))                          # (H, O)
    flat.append(jnp.asarray(fc_b.reshape(1, -1), jnp.float32))             # (1, O)
    return tuple(flat)


def stacked_lstm_forward(x_bsd, *prepped):
    """Full StackedLSTM forward via one fused pallas_call.

    x_bsd: (B, S, input_size) batch-first, as in PyTorch.
    prepped: output of prepare_params().
    Returns (B, output_size).
    """
    B, S, D = x_bsd.shape
    L = (len(prepped) - 2) // 3
    H = prepped[1].shape[0]          # whh_t: (H, 4H)
    O = prepped[-2].shape[1]         # fcw_t: (H, O)

    # Batch-first -> time-major, flattened so each layer's input projection is
    # a single (S*B, in) GEMM.
    x_flat = jnp.swapaxes(x_bsd, 0, 1).reshape(S * B, D)

    kernel = functools.partial(_fused_stacked_lstm_kernel, L=L, S=S, B=B, H=H)

    in_specs = [pl.BlockSpec(x_flat.shape, lambda: (0, 0))]
    for p in prepped:
        in_specs.append(pl.BlockSpec(p.shape, lambda: (0, 0)))

    return pl.pallas_call(
        kernel,
        out_shape=jax.ShapeDtypeStruct((B, O), jnp.float32),
        in_specs=in_specs,
        out_specs=pl.BlockSpec((B, O), lambda: (0, 0)),
        scratch_shapes=[
            pltpu.VMEM((S * B, H), jnp.float32),       # inter-layer activations
            pltpu.VMEM((S * B, 4 * H), jnp.float32),   # precomputed input gates
            pltpu.VMEM((B, H), jnp.float32),           # h
            pltpu.VMEM((B, H), jnp.float32),           # c
        ],
    )(x_flat, *prepped)


# ---------------------------------------------------------------------------
# Pure-JAX reference (mirrors PyTorch nn.LSTM + nn.Linear semantics)
# ---------------------------------------------------------------------------
def stacked_lstm_ref(x_bsd, lstm_params, fc_w, fc_b):
    h_in = x_bsd
    for (w_ih, w_hh, b_ih, b_hh) in lstm_params:
        B, S, _ = h_in.shape
        H = w_hh.shape[1]

        def step(carry, xt, w_ih=w_ih, w_hh=w_hh, b_ih=b_ih, b_hh=b_hh):
            h, c = carry
            gates = xt @ w_ih.T + h @ w_hh.T + b_ih + b_hh
            i, f, g, o = jnp.split(gates, 4, axis=-1)
            i, f, o = jax.nn.sigmoid(i), jax.nn.sigmoid(f), jax.nn.sigmoid(o)
            g = jnp.tanh(g)
            c = f * c + i * g
            h = o * jnp.tanh(c)
            return (h, c), h

        init = (jnp.zeros((B, H), jnp.float32), jnp.zeros((B, H), jnp.float32))
        _, hs = jax.lax.scan(step, init, jnp.swapaxes(h_in, 0, 1))
        h_in = jnp.swapaxes(hs, 0, 1)
    return h_in[:, -1, :] @ fc_w.T + fc_b


# ---------------------------------------------------------------------------
# Main
# ---------------------------------------------------------------------------
if __name__ == "__main__":
    # Small shapes consistent with the module: batch=2, seq=8,
    # input_size=16, hidden_size=32, num_layers=2, output_size=4.
    B, S, D, H, L, O = 2, 8, 16, 32, 2, 4

    key = jax.random.PRNGKey(0)
    key, kx = jax.random.split(key)
    x = jax.random.normal(kx, (B, S, D), dtype=jnp.float32)

    # Deterministic parameter init (PyTorch-style uniform(-1/sqrt(H), 1/sqrt(H))).
    bound = 1.0 / jnp.sqrt(jnp.float32(H))
    lstm_params = []
    for layer in range(L):
        in_dim = D if layer == 0 else H
        key, k1, k2, k3, k4 = jax.random.split(key, 5)
        w_ih = jax.random.uniform(k1, (4 * H, in_dim), jnp.float32, -bound, bound)
        w_hh = jax.random.uniform(k2, (4 * H, H), jnp.float32, -bound, bound)
        b_ih = jax.random.uniform(k3, (4 * H,), jnp.float32, -bound, bound)
        b_hh = jax.random.uniform(k4, (4 * H,), jnp.float32, -bound, bound)
        lstm_params.append((w_ih, w_hh, b_ih, b_hh))

    key, k5, k6 = jax.random.split(key, 3)
    fc_bound = 1.0 / jnp.sqrt(jnp.float32(H))
    fc_w = jax.random.uniform(k5, (O, H), jnp.float32, -fc_bound, fc_bound)
    fc_b = jax.random.uniform(k6, (O,), jnp.float32, -fc_bound, fc_bound)

    # TODO(synk): inter-layer dropout is training-only (inference identity), so
    # it is intentionally omitted.

    # One-time weight prep (transposes, bias combine) hoisted out of forward.
    prepped = prepare_params(lstm_params, fc_w, fc_b)

    fwd = jax.jit(stacked_lstm_forward)
    out = fwd(x, *prepped)
    out = jax.block_until_ready(out)

    ref = stacked_lstm_ref(x, lstm_params, fc_w, fc_b)
    assert out.shape == (B, O), out.shape
    assert jnp.allclose(out, ref, atol=1e-4, rtol=1e-4), (out, ref)

    print("KERNEL_OK")
</pallas_src>

<mosaic_0001>
module attributes {stable_mosaic.version = 11 : i64} {
  func.func @_fused_stacked_lstm_kernel(%arg0: memref<16x16xf32, #tpu.memory_space<vmem>>, %arg1: memref<16x128xf32, #tpu.memory_space<vmem>>, %arg2: memref<32x128xf32, #tpu.memory_space<vmem>>, %arg3: memref<1x128xf32, #tpu.memory_space<vmem>>, %arg4: memref<32x128xf32, #tpu.memory_space<vmem>>, %arg5: memref<32x128xf32, #tpu.memory_space<vmem>>, %arg6: memref<1x128xf32, #tpu.memory_space<vmem>>, %arg7: memref<32x4xf32, #tpu.memory_space<vmem>>, %arg8: memref<1x4xf32, #tpu.memory_space<vmem>>, %arg9: memref<2x4xf32, #tpu.memory_space<vmem>>, %arg10: memref<16x32xf32, #tpu.memory_space<vmem>>, %arg11: memref<16x128xf32, #tpu.memory_space<vmem>>, %arg12: memref<2x32xf32, #tpu.memory_space<vmem>>, %arg13: memref<2x32xf32, #tpu.memory_space<vmem>>) attributes {dimension_semantics = [], scalar_prefetch = 0 : i64, scratch_operands = 4 : i64, tpu.core_type = #tpu.core_type<tc>} {
    %c0 = arith.constant 0 : index
    %c0_0 = arith.constant 0 : index
    %0 = vector.load %arg0[%c0, %c0_0] : memref<16x16xf32, #tpu.memory_space<vmem>>, vector<16x16xf32>
    %c0_1 = arith.constant 0 : index
    %c0_2 = arith.constant 0 : index
    %1 = vector.load %arg1[%c0_1, %c0_2] : memref<16x128xf32, #tpu.memory_space<vmem>>, vector<16x128xf32>
    %cst = arith.constant dense<0.000000e+00> : vector<16x128xf32>
    %2 = tpu.matmul %0, %1, %cst {dimension_numbers = #tpu.dot_dimension_numbers<[1], [0], [0], [1], [0, 0, 1, 1], [], []>} : vector<16x16xf32>, vector<16x128xf32>, vector<16x128xf32> -> vector<16x128xf32>
    %c0_3 = arith.constant 0 : index
    %c0_4 = arith.constant 0 : index
    %3 = vector.load %arg3[%c0_3, %c0_4] : memref<1x128xf32, #tpu.memory_space<vmem>>, vector<1x128xf32>
    %4 = vector.broadcast %3 : vector<1x128xf32> to vector<16x128xf32>
    %5 = arith.addf %2, %4 : vector<16x128xf32>
    %c0_5 = arith.constant 0 : index
    %c0_6 = arith.constant 0 : index
    %6 = vector.load %arg11[%c0_5, %c0_6] : memref<16x128xf32, #tpu.memory_space<vmem>>, vector<16x128xf32>
    tpu.vector_store %arg11[%c0_5, %c0_6], %5 {strides = array<i32>} : memref<16x128xf32, #tpu.memory_space<vmem>>, vector<16x128xf32>,
    %cst_7 = arith.constant 0.000000e+00 : f32
    %7 = vector.broadcast %cst_7 : f32 to vector<2x32xf32>
    %c0_8 = arith.constant 0 : index
    %c0_9 = arith.constant 0 : index
    %8 = vector.load %arg12[%c0_8, %c0_9] : memref<2x32xf32, #tpu.memory_space<vmem>>, vector<2x32xf32>
    tpu.vector_store %arg12[%c0_8, %c0_9], %7 {strides = array<i32>} : memref<2x32xf32, #tpu.memory_space<vmem>>, vector<2x32xf32>,
    %cst_10 = arith.constant 0.000000e+00 : f32
    %9 = vector.broadcast %cst_10 : f32 to vector<2x32xf32>
    %c0_11 = arith.constant 0 : index
    %c0_12 = arith.constant 0 : index
    %10 = vector.load %arg13[%c0_11, %c0_12] : memref<2x32xf32, #tpu.memory_space<vmem>>, vector<2x32xf32>
    tpu.vector_store %arg13[%c0_11, %c0_12], %9 {strides = array<i32>} : memref<2x32xf32, #tpu.memory_space<vmem>>, vector<2x32xf32>,
    %c0_13 = arith.constant 0 : index
    %c0_14 = arith.constant 0 : index
    %11 = vector.load %arg11[%c0_13, %c0_14] : memref<16x128xf32, #tpu.memory_space<vmem>>, vector<2x128xf32>
    %c0_15 = arith.constant 0 : index
    %c0_16 = arith.constant 0 : index
    %12 = vector.load %arg12[%c0_15, %c0_16] : memref<2x32xf32, #tpu.memory_space<vmem>>, vector<2x32xf32>
    %c0_17 = arith.constant 0 : index
    %c0_18 = arith.constant 0 : index
    %13 = vector.load %arg2[%c0_17, %c0_18] : memref<32x128xf32, #tpu.memory_space<vmem>>, vector<32x128xf32>
    %cst_19 = arith.constant dense<0.000000e+00> : vector<2x128xf32>
    %14 = tpu.matmul %12, %13, %cst_19 {dimension_numbers = #tpu.dot_dimension_numbers<[1], [0], [0], [1], [0, 0, 1, 1], [], []>} : vector<2x32xf32>, vector<32x128xf32>, vector<2x128xf32> -> vector<2x128xf32>
    %15 = arith.addf %11, %14 : vector<2x128xf32>
    %16 = arith.negf %15 : vector<2x128xf32>
    %17 = math.exp %16 : vector<2x128xf32>
    %cst_20 = arith.constant 1.000000e+00 : f32
    %18 = vector.broadcast %cst_20 : f32 to vector<2x128xf32>
    %19 = arith.addf %18, %17 : vector<2x128xf32>
    %20 = arith.divf %18, %19 : vector<2x128xf32>
    %21 = math.tanh %15 : vector<2x128xf32>
    %22 = vector.extract_strided_slice %20 {offsets = [0, 0], sizes = [2, 32], strides = [1, 1]} : vector<2x128xf32> to vector<2x32xf32>
    %23 = vector.extract_strided_slice %20 {offsets = [0, 32], sizes = [2, 32], strides = [1, 1]} : vector<2x128xf32> to vector<2x32xf32>
    %24 = vector.extract_strided_slice %21 {offsets = [0, 64], sizes = [2, 32], strides = [1, 1]} : vector<2x128xf32> to vector<2x32xf32>
    %25 = vector.extract_strided_slice %20 {offsets = [0, 96], sizes = [2, 32], strides = [1, 1]} : vector<2x128xf32> to vector<2x32xf32>
    %c0_21 = arith.constant 0 : index
    %c0_22 = arith.constant 0 : index
    %26 = vector.load %arg13[%c0_21, %c0_22] : memref<2x32xf32, #tpu.memory_space<vmem>>, vector<2x32xf32>
    %27 = arith.mulf %23, %26 : vector<2x32xf32>
    %28 = arith.mulf %22, %24 : vector<2x32xf32>
    %29 = arith.addf %27, %28 : vector<2x32xf32>
    %30 = math.tanh %29 : vector<2x32xf32>
    %31 = arith.mulf %25, %30 : vector<2x32xf32>
    %c0_23 = arith.constant 0 : index
    %c0_24 = arith.constant 0 : index
    %32 = vector.load %arg13[%c0_23, %c0_24] : memref<2x32xf32, #tpu.memory_space<vmem>>, vector<2x32xf32>
    tpu.vector_store %arg13[%c0_23, %c0_24], %29 {strides = array<i32>} : memref<2x32xf32, #tpu.memory_space<vmem>>, vector<2x32xf32>,
    %c0_25 = arith.constant 0 : index
    %c0_26 = arith.constant 0 : index
    %33 = vector.load %arg12[%c0_25, %c0_26] : memref<2x32xf32, #tpu.memory_space<vmem>>, vector<2x32xf32>
    tpu.vector_store %arg12[%c0_25, %c0_26], %31 {strides = array<i32>} : memref<2x32xf32, #tpu.memory_space<vmem>>, vector<2x32xf32>,
    %c0_27 = arith.constant 0 : index
    %c0_28 = arith.constant 0 : index
    %34 = vector.load %arg10[%c0_27, %c0_28] : memref<16x32xf32, #tpu.memory_space<vmem>>, vector<2x32xf32>
    tpu.vector_store %arg10[%c0_27, %c0_28], %31 {strides = array<i32>} : memref<16x32xf32, #tpu.memory_space<vmem>>, vector<2x32xf32>,
    %c2 = arith.constant 2 : index
    %c0_29 = arith.constant 0 : index
    %35 = vector.load %arg11[%c2, %c0_29] : memref<16x128xf32, #tpu.memory_space<vmem>>, vector<2x128xf32>
    %c0_30 = arith.constant 0 : index
    %c0_31 = arith.constant 0 : index
    %36 = vector.load %arg12[%c0_30, %c0_31] : memref<2x32xf32, #tpu.memory_space<vmem>>, vector<2x32xf32>
    %c0_32 = arith.constant 0 : index
    %c0_33 = arith.constant 0 : index
    %37 = vector.load %arg2[%c0_32, %c0_33] : memref<32x128xf32, #tpu.memory_space<vmem>>, vector<32x128xf32>
    %cst_34 = arith.constant dense<0.000000e+00> : vector<2x128xf32>
    %38 = tpu.matmul %36, %37, %cst_34 {dimension_numbers = #tpu.dot_dimension_numbers<[1], [0], [0], [1], [0, 0, 1, 1], [], []>} : vector<2x32xf32>, vector<32x128xf32>, vector<2x128xf32> -> vector<2x128xf32>
    %39 = arith.addf %35, %38 : vector<2x128xf32>
    %40 = arith.negf %39 : vector<2x128xf32>
    %41 = math.exp %40 : vector<2x128xf32>
    %cst_35 = arith.constant 1.000000e+00 : f32
    %42 = vector.broadcast %cst_35 : f32 to vector<2x128xf32>
    %43 = arith.addf %42, %41 : vector<2x128xf32>
    %44 = arith.divf %42, %43 : vector<2x128xf32>
    %45 = math.tanh %39 : vector<2x128xf32>
    %46 = vector.extract_strided_slice %44 {offsets = [0, 0], sizes = [2, 32], strides = [1, 1]} : vector<2x128xf32> to vector<2x32xf32>
    %47 = vector.extract_strided_slice %44 {offsets = [0, 32], sizes = [2, 32], strides = [1, 1]} : vector<2x128xf32> to vector<2x32xf32>
    %48 = vector.extract_strided_slice %45 {offsets = [0, 64], sizes = [2, 32], strides = [1, 1]} : vector<2x128xf32> to vector<2x32xf32>
    %49 = vector.extract_strided_slice %44 {offsets = [0, 96], sizes = [2, 32], strides = [1, 1]} : vector<2x128xf32> to vector<2x32xf32>
    %c0_36 = arith.constant 0 : index
    %c0_37 = arith.constant 0 : index
    %50 = vector.load %arg13[%c0_36, %c0_37] : memref<2x32xf32, #tpu.memory_space<vmem>>, vector<2x32xf32>
    %51 = arith.mulf %47, %50 : vector<2x32xf32>
    %52 = arith.mulf %46, %48 : vector<2x32xf32>
    %53 = arith.addf %51, %52 : vector<2x32xf32>
    %54 = math.tanh %53 : vector<2x32xf32>
    %55 = arith.mulf %49, %54 : vector<2x32xf32>
    %c0_38 = arith.constant 0 : index
    %c0_39 = arith.constant 0 : index
    %56 = vector.load %arg13[%c0_38, %c0_39] : memref<2x32xf32, #tpu.memory_space<vmem>>, vector<2x32xf32>
    tpu.vector_store %arg13[%c0_38, %c0_39], %53 {strides = array<i32>} : memref<2x32xf32, #tpu.memory_space<vmem>>, vector<2x32xf32>,
    %c0_40 = arith.constant 0 : index
    %c0_41 = arith.constant 0 : index
    %57 = vector.load %arg12[%c0_40, %c0_41] : memref<2x32xf32, #tpu.memory_space<vmem>>, vector<2x32xf32>
    tpu.vector_store %arg12[%c0_40, %c0_41], %55 {strides = array<i32>} : memref<2x32xf32, #tpu.memory_space<vmem>>, vector<2x32xf32>,
    %c2_42 = arith.constant 2 : index
    %c0_43 = arith.constant 0 : index
    %58 = vector.load %arg10[%c2_42, %c0_43] : memref<16x32xf32, #tpu.memory_space<vmem>>, vector<2x32xf32>
    tpu.vector_store %arg10[%c2_42, %c0_43], %55 {strides = array<i32>} : memref<16x32xf32, #tpu.memory_space<vmem>>, vector<2x32xf32>,
    %c4 = arith.constant 4 : index
    %c0_44 = arith.constant 0 : index
    %59 = vector.load %arg11[%c4, %c0_44] : memref<16x128xf32, #tpu.memory_space<vmem>>, vector<2x128xf32>
    %c0_45 = arith.constant 0 : index
    %c0_46 = arith.constant 0 : index
    %60 = vector.load %arg12[%c0_45, %c0_46] : memref<2x32xf32, #tpu.memory_space<vmem>>, vector<2x32xf32>
    %c0_47 = arith.constant 0 : index
    %c0_48 = arith.constant 0 : index
    %61 = vector.load %arg2[%c0_47, %c0_48] : memref<32x128xf32, #tpu.memory_space<vmem>>, vector<32x128xf32>
    %cst_49 = arith.constant dense<0.000000e+00> : vector<2x128xf32>
    %62 = tpu.matmul %60, %61, %cst_49 {dimension_numbers = #tpu.dot_dimension_numbers<[1], [0], [0], [1], [0, 0, 1, 1], [], []>} : vector<2x32xf32>, vector<32x128xf32>, vector<2x128xf32> -> vector<2x128xf32>
    %63 = arith.addf %59, %62 : vector<2x128xf32>
    %64 = arith.negf %63 : vector<2x128xf32>
    %65 = math.exp %64 : vector<2x128xf32>
    %cst_50 = arith.constant 1.000000e+00 : f32
    %66 = vector.broadcast %cst_50 : f32 to vector<2x128xf32>
    %67 = arith.addf %66, %65 : vector<2x128xf32>
    %68 = arith.divf %66, %67 : vector<2x128xf32>
    %69 = math.tanh %63 : vector<2x128xf32>
    %70 = vector.extract_strided_slice %68 {offsets = [0, 0], sizes = [2, 32], strides = [1, 1]} : vector<2x128xf32> to vector<2x32xf32>
    %71 = vector.extract_strided_slice %68 {offsets = [0, 32], sizes = [2, 32], strides = [1, 1]} : vector<2x128xf32> to vector<2x32xf32>
    %72 = vector.extract_strided_slice %69 {offsets = [0, 64], sizes = [2, 32], strides = [1, 1]} : vector<2x128xf32> to vector<2x32xf32>
    %73 = vector.extract_strided_slice %68 {offsets = [0, 96], sizes = [2, 32], strides = [1, 1]} : vector<2x128xf32> to vector<2x32xf32>
    %c0_51 = arith.constant 0 : index
    %c0_52 = arith.constant 0 : index
    %74 = vector.load %arg13[%c0_51, %c0_52] : memref<2x32xf32, #tpu.memory_space<vmem>>, vector<2x32xf32>
    %75 = arith.mulf %71, %74 : vector<2x32xf32>
    %76 = arith.mulf %70, %72 : vector<2x32xf32>
    %77 = arith.addf %75, %76 : vector<2x32xf32>
    %78 = math.tanh %77 : vector<2x32xf32>
    %79 = arith.mulf %73, %78 : vector<2x32xf32>
    %c0_53 = arith.constant 0 : index
    %c0_54 = arith.constant 0 : index
    %80 = vector.load %arg13[%c0_53, %c0_54] : memref<2x32xf32, #tpu.memory_space<vmem>>, vector<2x32xf32>
    tpu.vector_store %arg13[%c0_53, %c0_54], %77 {strides = array<i32>} : memref<2x32xf32, #tpu.memory_space<vmem>>, vector<2x32xf32>,
    %c0_55 = arith.constant 0 : index
    %c0_56 = arith.constant 0 : index
    %81 = vector.load %arg12[%c0_55, %c0_56] : memref<2x32xf32, #tpu.memory_space<vmem>>, vector<2x32xf32>
    tpu.vector_store %arg12[%c0_55, %c0_56], %79 {strides = array<i32>} : memref<2x32xf32, #tpu.memory_space<vmem>>, vector<2x32xf32>,
    %c4_57 = arith.constant 4 : index
    %c0_58 = arith.constant 0 : index
    %82 = vector.load %arg10[%c4_57, %c0_58] : memref<16x32xf32, #tpu.memory_space<vmem>>, vector<2x32xf32>
    tpu.vector_store %arg10[%c4_57, %c0_58], %79 {strides = array<i32>} : memref<16x32xf32, #tpu.memory_space<vmem>>, vector<2x32xf32>,
    %c6 = arith.constant 6 : index
    %c0_59 = arith.constant 0 : index
    %83 = vector.load %arg11[%c6, %c0_59] : memref<16x128xf32, #tpu.memory_space<vmem>>, vector<2x128xf32>
    %c0_60 = arith.constant 0 : index
    %c0_61 = arith.constant 0 : index
    %84 = vector.load %arg12[%c0_60, %c0_61] : memref<2x32xf32, #tpu.memory_space<vmem>>, vector<2x32xf32>
    %c0_62 = arith.constant 0 : index
    %c0_63 = arith.constant 0 : index
    %85 = vector.load %arg2[%c0_62, %c0_63] : memref<32x128xf32, #tpu.memory_space<vmem>>, vector<32x128xf32>
    %cst_64 = arith.constant dense<0.000000e+00> : vector<2x128xf32>
    %86 = tpu.matmul %84, %85, %cst_64 {dimension_numbers = #tpu.dot_dimension_numbers<[1], [0], [0], [1], [0, 0, 1, 1], [], []>} : vector<2x32xf32>, vector<32x128xf32>, vector<2x128xf32> -> vector<2x128xf32>
    %87 = arith.addf %83, %86 : vector<2x128xf32>
    %88 = arith.negf %87 : vector<2x128xf32>
    %89 = math.exp %88 : vector<2x128xf32>
    %cst_65 = arith.constant 1.000000e+00 : f32
    %90 = vector.broadcast %cst_65 : f32 to vector<2x128xf32>
    %91 = arith.addf %90, %89 : vector<2x128xf32>
    %92 = arith.divf %90, %91 : vector<2x128xf32>
    %93 = math.tanh %87 : vector<2x128xf32>
    %94 = vector.extract_strided_slice %92 {offsets = [0, 0], sizes = [2, 32], strides = [1, 1]} : vector<2x128xf32> to vector<2x32xf32>
    %95 = vector.extract_strided_slice %92 {offsets = [0, 32], sizes = [2, 32], strides = [1, 1]} : vector<2x128xf32> to vector<2x32xf32>
    %96 = vector.extract_strided_slice %93 {offsets = [0, 64], sizes = [2, 32], strides = [1, 1]} : vector<2x128xf32> to vector<2x32xf32>
    %97 = vector.extract_strided_slice %92 {offsets = [0, 96], sizes = [2, 32], strides = [1, 1]} : vector<2x128xf32> to vector<2x32xf32>
    %c0_66 = arith.constant 0 : index
    %c0_67 = arith.constant 0 : index
    %98 = vector.load %arg13[%c0_66, %c0_67] : memref<2x32xf32, #tpu.memory_space<vmem>>, vector<2x32xf32>
    %99 = arith.mulf %95, %98 : vector<2x32xf32>
    %100 = arith.mulf %94, %96 : vector<2x32xf32>
    %101 = arith.addf %99, %100 : vector<2x32xf32>
    %102 = math.tanh %101 : vector<2x32xf32>
    %103 = arith.mulf %97, %102 : vector<2x32xf32>
    %c0_68 = arith.constant 0 : index
    %c0_69 = arith.constant 0 : index
    %104 = vector.load %arg13[%c0_68, %c0_69] : memref<2x32xf32, #tpu.memory_space<vmem>>, vector<2x32xf32>
    tpu.vector_store %arg13[%c0_68, %c0_69], %101 {strides = array<i32>} : memref<2x32xf32, #tpu.memory_space<vmem>>, vector<2x32xf32>,
    %c0_70 = arith.constant 0 : index
    %c0_71 = arith.constant 0 : index
    %105 = vector.load %arg12[%c0_70, %c0_71] : memref<2x32xf32, #tpu.memory_space<vmem>>, vector<2x32xf32>
    tpu.vector_store %arg12[%c0_70, %c0_71], %103 {strides = array<i32>} : memref<2x32xf32, #tpu.memory_space<vmem>>, vector<2x32xf32>,
    %c6_72 = arith.constant 6 : index
    %c0_73 = arith.constant 0 : index
    %106 = vector.load %arg10[%c6_72, %c0_73] : memref<16x32xf32, #tpu.memory_space<vmem>>, vector<2x32xf32>
    tpu.vector_store %arg10[%c6_72, %c0_73], %103 {strides = array<i32>} : memref<16x32xf32, #tpu.memory_space<vmem>>, vector<2x32xf32>,
    %c8 = arith.constant 8 : index
    %c0_74 = arith.constant 0 : index
    %107 = vector.load %arg11[%c8, %c0_74] : memref<16x128xf32, #tpu.memory_space<vmem>>, vector<2x128xf32>
    %c0_75 = arith.constant 0 : index
    %c0_76 = arith.constant 0 : index
    %108 = vector.load %arg12[%c0_75, %c0_76] : memref<2x32xf32, #tpu.memory_space<vmem>>, vector<2x32xf32>
    %c0_77 = arith.constant 0 : index
    %c0_78 = arith.constant 0 : index
    %109 = vector.load %arg2[%c0_77, %c0_78] : memref<32x128xf32, #tpu.memory_space<vmem>>, vector<32x128xf32>
    %cst_79 = arith.constant dense<0.000000e+00> : vector<2x128xf32>
    %110 = tpu.matmul %108, %109, %cst_79 {dimension_numbers = #tpu.dot_dimension_numbers<[1], [0], [0], [1], [0, 0, 1, 1], [], []>} : vector<2x32xf32>, vector<32x128xf32>, vector<2x128xf32> -> vector<2x128xf32>
    %111 = arith.addf %107, %110 : vector<2x128xf32>
    %112 = arith.negf %111 : vector<2x128xf32>
    %113 = math.exp %112 : vector<2x128xf32>
    %cst_80 = arith.constant 1.000000e+00 : f32
    %114 = vector.broadcast %cst_80 : f32 to vector<2x128xf32>
    %115 = arith.addf %114, %113 : vector<2x128xf32>
    %116 = arith.divf %114, %115 : vector<2x128xf32>
    %117 = math.tanh %111 : vector<2x128xf32>
    %118 = vector.extract_strided_slice %116 {offsets = [0, 0], sizes = [2, 32], strides = [1, 1]} : vector<2x128xf32> to vector<2x32xf32>
    %119 = vector.extract_strided_slice %116 {offsets = [0, 32], sizes = [2, 32], strides = [1, 1]} : vector<2x128xf32> to vector<2x32xf32>
    %120 = vector.extract_strided_slice %117 {offsets = [0, 64], sizes = [2, 32], strides = [1, 1]} : vector<2x128xf32> to vector<2x32xf32>
    %121 = vector.extract_strided_slice %116 {offsets = [0, 96], sizes = [2, 32], strides = [1, 1]} : vector<2x128xf32> to vector<2x32xf32>
    %c0_81 = arith.constant 0 : index
    %c0_82 = arith.constant 0 : index
    %122 = vector.load %arg13[%c0_81, %c0_82] : memref<2x32xf32, #tpu.memory_space<vmem>>, vector<2x32xf32>
    %123 = arith.mulf %119, %122 : vector<2x32xf32>
    %124 = arith.mulf %118, %120 : vector<2x32xf32>
    %125 = arith.addf %123, %124 : vector<2x32xf32>
    %126 = math.tanh %125 : vector<2x32xf32>
    %127 = arith.mulf %121, %126 : vector<2x32xf32>
    %c0_83 = arith.constant 0 : index
    %c0_84 = arith.constant 0 : index
    %128 = vector.load %arg13[%c0_83, %c0_84] : memref<2x32xf32, #tpu.memory_space<vmem>>, vector<2x32xf32>
    tpu.vector_store %arg13[%c0_83, %c0_84], %125 {strides = array<i32>} : memref<2x32xf32, #tpu.memory_space<vmem>>, vector<2x32xf32>,
    %c0_85 = arith.constant 0 : index
    %c0_86 = arith.constant 0 : index
    %129 = vector.load %arg12[%c0_85, %c0_86] : memref<2x32xf32, #tpu.memory_space<vmem>>, vector<2x32xf32>
    tpu.vector_store %arg12[%c0_85, %c0_86], %127 {strides = array<i32>} : memref<2x32xf32, #tpu.memory_space<vmem>>, vector<2x32xf32>,
    %c8_87 = arith.constant 8 : index
    %c0_88 = arith.constant 0 : index
    %130 = vector.load %arg10[%c8_87, %c0_88] : memref<16x32xf32, #tpu.memory_space<vmem>>, vector<2x32xf32>
    tpu.vector_store %arg10[%c8_87, %c0_88], %127 {strides = array<i32>} : memref<16x32xf32, #tpu.memory_space<vmem>>, vector<2x32xf32>,
    %c10 = arith.constant 10 : index
    %c0_89 = arith.constant 0 : index
    %131 = vector.load %arg11[%c10, %c0_89] : memref<16x128xf32, #tpu.memory_space<vmem>>, vector<2x128xf32>
    %c0_90 = arith.constant 0 : index
    %c0_91 = arith.constant 0 : index
    %132 = vector.load %arg12[%c0_90, %c0_91] : memref<2x32xf32, #tpu.memory_space<vmem>>, vector<2x32xf32>
    %c0_92 = arith.constant 0 : index
    %c0_93 = arith.constant 0 : index
    %133 = vector.load %arg2[%c0_92, %c0_93] : memref<32x128xf32, #tpu.memory_space<vmem>>, vector<32x128xf32>
    %cst_94 = arith.constant dense<0.000000e+00> : vector<2x128xf32>
    %134 = tpu.matmul %132, %133, %cst_94 {dimension_numbers = #tpu.dot_dimension_numbers<[1], [0], [0], [1], [0, 0, 1, 1], [], []>} : vector<2x32xf32>, vector<32x128xf32>, vector<2x128xf32> -> vector<2x128xf32>
    %135 = arith.addf %131, %134 : vector<2x128xf32>
    %136 = arith.negf %135 : vector<2x128xf32>
    %137 = math.exp %136 : vector<2x128xf32>
    %cst_95 = arith.constant 1.000000e+00 : f32
    %138 = vector.broadcast %cst_95 : f32 to vector<2x128xf32>
    %139 = arith.addf %138, %137 : vector<2x128xf32>
    %140 = arith.divf %138, %139 : vector<2x128xf32>
    %141 = math.tanh %135 : vector<2x128xf32>
    %142 = vector.extract_strided_slice %140 {offsets = [0, 0], sizes = [2, 32], strides = [1, 1]} : vector<2x128xf32> to vector<2x32xf32>
    %143 = vector.extract_strided_slice %140 {offsets = [0, 32], sizes = [2, 32], strides = [1, 1]} : vector<2x128xf32> to vector<2x32xf32>
    %144 = vector.extract_strided_slice %141 {offsets = [0, 64], sizes = [2, 32], strides = [1, 1]} : vector<2x128xf32> to vector<2x32xf32>
    %145 = vector.extract_strided_slice %140 {offsets = [0, 96], sizes = [2, 32], strides = [1, 1]} : vector<2x128xf32> to vector<2x32xf32>
    %c0_96 = arith.constant 0 : index
    %c0_97 = arith.constant 0 : index
    %146 = vector.load %arg13[%c0_96, %c0_97] : memref<2x32xf32, #tpu.memory_space<vmem>>, vector<2x32xf32>
    %147 = arith.mulf %143, %146 : vector<2x32xf32>
    %148 = arith.mulf %142, %144 : vector<2x32xf32>
    %149 = arith.addf %147, %148 : vector<2x32xf32>
    %150 = math.tanh %149 : vector<2x32xf32>
    %151 = arith.mulf %145, %150 : vector<2x32xf32>
    %c0_98 = arith.constant 0 : index
    %c0_99 = arith.constant 0 : index
    %152 = vector.load %arg13[%c0_98, %c0_99] : memref<2x32xf32, #tpu.memory_space<vmem>>, vector<2x32xf32>
    tpu.vector_store %arg13[%c0_98, %c0_99], %149 {strides = array<i32>} : memref<2x32xf32, #tpu.memory_space<vmem>>, vector<2x32xf32>,
    %c0_100 = arith.constant 0 : index
    %c0_101 = arith.constant 0 : index
    %153 = vector.load %arg12[%c0_100, %c0_101] : memref<2x32xf32, #tpu.memory_space<vmem>>, vector<2x32xf32>
    tpu.vector_store %arg12[%c0_100, %c0_101], %151 {strides = array<i32>} : memref<2x32xf32, #tpu.memory_space<vmem>>, vector<2x32xf32>,
    %c10_102 = arith.constant 10 : index
    %c0_103 = arith.constant 0 : index
    %154 = vector.load %arg10[%c10_102, %c0_103] : memref<16x32xf32, #tpu.memory_space<vmem>>, vector<2x32xf32>
    tpu.vector_store %arg10[%c10_102, %c0_103], %151 {strides = array<i32>} : memref<16x32xf32, #tpu.memory_space<vmem>>, vector<2x32xf32>,
    %c12 = arith.constant 12 : index
    %c0_104 = arith.constant 0 : index
    %155 = vector.load %arg11[%c12, %c0_104] : memref<16x128xf32, #tpu.memory_space<vmem>>, vector<2x128xf32>
    %c0_105 = arith.constant 0 : index
    %c0_106 = arith.constant 0 : index
    %156 = vector.load %arg12[%c0_105, %c0_106] : memref<2x32xf32, #tpu.memory_space<vmem>>, vector<2x32xf32>
    %c0_107 = arith.constant 0 : index
    %c0_108 = arith.constant 0 : index
    %157 = vector.load %arg2[%c0_107, %c0_108] : memref<32x128xf32, #tpu.memory_space<vmem>>, vector<32x128xf32>
    %cst_109 = arith.constant dense<0.000000e+00> : vector<2x128xf32>
    %158 = tpu.matmul %156, %157, %cst_109 {dimension_numbers = #tpu.dot_dimension_numbers<[1], [0], [0], [1], [0, 0, 1, 1], [], []>} : vector<2x32xf32>, vector<32x128xf32>, vector<2x128xf32> -> vector<2x128xf32>
    %159 = arith.addf %155, %158 : vector<2x128xf32>
    %160 = arith.negf %159 : vector<2x128xf32>
    %161 = math.exp %160 : vector<2x128xf32>
    %cst_110 = arith.constant 1.000000e+00 : f32
    %162 = vector.broadcast %cst_110 : f32 to vector<2x128xf32>
    %163 = arith.addf %162, %161 : vector<2x128xf32>
    %164 = arith.divf %162, %163 : vector<2x128xf32>
    %165 = math.tanh %159 : vector<2x128xf32>
    %166 = vector.extract_strided_slice %164 {offsets = [0, 0], sizes = [2, 32], strides = [1, 1]} : vector<2x128xf32> to vector<2x32xf32>
    %167 = vector.extract_strided_slice %164 {offsets = [0, 32], sizes = [2, 32], strides = [1, 1]} : vector<2x128xf32> to vector<2x32xf32>
    %168 = vector.extract_strided_slice %165 {offsets = [0, 64], sizes = [2, 32], strides = [1, 1]} : vector<2x128xf32> to vector<2x32xf32>
    %169 = vector.extract_strided_slice %164 {offsets = [0, 96], sizes = [2, 32], strides = [1, 1]} : vector<2x128xf32> to vector<2x32xf32>
    %c0_111 = arith.constant 0 : index
    %c0_112 = arith.constant 0 : index
    %170 = vector.load %arg13[%c0_111, %c0_112] : memref<2x32xf32, #tpu.memory_space<vmem>>, vector<2x32xf32>
    %171 = arith.mulf %167, %170 : vector<2x32xf32>
    %172 = arith.mulf %166, %168 : vector<2x32xf32>
    %173 = arith.addf %171, %172 : vector<2x32xf32>
    %174 = math.tanh %173 : vector<2x32xf32>
    %175 = arith.mulf %169, %174 : vector<2x32xf32>
    %c0_113 = arith.constant 0 : index
    %c0_114 = arith.constant 0 : index
    %176 = vector.load %arg13[%c0_113, %c0_114] : memref<2x32xf32, #tpu.memory_space<vmem>>, vector<2x32xf32>
    tpu.vector_store %arg13[%c0_113, %c0_114], %173 {strides = array<i32>} : memref<2x32xf32, #tpu.memory_space<vmem>>, vector<2x32xf32>,
    %c0_115 = arith.constant 0 : index
    %c0_116 = arith.constant 0 : index
    %177 = vector.load %arg12[%c0_115, %c0_116] : memref<2x32xf32, #tpu.memory_space<vmem>>, vector<2x32xf32>
    tpu.vector_store %arg12[%c0_115, %c0_116], %175 {strides = array<i32>} : memref<2x32xf32, #tpu.memory_space<vmem>>, vector<2x32xf32>,
    %c12_117 = arith.constant 12 : index
    %c0_118 = arith.constant 0 : index
    %178 = vector.load %arg10[%c12_117, %c0_118] : memref<16x32xf32, #tpu.memory_space<vmem>>, vector<2x32xf32>
    tpu.vector_store %arg10[%c12_117, %c0_118], %175 {strides = array<i32>} : memref<16x32xf32, #tpu.memory_space<vmem>>, vector<2x32xf32>,
    %c14 = arith.constant 14 : index
    %c0_119 = arith.constant 0 : index
    %179 = vector.load %arg11[%c14, %c0_119] : memref<16x128xf32, #tpu.memory_space<vmem>>, vector<2x128xf32>
    %c0_120 = arith.constant 0 : index
    %c0_121 = arith.constant 0 : index
    %180 = vector.load %arg12[%c0_120, %c0_121] : memref<2x32xf32, #tpu.memory_space<vmem>>, vector<2x32xf32>
    %c0_122 = arith.constant 0 : index
    %c0_123 = arith.constant 0 : index
    %181 = vector.load %arg2[%c0_122, %c0_123] : memref<32x128xf32, #tpu.memory_space<vmem>>, vector<32x128xf32>
    %cst_124 = arith.constant dense<0.000000e+00> : vector<2x128xf32>
    %182 = tpu.matmul %180, %181, %cst_124 {dimension_numbers = #tpu.dot_dimension_numbers<[1], [0], [0], [1], [0, 0, 1, 1], [], []>} : vector<2x32xf32>, vector<32x128xf32>, vector<2x128xf32> -> vector<2x128xf32>
    %183 = arith.addf %179, %182 : vector<2x128xf32>
    %184 = arith.negf %183 : vector<2x128xf32>
    %185 = math.exp %184 : vector<2x128xf32>
    %cst_125 = arith.constant 1.000000e+00 : f32
    %186 = vector.broadcast %cst_125 : f32 to vector<2x128xf32>
    %187 = arith.addf %186, %185 : vector<2x128xf32>
    %188 = arith.divf %186, %187 : vector<2x128xf32>
    %189 = math.tanh %183 : vector<2x128xf32>
    %190 = vector.extract_strided_slice %188 {offsets = [0, 0], sizes = [2, 32], strides = [1, 1]} : vector<2x128xf32> to vector<2x32xf32>
    %191 = vector.extract_strided_slice %188 {offsets = [0, 32], sizes = [2, 32], strides = [1, 1]} : vector<2x128xf32> to vector<2x32xf32>
    %192 = vector.extract_strided_slice %189 {offsets = [0, 64], sizes = [2, 32], strides = [1, 1]} : vector<2x128xf32> to vector<2x32xf32>
    %193 = vector.extract_strided_slice %188 {offsets = [0, 96], sizes = [2, 32], strides = [1, 1]} : vector<2x128xf32> to vector<2x32xf32>
    %c0_126 = arith.constant 0 : index
    %c0_127 = arith.constant 0 : index
    %194 = vector.load %arg13[%c0_126, %c0_127] : memref<2x32xf32, #tpu.memory_space<vmem>>, vector<2x32xf32>
    %195 = arith.mulf %191, %194 : vector<2x32xf32>
    %196 = arith.mulf %190, %192 : vector<2x32xf32>
    %197 = arith.addf %195, %196 : vector<2x32xf32>
    %198 = math.tanh %197 : vector<2x32xf32>
    %199 = arith.mulf %193, %198 : vector<2x32xf32>
    %c0_128 = arith.constant 0 : index
    %c0_129 = arith.constant 0 : index
    %200 = vector.load %arg13[%c0_128, %c0_129] : memref<2x32xf32, #tpu.memory_space<vmem>>, vector<2x32xf32>
    tpu.vector_store %arg13[%c0_128, %c0_129], %197 {strides = array<i32>} : memref<2x32xf32, #tpu.memory_space<vmem>>, vector<2x32xf32>,
    %c0_130 = arith.constant 0 : index
    %c0_131 = arith.constant 0 : index
    %201 = vector.load %arg12[%c0_130, %c0_131] : memref<2x32xf32, #tpu.memory_space<vmem>>, vector<2x32xf32>
    tpu.vector_store %arg12[%c0_130, %c0_131], %199 {strides = array<i32>} : memref<2x32xf32, #tpu.memory_space<vmem>>, vector<2x32xf32>,
    %c14_132 = arith.constant 14 : index
    %c0_133 = arith.constant 0 : index
    %202 = vector.load %arg10[%c14_132, %c0_133] : memref<16x32xf32, #tpu.memory_space<vmem>>, vector<2x32xf32>
    tpu.vector_store %arg10[%c14_132, %c0_133], %199 {strides = array<i32>} : memref<16x32xf32, #tpu.memory_space<vmem>>, vector<2x32xf32>,
    %c0_134 = arith.constant 0 : index
    %c0_135 = arith.constant 0 : index
    %203 = vector.load %arg10[%c0_134, %c0_135] : memref<16x32xf32, #tpu.memory_space<vmem>>, vector<16x32xf32>
    %c0_136 = arith.constant 0 : index
    %c0_137 = arith.constant 0 : index
    %204 = vector.load %arg4[%c0_136, %c0_137] : memref<32x128xf32, #tpu.memory_space<vmem>>, vector<32x128xf32>
    %cst_138 = arith.constant dense<0.000000e+00> : vector<16x128xf32>
    %205 = tpu.matmul %203, %204, %cst_138 {dimension_numbers = #tpu.dot_dimension_numbers<[1], [0], [0], [1], [0, 0, 1, 1], [], []>} : vector<16x32xf32>, vector<32x128xf32>, vector<16x128xf32> -> vector<16x128xf32>
    %c0_139 = arith.constant 0 : index
    %c0_140 = arith.constant 0 : index
    %206 = vector.load %arg6[%c0_139, %c0_140] : memref<1x128xf32, #tpu.memory_space<vmem>>, vector<1x128xf32>
    %207 = vector.broadcast %206 : vector<1x128xf32> to vector<16x128xf32>
    %208 = arith.addf %205, %207 : vector<16x128xf32>
    %c0_141 = arith.constant 0 : index
    %c0_142 = arith.constant 0 : index
    %209 = vector.load %arg11[%c0_141, %c0_142] : memref<16x128xf32, #tpu.memory_space<vmem>>, vector<16x128xf32>
    tpu.vector_store %arg11[%c0_141, %c0_142], %208 {strides = array<i32>} : memref<16x128xf32, #tpu.memory_space<vmem>>, vector<16x128xf32>,
    %cst_143 = arith.constant 0.000000e+00 : f32
    %210 = vector.broadcast %cst_143 : f32 to vector<2x32xf32>
    %c0_144 = arith.constant 0 : index
    %c0_145 = arith.constant 0 : index
    %211 = vector.load %arg12[%c0_144, %c0_145] : memref<2x32xf32, #tpu.memory_space<vmem>>, vector<2x32xf32>
    tpu.vector_store %arg12[%c0_144, %c0_145], %210 {strides = array<i32>} : memref<2x32xf32, #tpu.memory_space<vmem>>, vector<2x32xf32>,
    %cst_146 = arith.constant 0.000000e+00 : f32
    %212 = vector.broadcast %cst_146 : f32 to vector<2x32xf32>
    %c0_147 = arith.constant 0 : index
    %c0_148 = arith.constant 0 : index
    %213 = vector.load %arg13[%c0_147, %c0_148] : memref<2x32xf32, #tpu.memory_space<vmem>>, vector<2x32xf32>
    tpu.vector_store %arg13[%c0_147, %c0_148], %212 {strides = array<i32>} : memref<2x32xf32, #tpu.memory_space<vmem>>, vector<2x32xf32>,
    %c0_149 = arith.constant 0 : index
    %c0_150 = arith.constant 0 : index
    %214 = vector.load %arg11[%c0_149, %c0_150] : memref<16x128xf32, #tpu.memory_space<vmem>>, vector<2x128xf32>
    %c0_151 = arith.constant 0 : index
    %c0_152 = arith.constant 0 : index
    %215 = vector.load %arg12[%c0_151, %c0_152] : memref<2x32xf32, #tpu.memory_space<vmem>>, vector<2x32xf32>
    %c0_153 = arith.constant 0 : index
    %c0_154 = arith.constant 0 : index
    %216 = vector.load %arg5[%c0_153, %c0_154] : memref<32x128xf32, #tpu.memory_space<vmem>>, vector<32x128xf32>
    %cst_155 = arith.constant dense<0.000000e+00> : vector<2x128xf32>
    %217 = tpu.matmul %215, %216, %cst_155 {dimension_numbers = #tpu.dot_dimension_numbers<[1], [0], [0], [1], [0, 0, 1, 1], [], []>} : vector<2x32xf32>, vector<32x128xf32>, vector<2x128xf32> -> vector<2x128xf32>
    %218 = arith.addf %214, %217 : vector<2x128xf32>
    %219 = arith.negf %218 : vector<2x128xf32>
    %220 = math.exp %219 : vector<2x128xf32>
    %cst_156 = arith.constant 1.000000e+00 : f32
    %221 = vector.broadcast %cst_156 : f32 to vector<2x128xf32>
    %222 = arith.addf %221, %220 : vector<2x128xf32>
    %223 = arith.divf %221, %222 : vector<2x128xf32>
    %224 = math.tanh %218 : vector<2x128xf32>
    %225 = vector.extract_strided_slice %223 {offsets = [0, 0], sizes = [2, 32], strides = [1, 1]} : vector<2x128xf32> to vector<2x32xf32>
    %226 = vector.extract_strided_slice %223 {offsets = [0, 32], sizes = [2, 32], strides = [1, 1]} : vector<2x128xf32> to vector<2x32xf32>
    %227 = vector.extract_strided_slice %224 {offsets = [0, 64], sizes = [2, 32], strides = [1, 1]} : vector<2x128xf32> to vector<2x32xf32>
    %228 = vector.extract_strided_slice %223 {offsets = [0, 96], sizes = [2, 32], strides = [1, 1]} : vector<2x128xf32> to vector<2x32xf32>
    %c0_157 = arith.constant 0 : index
    %c0_158 = arith.constant 0 : index
    %229 = vector.load %arg13[%c0_157, %c0_158] : memref<2x32xf32, #tpu.memory_space<vmem>>, vector<2x32xf32>
    %230 = arith.mulf %226, %229 : vector<2x32xf32>
    %231 = arith.mulf %225, %227 : vector<2x32xf32>
    %232 = arith.addf %230, %231 : vector<2x32xf32>
    %233 = math.tanh %232 : vector<2x32xf32>
    %234 = arith.mulf %228, %233 : vector<2x32xf32>
    %c0_159 = arith.constant 0 : index
    %c0_160 = arith.constant 0 : index
    %235 = vector.load %arg13[%c0_159, %c0_160] : memref<2x32xf32, #tpu.memory_space<vmem>>, vector<2x32xf32>
    tpu.vector_store %arg13[%c0_159, %c0_160], %232 {strides = array<i32>} : memref<2x32xf32, #tpu.memory_space<vmem>>, vector<2x32xf32>,
    %c0_161 = arith.constant 0 : index
    %c0_162 = arith.constant 0 : index
    %236 = vector.load %arg12[%c0_161, %c0_162] : memref<2x32xf32, #tpu.memory_space<vmem>>, vector<2x32xf32>
    tpu.vector_store %arg12[%c0_161, %c0_162], %234 {strides = array<i32>} : memref<2x32xf32, #tpu.memory_space<vmem>>, vector<2x32xf32>,
    %c2_163 = arith.constant 2 : index
    %c0_164 = arith.constant 0 : index
    %237 = vector.load %arg11[%c2_163, %c0_164] : memref<16x128xf32, #tpu.memory_space<vmem>>, vector<2x128xf32>
    %c0_165 = arith.constant 0 : index
    %c0_166 = arith.constant 0 : index
    %238 = vector.load %arg12[%c0_165, %c0_166] : memref<2x32xf32, #tpu.memory_space<vmem>>, vector<2x32xf32>
    %c0_167 = arith.constant 0 : index
    %c0_168 = arith.constant 0 : index
    %239 = vector.load %arg5[%c0_167, %c0_168] : memref<32x128xf32, #tpu.memory_space<vmem>>, vector<32x128xf32>
    %cst_169 = arith.constant dense<0.000000e+00> : vector<2x128xf32>
    %240 = tpu.matmul %238, %239, %cst_169 {dimension_numbers = #tpu.dot_dimension_numbers<[1], [0], [0], [1], [0, 0, 1, 1], [], []>} : vector<2x32xf32>, vector<32x128xf32>, vector<2x128xf32> -> vector<2x128xf32>
    %241 = arith.addf %237, %240 : vector<2x128xf32>
    %242 = arith.negf %241 : vector<2x128xf32>
    %243 = math.exp %242 : vector<2x128xf32>
    %cst_170 = arith.constant 1.000000e+00 : f32
    %244 = vector.broadcast %cst_170 : f32 to vector<2x128xf32>
    %245 = arith.addf %244, %243 : vector<2x128xf32>
    %246 = arith.divf %244, %245 : vector<2x128xf32>
    %247 = math.tanh %241 : vector<2x128xf32>
    %248 = vector.extract_strided_slice %246 {offsets = [0, 0], sizes = [2, 32], strides = [1, 1]} : vector<2x128xf32> to vector<2x32xf32>
    %249 = vector.extract_strided_slice %246 {offsets = [0, 32], sizes = [2, 32], strides = [1, 1]} : vector<2x128xf32> to vector<2x32xf32>
    %250 = vector.extract_strided_slice %247 {offsets = [0, 64], sizes = [2, 32], strides = [1, 1]} : vector<2x128xf32> to vector<2x32xf32>
    %251 = vector.extract_strided_slice %246 {offsets = [0, 96], sizes = [2, 32], strides = [1, 1]} : vector<2x128xf32> to vector<2x32xf32>
    %c0_171 = arith.constant 0 : index
    %c0_172 = arith.constant 0 : index
    %252 = vector.load %arg13[%c0_171, %c0_172] : memref<2x32xf32, #tpu.memory_space<vmem>>, vector<2x32xf32>
    %253 = arith.mulf %249, %252 : vector<2x32xf32>
    %254 = arith.mulf %248, %250 : vector<2x32xf32>
    %255 = arith.addf %253, %254 : vector<2x32xf32>
    %256 = math.tanh %255 : vector<2x32xf32>
    %257 = arith.mulf %251, %256 : vector<2x32xf32>
    %c0_173 = arith.constant 0 : index
    %c0_174 = arith.constant 0 : index
    %258 = vector.load %arg13[%c0_173, %c0_174] : memref<2x32xf32, #tpu.memory_space<vmem>>, vector<2x32xf32>
    tpu.vector_store %arg13[%c0_173, %c0_174], %255 {strides = array<i32>} : memref<2x32xf32, #tpu.memory_space<vmem>>, vector<2x32xf32>,
    %c0_175 = arith.constant 0 : index
    %c0_176 = arith.constant 0 : index
    %259 = vector.load %arg12[%c0_175, %c0_176] : memref<2x32xf32, #tpu.memory_space<vmem>>, vector<2x32xf32>
    tpu.vector_store %arg12[%c0_175, %c0_176], %257 {strides = array<i32>} : memref<2x32xf32, #tpu.memory_space<vmem>>, vector<2x32xf32>,
    %c4_177 = arith.constant 4 : index
    %c0_178 = arith.constant 0 : index
    %260 = vector.load %arg11[%c4_177, %c0_178] : memref<16x128xf32, #tpu.memory_space<vmem>>, vector<2x128xf32>
    %c0_179 = arith.constant 0 : index
    %c0_180 = arith.constant 0 : index
    %261 = vector.load %arg12[%c0_179, %c0_180] : memref<2x32xf32, #tpu.memory_space<vmem>>, vector<2x32xf32>
    %c0_181 = arith.constant 0 : index
    %c0_182 = arith.constant 0 : index
    %262 = vector.load %arg5[%c0_181, %c0_182] : memref<32x128xf32, #tpu.memory_space<vmem>>, vector<32x128xf32>
    %cst_183 = arith.constant dense<0.000000e+00> : vector<2x128xf32>
    %263 = tpu.matmul %261, %262, %cst_183 {dimension_numbers = #tpu.dot_dimension_numbers<[1], [0], [0], [1], [0, 0, 1, 1], [], []>} : vector<2x32xf32>, vector<32x128xf32>, vector<2x128xf32> -> vector<2x128xf32>
    %264 = arith.addf %260, %263 : vector<2x128xf32>
    %265 = arith.negf %264 : vector<2x128xf32>
    %266 = math.exp %265 : vector<2x128xf32>
    %cst_184 = arith.constant 1.000000e+00 : f32
    %267 = vector.broadcast %cst_184 : f32 to vector<2x128xf32>
    %268 = arith.addf %267, %266 : vector<2x128xf32>
    %269 = arith.divf %267, %268 : vector<2x128xf32>
    %270 = math.tanh %264 : vector<2x128xf32>
    %271 = vector.extract_strided_slice %269 {offsets = [0, 0], sizes = [2, 32], strides = [1, 1]} : vector<2x128xf32> to vector<2x32xf32>
    %272 = vector.extract_strided_slice %269 {offsets = [0, 32], sizes = [2, 32], strides = [1, 1]} : vector<2x128xf32> to vector<2x32xf32>
    %273 = vector.extract_strided_slice %270 {offsets = [0, 64], sizes = [2, 32], strides = [1, 1]} : vector<2x128xf32> to vector<2x32xf32>
    %274 = vector.extract_strided_slice %269 {offsets = [0, 96], sizes = [2, 32], strides = [1, 1]} : vector<2x128xf32> to vector<2x32xf32>
    %c0_185 = arith.constant 0 : index
    %c0_186 = arith.constant 0 : index
    %275 = vector.load %arg13[%c0_185, %c0_186] : memref<2x32xf32, #tpu.memory_space<vmem>>, vector<2x32xf32>
    %276 = arith.mulf %272, %275 : vector<2x32xf32>
    %277 = arith.mulf %271, %273 : vector<2x32xf32>
    %278 = arith.addf %276, %277 : vector<2x32xf32>
    %279 = math.tanh %278 : vector<2x32xf32>
    %280 = arith.mulf %274, %279 : vector<2x32xf32>
    %c0_187 = arith.constant 0 : index
    %c0_188 = arith.constant 0 : index
    %281 = vector.load %arg13[%c0_187, %c0_188] : memref<2x32xf32, #tpu.memory_space<vmem>>, vector<2x32xf32>
    tpu.vector_store %arg13[%c0_187, %c0_188], %278 {strides = array<i32>} : memref<2x32xf32, #tpu.memory_space<vmem>>, vector<2x32xf32>,
    %c0_189 = arith.constant 0 : index
    %c0_190 = arith.constant 0 : index
    %282 = vector.load %arg12[%c0_189, %c0_190] : memref<2x32xf32, #tpu.memory_space<vmem>>, vector<2x32xf32>
    tpu.vector_store %arg12[%c0_189, %c0_190], %280 {strides = array<i32>} : memref<2x32xf32, #tpu.memory_space<vmem>>, vector<2x32xf32>,
    %c6_191 = arith.constant 6 : index
    %c0_192 = arith.constant 0 : index
    %283 = vector.load %arg11[%c6_191, %c0_192] : memref<16x128xf32, #tpu.memory_space<vmem>>, vector<2x128xf32>
    %c0_193 = arith.constant 0 : index
    %c0_194 = arith.constant 0 : index
    %284 = vector.load %arg12[%c0_193, %c0_194] : memref<2x32xf32, #tpu.memory_space<vmem>>, vector<2x32xf32>
    %c0_195 = arith.constant 0 : index
    %c0_196 = arith.constant 0 : index
    %285 = vector.load %arg5[%c0_195, %c0_196] : memref<32x128xf32, #tpu.memory_space<vmem>>, vector<32x128xf32>
    %cst_197 = arith.constant dense<0.000000e+00> : vector<2x128xf32>
    %286 = tpu.matmul %284, %285, %cst_197 {dimension_numbers = #tpu.dot_dimension_numbers<[1], [0], [0], [1], [0, 0, 1, 1], [], []>} : vector<2x32xf32>, vector<32x128xf32>, vector<2x128xf32> -> vector<2x128xf32>
    %287 = arith.addf %283, %286 : vector<2x128xf32>
    %288 = arith.negf %287 : vector<2x128xf32>
    %289 = math.exp %288 : vector<2x128xf32>
    %cst_198 = arith.constant 1.000000e+00 : f32
    %290 = vector.broadcast %cst_198 : f32 to vector<2x128xf32>
    %291 = arith.addf %290, %289 : vector<2x128xf32>
    %292 = arith.divf %290, %291 : vector<2x128xf32>
    %293 = math.tanh %287 : vector<2x128xf32>
    %294 = vector.extract_strided_slice %292 {offsets = [0, 0], sizes = [2, 32], strides = [1, 1]} : vector<2x128xf32> to vector<2x32xf32>
    %295 = vector.extract_strided_slice %292 {offsets = [0, 32], sizes = [2, 32], strides = [1, 1]} : vector<2x128xf32> to vector<2x32xf32>
    %296 = vector.extract_strided_slice %293 {offsets = [0, 64], sizes = [2, 32], strides = [1, 1]} : vector<2x128xf32> to vector<2x32xf32>
    %297 = vector.extract_strided_slice %292 {offsets = [0, 96], sizes = [2, 32], strides = [1, 1]} : vector<2x128xf32> to vector<2x32xf32>
    %c0_199 = arith.constant 0 : index
    %c0_200 = arith.constant 0 : index
    %298 = vector.load %arg13[%c0_199, %c0_200] : memref<2x32xf32, #tpu.memory_space<vmem>>, vector<2x32xf32>
    %299 = arith.mulf %295, %298 : vector<2x32xf32>
    %300 = arith.mulf %294, %296 : vector<2x32xf32>
    %301 = arith.addf %299, %300 : vector<2x32xf32>
    %302 = math.tanh %301 : vector<2x32xf32>
    %303 = arith.mulf %297, %302 : vector<2x32xf32>
    %c0_201 = arith.constant 0 : index
    %c0_202 = arith.constant 0 : index
    %304 = vector.load %arg13[%c0_201, %c0_202] : memref<2x32xf32, #tpu.memory_space<vmem>>, vector<2x32xf32>
    tpu.vector_store %arg13[%c0_201, %c0_202], %301 {strides = array<i32>} : memref<2x32xf32, #tpu.memory_space<vmem>>, vector<2x32xf32>,
    %c0_203 = arith.constant 0 : index
    %c0_204 = arith.constant 0 : index
    %305 = vector.load %arg12[%c0_203, %c0_204] : memref<2x32xf32, #tpu.memory_space<vmem>>, vector<2x32xf32>
    tpu.vector_store %arg12[%c0_203, %c0_204], %303 {strides = array<i32>} : memref<2x32xf32, #tpu.memory_space<vmem>>, vector<2x32xf32>,
    %c8_205 = arith.constant 8 : index
    %c0_206 = arith.constant 0 : index
    %306 = vector.load %arg11[%c8_205, %c0_206] : memref<16x128xf32, #tpu.memory_space<vmem>>, vector<2x128xf32>
    %c0_207 = arith.constant 0 : index
    %c0_208 = arith.constant 0 : index
    %307 = vector.load %arg12[%c0_207, %c0_208] : memref<2x32xf32, #tpu.memory_space<vmem>>, vector<2x32xf32>
    %c0_209 = arith.constant 0 : index
    %c0_210 = arith.constant 0 : index
    %308 = vector.load %arg5[%c0_209, %c0_210] : memref<32x128xf32, #tpu.memory_space<vmem>>, vector<32x128xf32>
    %cst_211 = arith.constant dense<0.000000e+00> : vector<2x128xf32>
    %309 = tpu.matmul %307, %308, %cst_211 {dimension_numbers = #tpu.dot_dimension_numbers<[1], [0], [0], [1], [0, 0, 1, 1], [], []>} : vector<2x32xf32>, vector<32x128xf32>, vector<2x128xf32> -> vector<2x128xf32>
    %310 = arith.addf %306, %309 : vector<2x128xf32>
    %311 = arith.negf %310 : vector<2x128xf32>
    %312 = math.exp %311 : vector<2x128xf32>
    %cst_212 = arith.constant 1.000000e+00 : f32
    %313 = vector.broadcast %cst_212 : f32 to vector<2x128xf32>
    %314 = arith.addf %313, %312 : vector<2x128xf32>
    %315 = arith.divf %313, %314 : vector<2x128xf32>
    %316 = math.tanh %310 : vector<2x128xf32>
    %317 = vector.extract_strided_slice %315 {offsets = [0, 0], sizes = [2, 32], strides = [1, 1]} : vector<2x128xf32> to vector<2x32xf32>
    %318 = vector.extract_strided_slice %315 {offsets = [0, 32], sizes = [2, 32], strides = [1, 1]} : vector<2x128xf32> to vector<2x32xf32>
    %319 = vector.extract_strided_slice %316 {offsets = [0, 64], sizes = [2, 32], strides = [1, 1]} : vector<2x128xf32> to vector<2x32xf32>
    %320 = vector.extract_strided_slice %315 {offsets = [0, 96], sizes = [2, 32], strides = [1, 1]} : vector<2x128xf32> to vector<2x32xf32>
    %c0_213 = arith.constant 0 : index
    %c0_214 = arith.constant 0 : index
    %321 = vector.load %arg13[%c0_213, %c0_214] : memref<2x32xf32, #tpu.memory_space<vmem>>, vector<2x32xf32>
    %322 = arith.mulf %318, %321 : vector<2x32xf32>
    %323 = arith.mulf %317, %319 : vector<2x32xf32>
    %324 = arith.addf %322, %323 : vector<2x32xf32>
    %325 = math.tanh %324 : vector<2x32xf32>
    %326 = arith.mulf %320, %325 : vector<2x32xf32>
    %c0_215 = arith.constant 0 : index
    %c0_216 = arith.constant 0 : index
    %327 = vector.load %arg13[%c0_215, %c0_216] : memref<2x32xf32, #tpu.memory_space<vmem>>, vector<2x32xf32>
    tpu.vector_store %arg13[%c0_215, %c0_216], %324 {strides = array<i32>} : memref<2x32xf32, #tpu.memory_space<vmem>>, vector<2x32xf32>,
    %c0_217 = arith.constant 0 : index
    %c0_218 = arith.constant 0 : index
    %328 = vector.load %arg12[%c0_217, %c0_218] : memref<2x32xf32, #tpu.memory_space<vmem>>, vector<2x32xf32>
    tpu.vector_store %arg12[%c0_217, %c0_218], %326 {strides = array<i32>} : memref<2x32xf32, #tpu.memory_space<vmem>>, vector<2x32xf32>,
    %c10_219 = arith.constant 10 : index
    %c0_220 = arith.constant 0 : index
    %329 = vector.load %arg11[%c10_219, %c0_220] : memref<16x128xf32, #tpu.memory_space<vmem>>, vector<2x128xf32>
    %c0_221 = arith.constant 0 : index
    %c0_222 = arith.constant 0 : index
    %330 = vector.load %arg12[%c0_221, %c0_222] : memref<2x32xf32, #tpu.memory_space<vmem>>, vector<2x32xf32>
    %c0_223 = arith.constant 0 : index
    %c0_224 = arith.constant 0 : index
    %331 = vector.load %arg5[%c0_223, %c0_224] : memref<32x128xf32, #tpu.memory_space<vmem>>, vector<32x128xf32>
    %cst_225 = arith.constant dense<0.000000e+00> : vector<2x128xf32>
    %332 = tpu.matmul %330, %331, %cst_225 {dimension_numbers = #tpu.dot_dimension_numbers<[1], [0], [0], [1], [0, 0, 1, 1], [], []>} : vector<2x32xf32>, vector<32x128xf32>, vector<2x128xf32> -> vector<2x128xf32>
    %333 = arith.addf %329, %332 : vector<2x128xf32>
    %334 = arith.negf %333 : vector<2x128xf32>
    %335 = math.exp %334 : vector<2x128xf32>
    %cst_226 = arith.constant 1.000000e+00 : f32
    %336 = vector.broadcast %cst_226 : f32 to vector<2x128xf32>
    %337 = arith.addf %336, %335 : vector<2x128xf32>
    %338 = arith.divf %336, %337 : vector<2x128xf32>
    %339 = math.tanh %333 : vector<2x128xf32>
    %340 = vector.extract_strided_slice %338 {offsets = [0, 0], sizes = [2, 32], strides = [1, 1]} : vector<2x128xf32> to vector<2x32xf32>
    %341 = vector.extract_strided_slice %338 {offsets = [0, 32], sizes = [2, 32], strides = [1, 1]} : vector<2x128xf32> to vector<2x32xf32>
    %342 = vector.extract_strided_slice %339 {offsets = [0, 64], sizes = [2, 32], strides = [1, 1]} : vector<2x128xf32> to vector<2x32xf32>
    %343 = vector.extract_strided_slice %338 {offsets = [0, 96], sizes = [2, 32], strides = [1, 1]} : vector<2x128xf32> to vector<2x32xf32>
    %c0_227 = arith.constant 0 : index
    %c0_228 = arith.constant 0 : index
    %344 = vector.load %arg13[%c0_227, %c0_228] : memref<2x32xf32, #tpu.memory_space<vmem>>, vector<2x32xf32>
    %345 = arith.mulf %341, %344 : vector<2x32xf32>
    %346 = arith.mulf %340, %342 : vector<2x32xf32>
    %347 = arith.addf %345, %346 : vector<2x32xf32>
    %348 = math.tanh %347 : vector<2x32xf32>
    %349 = arith.mulf %343, %348 : vector<2x32xf32>
    %c0_229 = arith.constant 0 : index
    %c0_230 = arith.constant 0 : index
    %350 = vector.load %arg13[%c0_229, %c0_230] : memref<2x32xf32, #tpu.memory_space<vmem>>, vector<2x32xf32>
    tpu.vector_store %arg13[%c0_229, %c0_230], %347 {strides = array<i32>} : memref<2x32xf32, #tpu.memory_space<vmem>>, vector<2x32xf32>,
    %c0_231 = arith.constant 0 : index
    %c0_232 = arith.constant 0 : index
    %351 = vector.load %arg12[%c0_231, %c0_232] : memref<2x32xf32, #tpu.memory_space<vmem>>, vector<2x32xf32>
    tpu.vector_store %arg12[%c0_231, %c0_232], %349 {strides = array<i32>} : memref<2x32xf32, #tpu.memory_space<vmem>>, vector<2x32xf32>,
    %c12_233 = arith.constant 12 : index
    %c0_234 = arith.constant 0 : index
    %352 = vector.load %arg11[%c12_233, %c0_234] : memref<16x128xf32, #tpu.memory_space<vmem>>, vector<2x128xf32>
    %c0_235 = arith.constant 0 : index
    %c0_236 = arith.constant 0 : index
    %353 = vector.load %arg12[%c0_235, %c0_236] : memref<2x32xf32, #tpu.memory_space<vmem>>, vector<2x32xf32>
    %c0_237 = arith.constant 0 : index
    %c0_238 = arith.constant 0 : index
    %354 = vector.load %arg5[%c0_237, %c0_238] : memref<32x128xf32, #tpu.memory_space<vmem>>, vector<32x128xf32>
    %cst_239 = arith.constant dense<0.000000e+00> : vector<2x128xf32>
    %355 = tpu.matmul %353, %354, %cst_239 {dimension_numbers = #tpu.dot_dimension_numbers<[1], [0], [0], [1], [0, 0, 1, 1], [], []>} : vector<2x32xf32>, vector<32x128xf32>, vector<2x128xf32> -> vector<2x128xf32>
    %356 = arith.addf %352, %355 : vector<2x128xf32>
    %357 = arith.negf %356 : vector<2x128xf32>
    %358 = math.exp %357 : vector<2x128xf32>
    %cst_240 = arith.constant 1.000000e+00 : f32
    %359 = vector.broadcast %cst_240 : f32 to vector<2x128xf32>
    %360 = arith.addf %359, %358 : vector<2x128xf32>
    %361 = arith.divf %359, %360 : vector<2x128xf32>
    %362 = math.tanh %356 : vector<2x128xf32>
    %363 = vector.extract_strided_slice %361 {offsets = [0, 0], sizes = [2, 32], strides = [1, 1]} : vector<2x128xf32> to vector<2x32xf32>
    %364 = vector.extract_strided_slice %361 {offsets = [0, 32], sizes = [2, 32], strides = [1, 1]} : vector<2x128xf32> to vector<2x32xf32>
    %365 = vector.extract_strided_slice %362 {offsets = [0, 64], sizes = [2, 32], strides = [1, 1]} : vector<2x128xf32> to vector<2x32xf32>
    %366 = vector.extract_strided_slice %361 {offsets = [0, 96], sizes = [2, 32], strides = [1, 1]} : vector<2x128xf32> to vector<2x32xf32>
    %c0_241 = arith.constant 0 : index
    %c0_242 = arith.constant 0 : index
    %367 = vector.load %arg13[%c0_241, %c0_242] : memref<2x32xf32, #tpu.memory_space<vmem>>, vector<2x32xf32>
    %368 = arith.mulf %364, %367 : vector<2x32xf32>
    %369 = arith.mulf %363, %365 : vector<2x32xf32>
    %370 = arith.addf %368, %369 : vector<2x32xf32>
    %371 = math.tanh %370 : vector<2x32xf32>
    %372 = arith.mulf %366, %371 : vector<2x32xf32>
    %c0_243 = arith.constant 0 : index
    %c0_244 = arith.constant 0 : index
    %373 = vector.load %arg13[%c0_243, %c0_244] : memref<2x32xf32, #tpu.memory_space<vmem>>, vector<2x32xf32>
    tpu.vector_store %arg13[%c0_243, %c0_244], %370 {strides = array<i32>} : memref<2x32xf32, #tpu.memory_space<vmem>>, vector<2x32xf32>,
    %c0_245 = arith.constant 0 : index
    %c0_246 = arith.constant 0 : index
    %374 = vector.load %arg12[%c0_245, %c0_246] : memref<2x32xf32, #tpu.memory_space<vmem>>, vector<2x32xf32>
    tpu.vector_store %arg12[%c0_245, %c0_246], %372 {strides = array<i32>} : memref<2x32xf32, #tpu.memory_space<vmem>>, vector<2x32xf32>,
    %c14_247 = arith.constant 14 : index
    %c0_248 = arith.constant 0 : index
    %375 = vector.load %arg11[%c14_247, %c0_248] : memref<16x128xf32, #tpu.memory_space<vmem>>, vector<2x128xf32>
    %c0_249 = arith.constant 0 : index
    %c0_250 = arith.constant 0 : index
    %376 = vector.load %arg12[%c0_249, %c0_250] : memref<2x32xf32, #tpu.memory_space<vmem>>, vector<2x32xf32>
    %c0_251 = arith.constant 0 : index
    %c0_252 = arith.constant 0 : index
    %377 = vector.load %arg5[%c0_251, %c0_252] : memref<32x128xf32, #tpu.memory_space<vmem>>, vector<32x128xf32>
    %cst_253 = arith.constant dense<0.000000e+00> : vector<2x128xf32>
    %378 = tpu.matmul %376, %377, %cst_253 {dimension_numbers = #tpu.dot_dimension_numbers<[1], [0], [0], [1], [0, 0, 1, 1], [], []>} : vector<2x32xf32>, vector<32x128xf32>, vector<2x128xf32> -> vector<2x128xf32>
    %379 = arith.addf %375, %378 : vector<2x128xf32>
    %380 = arith.negf %379 : vector<2x128xf32>
    %381 = math.exp %380 : vector<2x128xf32>
    %cst_254 = arith.constant 1.000000e+00 : f32
    %382 = vector.broadcast %cst_254 : f32 to vector<2x128xf32>
    %383 = arith.addf %382, %381 : vector<2x128xf32>
    %384 = arith.divf %382, %383 : vector<2x128xf32>
    %385 = math.tanh %379 : vector<2x128xf32>
    %386 = vector.extract_strided_slice %384 {offsets = [0, 0], sizes = [2, 32], strides = [1, 1]} : vector<2x128xf32> to vector<2x32xf32>
    %387 = vector.extract_strided_slice %384 {offsets = [0, 32], sizes = [2, 32], strides = [1, 1]} : vector<2x128xf32> to vector<2x32xf32>
    %388 = vector.extract_strided_slice %385 {offsets = [0, 64], sizes = [2, 32], strides = [1, 1]} : vector<2x128xf32> to vector<2x32xf32>
    %389 = vector.extract_strided_slice %384 {offsets = [0, 96], sizes = [2, 32], strides = [1, 1]} : vector<2x128xf32> to vector<2x32xf32>
    %c0_255 = arith.constant 0 : index
    %c0_256 = arith.constant 0 : index
    %390 = vector.load %arg13[%c0_255, %c0_256] : memref<2x32xf32, #tpu.memory_space<vmem>>, vector<2x32xf32>
    %391 = arith.mulf %387, %390 : vector<2x32xf32>
    %392 = arith.mulf %386, %388 : vector<2x32xf32>
    %393 = arith.addf %391, %392 : vector<2x32xf32>
    %394 = math.tanh %393 : vector<2x32xf32>
    %395 = arith.mulf %389, %394 : vector<2x32xf32>
    %c0_257 = arith.constant 0 : index
    %c0_258 = arith.constant 0 : index
    %396 = vector.load %arg13[%c0_257, %c0_258] : memref<2x32xf32, #tpu.memory_space<vmem>>, vector<2x32xf32>
    tpu.vector_store %arg13[%c0_257, %c0_258], %393 {strides = array<i32>} : memref<2x32xf32, #tpu.memory_space<vmem>>, vector<2x32xf32>,
    %c0_259 = arith.constant 0 : index
    %c0_260 = arith.constant 0 : index
    %397 = vector.load %arg12[%c0_259, %c0_260] : memref<2x32xf32, #tpu.memory_space<vmem>>, vector<2x32xf32>
    tpu.vector_store %arg12[%c0_259, %c0_260], %395 {strides = array<i32>} : memref<2x32xf32, #tpu.memory_space<vmem>>, vector<2x32xf32>,
    %c0_261 = arith.constant 0 : index
    %c0_262 = arith.constant 0 : index
    %398 = vector.load %arg12[%c0_261, %c0_262] : memref<2x32xf32, #tpu.memory_space<vmem>>, vector<2x32xf32>
    %c0_263 = arith.constant 0 : index
    %c0_264 = arith.constant 0 : index
    %399 = vector.load %arg7[%c0_263, %c0_264] : memref<32x4xf32, #tpu.memory_space<vmem>>, vector<32x4xf32>
    %cst_265 = arith.constant dense<0.000000e+00> : vector<2x4xf32>
    %400 = tpu.matmul %398, %399, %cst_265 {dimension_numbers = #tpu.dot_dimension_numbers<[1], [0], [0], [1], [0, 0, 1, 1], [], []>} : vector<2x32xf32>, vector<32x4xf32>, vector<2x4xf32> -> vector<2x4xf32>
    %c0_266 = arith.constant 0 : index
    %c0_267 = arith.constant 0 : index
    %401 = vector.load %arg8[%c0_266, %c0_267] : memref<1x4xf32, #tpu.memory_space<vmem>>, vector<1x4xf32>
    %402 = vector.broadcast %401 : vector<1x4xf32> to vector<2x4xf32>
    %403 = arith.addf %400, %402 : vector<2x4xf32>
    %c0_268 = arith.constant 0 : index
    %c0_269 = arith.constant 0 : index
    %404 = vector.load %arg9[%c0_268, %c0_269] : memref<2x4xf32, #tpu.memory_space<vmem>>, vector<2x4xf32>
    tpu.vector_store %arg9[%c0_268, %c0_269], %403 {strides = array<i32>} : memref<2x4xf32, #tpu.memory_space<vmem>>, vector<2x4xf32>,
    return
  }
}

</mosaic_0001>

<llo_original>
// kernel: stacked_lstm_forward.1
$region0: #{stacked_lstm_forward.1}
  #allocation0 [shape = 'u32[]', space=smem, size = 0x4, offset = 0x4, fixed_abs, tag = 'smem constant byte address 0x4 - core index']
  #allocation1 [shape = 'u32[144,128]{1,0:T(1,128)}', space=vmem, size = 0x12000, scoped, tag = 'internal scratch']
  #allocation2 [shape = 'f32[16,32]{1,0:T(8,128)}', space=vmem, size = 0x2000, scoped, tag = 'scratch operand']
  #allocation3 [shape = 'f32[16,128]{1,0:T(8,128)}', space=vmem, size = 0x2000, scoped, tag = 'scratch operand']
  #allocation4 [shape = 'f32[2,32]{1,0:T(2,128)}', space=vmem, size = 0x400, scoped, tag = 'scratch operand']
  #allocation5 [shape = 'f32[2,32]{1,0:T(2,128)}', space=vmem, size = 0x400, scoped, tag = 'scratch operand']
  %s0 = inlined_call_operand.vmem [shape: f32[16,16], index: 0, kind: input, shape index: {}]
  %s1 = inlined_call_operand.hbm [shape: f32[16,128], index: 1, kind: input, shape index: {}]
  %s2 = inlined_call_operand.vmem [shape: f32[32,128], index: 2, kind: input, shape index: {}]
  %s3 = inlined_call_operand.vmem [shape: f32[1,128], index: 3, kind: input, shape index: {}]
  %s4 = inlined_call_operand.vmem [shape: f32[32,128], index: 4, kind: input, shape index: {}]
  %s5 = inlined_call_operand.hbm [shape: f32[32,128], index: 5, kind: input, shape index: {}]
  %s6 = inlined_call_operand.vmem [shape: f32[1,128], index: 6, kind: input, shape index: {}]
  %s7 = inlined_call_operand.vmem [shape: f32[32,4], index: 7, kind: input, shape index: {}]
  %s8 = inlined_call_operand.vmem [shape: f32[1,4], index: 8, kind: input, shape index: {}]
  %s9 = inlined_call_operand.hbm [shape: f32[2,4], index: 9, kind: output, shape index: {}]
  %s10 = sld [smem:[#allocation0]]
  $region54: #{stacked_lstm_forward.1} parent=0
    _
  %s12 = ssub.s32 1, %s10
  %s13 = scalar_select 0, %s12, %s10
  $region1: #{stacked_lstm_forward.1} parent=0
    #allocation6 [shape = 'u8[8192]{0}', space=vmem, size = 0x2000, scoped, tag = 'input window, operand 1, single buffered']
    #allocation7 [shape = 's32[1]{0}', space=sflag, size = 0x4, scoped, tag = 'scoped memory for stacked_lstm_forward.1']
    #allocation8 [shape = 's32[1]{0}', space=sflag, size = 0x4, scoped, tag = 'scoped memory for stacked_lstm_forward.1']
    #allocation9 [shape = 'u8[16384]{0}', space=vmem, size = 0x4000, scoped, tag = 'input window, operand 5, single buffered']
    #allocation10 [shape = 's32[1]{0}', space=sflag, size = 0x4, scoped, tag = 'scoped memory for stacked_lstm_forward.1']
    #allocation11 [shape = 'u8[1024]{0}', space=vmem, size = 0x400, scoped, tag = 'output window, operand 0, single buffered']
    %14 = vsyncpa [#allocation7], 0
    %15 = vsyncpa [#allocation10], 0
    %16 = vsyncpa [#allocation8], 0
    // Predicated region
    $region2: #{stacked_lstm_forward.1} parent=1 // pred_check
      _
    $region3: #{stacked_lstm_forward.1} parent=1 // pred_check_branch
      %18 = sbr.rel (0) target = $region5
    $region4: #{stacked_lstm_forward.1} parent=1 // pred_region
      _
    $region5: #{stacked_lstm_forward.1} parent=1 // pred_fallthru
      _
    // Predicated region
    $region6: #{stacked_lstm_forward.1} parent=1 // pred_check
      _
    $region7: #{stacked_lstm_forward.1} parent=1 // pred_check_branch
      %20 = sbr.rel (0) target = $region9
    $region8: #{stacked_lstm_forward.1} parent=1 // pred_region
      %s22 = ssub.s32 256, 256
      %23 = vsyncadd [#allocation7], %s22
      %s24 = sshll.u32 [#allocation6], 4
      %s25 = int_to_ptr.vmem [resolvable:$true] %s24
      %30 = dma.hbm_to_vmem [thread:$0]  %s1, 256, %s25, [#allocation7], 128, 128, 8
    $region9: #{stacked_lstm_forward.1} parent=1 // pred_fallthru
      _
    // Predicated region
    $region10: #{stacked_lstm_forward.1} parent=1 // pred_check
      _
    $region11: #{stacked_lstm_forward.1} parent=1 // pred_check_branch
      %32 = sbr.rel (0) target = $region13
    $region12: #{stacked_lstm_forward.1} parent=1 // pred_region
      _
    $region13: #{stacked_lstm_forward.1} parent=1 // pred_fallthru
      _
    // Predicated region
    $region14: #{stacked_lstm_forward.1} parent=1 // pred_check
      _
    $region15: #{stacked_lstm_forward.1} parent=1 // pred_check_branch
      %34 = sbr.rel (0) target = $region17
    $region16: #{stacked_lstm_forward.1} parent=1 // pred_region
      _
    $region17: #{stacked_lstm_forward.1} parent=1 // pred_fallthru
      _
    // Predicated region
    $region18: #{stacked_lstm_forward.1} parent=1 // pred_check
      _
    $region19: #{stacked_lstm_forward.1} parent=1 // pred_check_branch
      %36 = sbr.rel (0) target = $region21
    $region20: #{stacked_lstm_forward.1} parent=1 // pred_region
      _
    $region21: #{stacked_lstm_forward.1} parent=1 // pred_fallthru
      _
    // Predicated region
    $region22: #{stacked_lstm_forward.1} parent=1 // pred_check
      _
    $region23: #{stacked_lstm_forward.1} parent=1 // pred_check_branch
      %38 = sbr.rel (0) target = $region25
    $region24: #{stacked_lstm_forward.1} parent=1 // pred_region
      %s40 = ssub.s32 512, 512
      %41 = vsyncadd [#allocation10], %s40
      %s42 = sshll.u32 [#allocation9], 4
      %s43 = int_to_ptr.vmem [resolvable:$true] %s42
      %48 = dma.hbm_to_vmem [thread:$0]  %s5, 512, %s43, [#allocation10], 128, 128, 8
    $region25: #{stacked_lstm_forward.1} parent=1 // pred_fallthru
      _
    // Predicated region
    $region26: #{stacked_lstm_forward.1} parent=1 // pred_check
      _
    $region27: #{stacked_lstm_forward.1} parent=1 // pred_check_branch
      %50 = sbr.rel (0) target = $region29
    $region28: #{stacked_lstm_forward.1} parent=1 // pred_region
      _
    $region29: #{stacked_lstm_forward.1} parent=1 // pred_fallthru
      _
    // Predicated region
    $region30: #{stacked_lstm_forward.1} parent=1 // pred_check
      _
    $region31: #{stacked_lstm_forward.1} parent=1 // pred_check_branch
      %52 = sbr.rel (0) target = $region33
    $region32: #{stacked_lstm_forward.1} parent=1 // pred_region
      _
    $region33: #{stacked_lstm_forward.1} parent=1 // pred_fallthru
      _
    // Predicated region
    $region34: #{stacked_lstm_forward.1} parent=1 // pred_check
      _
    $region35: #{stacked_lstm_forward.1} parent=1 // pred_check_branch
      %54 = sbr.rel (0) target = $region37
    $region36: #{stacked_lstm_forward.1} parent=1 // pred_region
      _
    $region37: #{stacked_lstm_forward.1} parent=1 // pred_fallthru
      _
    // Predicated region
    $region38: #{stacked_lstm_forward.1} parent=1 // pred_check
      _
    $region39: #{stacked_lstm_forward.1} parent=1 // pred_check_branch
      %56 = sbr.rel (0) target = $region41
    $region40: #{stacked_lstm_forward.1} parent=1 // pred_region
      %57 = dma.done [#allocation7], 256
    $region41: #{stacked_lstm_forward.1} parent=1 // pred_fallthru
      _
    // Predicated region
    $region42: #{stacked_lstm_forward.1} parent=1 // pred_check
      _
    $region43: #{stacked_lstm_forward.1} parent=1 // pred_check_branch
      %59 = sbr.rel (0) target = $region45
    $region44: #{stacked_lstm_forward.1} parent=1 // pred_region
      %60 = dma.done [#allocation10], 512
    $region45: #{stacked_lstm_forward.1} parent=1 // pred_fallthru
      _
    %v61 = vld [vmem:[%s0] sm:$0xff]
    %v62 = vld [vmem:[%s0 + $0x8] sm:$0xff]
    %v63 = vld [vmem:[#allocation6] sm:$0xff]
    %v64 = vld [vmem:[#allocation6 + $0x8] sm:$0xff]
    %v65 = vld [vmem:[%s3] sm:$0x1]
    %v67 = vlaneseq
    %v68 = vshrl.u32 %v67, 7
    %v69 = vsub.s32 0, %v68
    %v70 = vrot.slane %v65, %v69
    %vm72 = vcmask 130048
    %v74 = vsel %vm72, %v61, 0
    %v77 = vsel %vm72, %v62, 0
    %79 = vmatprep.subr.mxu0 0.0
    %80 = vmatpush1.msra.mxu0 %v63
    %81 = vmatprep.subr.mxu0 0.0
    %82 = vmatpush1.msra.mxu0 %v64
    %83 = vmatprep.subr.mxu0 0.0
    %84 = vmatpush1.msra.mxu0 0.0
    %85 = vmatprep.subr.mxu0 0.0
    %86 = vmatpush1.msra.mxu0 0.0
    %87 = vmatprep.subr.mxu0 0.0
    %88 = vmatpush1.msra.mxu0 0.0
    %89 = vmatprep.subr.mxu0 0.0
    %90 = vmatpush1.msra.mxu0 0.0
    %91 = vmatprep.subr.mxu0 0.0
    %92 = vmatpush1.msra.mxu0 0.0
    %93 = vmatprep.subr.mxu0 0.0
    %94 = vmatpush1.msra.mxu0 0.0
    %95 = vmatprep.subr.mxu0 0.0
    %96 = vmatpush1.msra.mxu0 0.0
    %97 = vmatprep.subr.mxu0 0.0
    %98 = vmatpush1.msra.mxu0 0.0
    %99 = vmatprep.subr.mxu0 0.0
    %100 = vmatpush1.msra.mxu0 0.0
    %101 = vmatprep.subr.mxu0 0.0
    %102 = vmatpush1.msra.mxu0 0.0
    %103 = vmatprep.subr.mxu0 0.0
    %104 = vmatpush1.msra.mxu0 0.0
    %105 = vmatprep.subr.mxu0 0.0
    %106 = vmatpush1.msra.mxu0 0.0
    %107 = vmatprep.subr.mxu0 0.0
    %108 = vmatpush1.msra.mxu0 0.0
    %109 = vmatprep.subr.mxu0 0.0
    %110 = vmatpush1.msra.mxu0 0.0
    %111 = vmatprep.subr.mxu0 0.0
    %112 = vmatpush1.msra.mxu0 0.0
    %113 = vmatprep.subr.mxu0 0.0
    %114 = vmatpush1.msra.mxu0 0.0
    %115 = vmatprep.subr.mxu0 0.0
    %116 = vmatpush1.msra.mxu0 0.0
    %117 = vmatprep.subr.mxu0 0.0
    %118 = vmatpush1.msra.mxu0 0.0
    %119 = vmatprep.subr.mxu0 0.0
    %120 = vmatpush1.msra.mxu0 0.0
    %121 = vmatprep.subr.mxu0 0.0
    %122 = vmatpush1.msra.mxu0 0.0
    %123 = vmatprep.subr.mxu0 0.0
    %124 = vmatpush1.msra.mxu0 0.0
    %125 = vmatprep.subr.mxu0 0.0
    %126 = vmatpush1.msra.mxu0 0.0
    %127 = vmatprep.subr.mxu0 0.0
    %128 = vmatpush1.msra.mxu0 0.0
    %129 = vmatprep.subr.mxu0 0.0
    %130 = vmatpush1.msra.mxu0 0.0
    %131 = vmatprep.subr.mxu0 0.0
    %132 = vmatpush1.msra.mxu0 0.0
    %133 = vmatprep.subr.mxu0 0.0
    %134 = vmatpush1.msra.mxu0 0.0
    %135 = vmatprep.subr.mxu0 0.0
    %136 = vmatpush1.msra.mxu0 0.0
    %137 = vmatprep.subr.mxu0 0.0
    %138 = vmatpush1.msra.mxu0 0.0
    %139 = vmatprep.subr.mxu0 0.0
    %140 = vmatpush1.msra.mxu0 0.0
    %141 = vmatprep.subr.mxu0 0.0
    %142 = vmatpush1.msra.mxu0 0.0
    %143 = vmatprep.mubr.f32.mxu0 0.0
    %144 = vmatmul.mubr.f32.gmra.mrb[0].mxu0 %v74
    %v145 = vpop.f32.mrb[0].mxu0
    %v146 = vadd.f32 %v70, %v145
    %v147 = vpop.f32.mrb[0].mxu0
    %148 = vmatprep.mubr.f32.mxu0 0.0
    %149 = vmatmul.mubr.f32.gmra.mrb[0].mxu0 %v77
    %v150 = vpop.f32.mrb[0].mxu0
    %v151 = vadd.f32 %v70, %v150
    %v152 = vpop.f32.mrb[0].mxu0
    %153 = vdwg.mxu0
    %154 = vst [vmem:[#allocation3] sm:$0xff] %v146
    %155 = vst [vmem:[#allocation3 + $0x8] sm:$0xff] %v151
    %vm156 = vcmask 254976
    %157 = vst.msk [vmem:[#allocation4] sm:$0x3] %vm156, 0.0
    %158 = vst.msk [vmem:[#allocation5] sm:$0x3] %vm156, 0.0
    %v159 = vld [vmem:[#allocation3] sm:$0x3]
    %v160 = vld [vmem:[#allocation4] sm:$0x3]
    %v161 = vld [vmem:[%s2] sm:$0xff]
    %v162 = vld [vmem:[%s2 + $0x8] sm:$0xff]
    %v163 = vld [vmem:[%s2 + $0x10] sm:$0xff]
    %v164 = vld [vmem:[%s2 + $0x18] sm:$0xff]
    %vm165 = vcmask 261120
    %v167 = vsel %vm165, %v160, 0
    %169 = vmatprep.subr.mxu0 0.0
    %170 = vmatpush1.msra.mxu0 %v161
    %171 = vmatprep.subr.mxu0 0.0
    %172 = vmatpush1.msra.mxu0 %v162
    %173 = vmatprep.subr.mxu0 0.0
    %174 = vmatpush1.msra.mxu0 %v163
    %175 = vmatprep.subr.mxu0 0.0
    %176 = vmatpush1.msra.mxu0 %v164
    %177 = vmatprep.subr.mxu0 0.0
    %178 = vmatpush1.msra.mxu0 0.0
    %179 = vmatprep.subr.mxu0 0.0
    %180 = vmatpush1.msra.mxu0 0.0
    %181 = vmatprep.subr.mxu0 0.0
    %182 = vmatpush1.msra.mxu0 0.0
    %183 = vmatprep.subr.mxu0 0.0
    %184 = vmatpush1.msra.mxu0 0.0
    %185 = vmatprep.subr.mxu0 0.0
    %186 = vmatpush1.msra.mxu0 0.0
    %187 = vmatprep.subr.mxu0 0.0
    %188 = vmatpush1.msra.mxu0 0.0
    %189 = vmatprep.subr.mxu0 0.0
    %190 = vmatpush1.msra.mxu0 0.0
    %191 = vmatprep.subr.mxu0 0.0
    %192 = vmatpush1.msra.mxu0 0.0
    %193 = vmatprep.subr.mxu0 0.0
    %194 = vmatpush1.msra.mxu0 0.0
    %195 = vmatprep.subr.mxu0 0.0
    %196 = vmatpush1.msra.mxu0 0.0
    %197 = vmatprep.subr.mxu0 0.0
    %198 = vmatpush1.msra.mxu0 0.0
    %199 = vmatprep.subr.mxu0 0.0
    %200 = vmatpush1.msra.mxu0 0.0
    %201 = vmatprep.subr.mxu0 0.0
    %202 = vmatpush1.msra.mxu0 0.0
    %203 = vmatprep.subr.mxu0 0.0
    %204 = vmatpush1.msra.mxu0 0.0
    %205 = vmatprep.subr.mxu0 0.0
    %206 = vmatpush1.msra.mxu0 0.0
    %207 = vmatprep.subr.mxu0 0.0
    %208 = vmatpush1.msra.mxu0 0.0
    %209 = vmatprep.subr.mxu0 0.0
    %210 = vmatpush1.msra.mxu0 0.0
    %211 = vmatprep.subr.mxu0 0.0
    %212 = vmatpush1.msra.mxu0 0.0
    %213 = vmatprep.subr.mxu0 0.0
    %214 = vmatpush1.msra.mxu0 0.0
    %215 = vmatprep.subr.mxu0 0.0
    %216 = vmatpush1.msra.mxu0 0.0
    %217 = vmatprep.subr.mxu0 0.0
    %218 = vmatpush1.msra.mxu0 0.0
    %219 = vmatprep.subr.mxu0 0.0
    %220 = vmatpush1.msra.mxu0 0.0
    %221 = vmatprep.subr.mxu0 0.0
    %222 = vmatpush1.msra.mxu0 0.0
    %223 = vmatprep.subr.mxu0 0.0
    %224 = vmatpush1.msra.mxu0 0.0
    %225 = vmatprep.subr.mxu0 0.0
    %226 = vmatpush1.msra.mxu0 0.0
    %227 = vmatprep.subr.mxu0 0.0
    %228 = vmatpush1.msra.mxu0 0.0
    %229 = vmatprep.subr.mxu0 0.0
    %230 = vmatpush1.msra.mxu0 0.0
    %231 = vmatprep.subr.mxu0 0.0
    %232 = vmatpush1.msra.mxu0 0.0
    %233 = vmatprep.mubr.f32.mxu0 0.0
    %234 = vmatmul.mubr.f32.gmra.mrb[0].mxu0 %v167
    %v235 = vpop.f32.mrb[0].mxu0
    %v236 = vadd.f32 0.0, %v235
    %v237 = vpop.f32.mrb[0].mxu0
    %238 = vdwg.mxu0
    %v239 = vadd.f32 %v159, %v236
    %v240 = vxor.u32 %v239, 2147483648
    %v241 = vmul.f32 %v240, 1.442695
    %v242 = vpow.pop %v241
    %v243 = vadd.f32 %v242, 1.0
    %v244 = vrcp.pop %v243
    %v245 = vmul.f32 1.0, %v244
    %v246 = vtanh.pop %v239
    %v247 = vld [vmem:[#allocation5] sm:$0x3]
    %249 = vrot.lane.b32.xlu0 %v247, 32
    %v250 = vpop.permute.xlu0 %249
    %v252 = vmul.f32 %v245, %v250
    %254 = vrot.lane.b32.xlu0 %v246, 64
    %v255 = vpop.permute.xlu0 %254
    %v257 = vmul.f32 %v245, %v255
    %259 = vrot.lane.b32.xlu0 %v257, 32
    %v260 = vpop.permute.xlu0 %259
    %v262 = vadd.f32 %v252, %v260
    %v263 = vtanh.pop %v262
    %265 = vrot.lane.b32.xlu0 %v263, 64
    %v266 = vpop.permute.xlu0 %265
    %v268 = vmul.f32 %v245, %v266
    %270 = vrot.lane.b32.xlu0 %v262, 96
    %v271 = vpop.permute.xlu0 %270
    %273 = vst.msk [vmem:[#allocation5] sm:$0x3] %vm156, %v271
    %275 = vrot.lane.b32.xlu0 %v268, 32
    %v276 = vpop.permute.xlu0 %275
    %278 = vst.msk [vmem:[#allocation4] sm:$0x3] %vm156, %v276
    %279 = vst.msk [vmem:[#allocation2] sm:$0x3] %vm156, %v276
    %v280 = vld [vmem:[#allocation3 + $0x2] sm:$0x3]
    %v281 = vld [vmem:[#allocation4] sm:$0x3]
    %v282 = vld [vmem:[%s2] sm:$0xff]
    %v283 = vld [vmem:[%s2 + $0x8] sm:$0xff]
    %v284 = vld [vmem:[%s2 + $0x10] sm:$0xff]
    %v285 = vld [vmem:[%s2 + $0x18] sm:$0xff]
    %v287 = vsel %vm165, %v281, 0
    %289 = vmatprep.subr.mxu0 0.0
    %290 = vmatpush1.msra.mxu0 %v282
    %291 = vmatprep.subr.mxu0 0.0
    %292 = vmatpush1.msra.mxu0 %v283
    %293 = vmatprep.subr.mxu0 0.0
    %294 = vmatpush1.msra.mxu0 %v284
    %295 = vmatprep.subr.mxu0 0.0
    %296 = vmatpush1.msra.mxu0 %v285
    %297 = vmatprep.subr.mxu0 0.0
    %298 = vmatpush1.msra.mxu0 0.0
    %299 = vmatprep.subr.mxu0 0.0
    %300 = vmatpush1.msra.mxu0 0.0
    %301 = vmatprep.subr.mxu0 0.0
    %302 = vmatpush1.msra.mxu0 0.0
    %303 = vmatprep.subr.mxu0 0.0
    %304 = vmatpush1.msra.mxu0 0.0
    %305 = vmatprep.subr.mxu0 0.0
    %306 = vmatpush1.msra.mxu0 0.0
    %307 = vmatprep.subr.mxu0 0.0
    %308 = vmatpush1.msra.mxu0 0.0
    %309 = vmatprep.subr.mxu0 0.0
    %310 = vmatpush1.msra.mxu0 0.0
    %311 = vmatprep.subr.mxu0 0.0
    %312 = vmatpush1.msra.mxu0 0.0
    %313 = vmatprep.subr.mxu0 0.0
    %314 = vmatpush1.msra.mxu0 0.0
    %315 = vmatprep.subr.mxu0 0.0
    %316 = vmatpush1.msra.mxu0 0.0
    %317 = vmatprep.subr.mxu0 0.0
    %318 = vmatpush1.msra.mxu0 0.0
    %319 = vmatprep.subr.mxu0 0.0
    %320 = vmatpush1.msra.mxu0 0.0
    %321 = vmatprep.subr.mxu0 0.0
    %322 = vmatpush1.msra.mxu0 0.0
    %323 = vmatprep.subr.mxu0 0.0
    %324 = vmatpush1.msra.mxu0 0.0
    %325 = vmatprep.subr.mxu0 0.0
    %326 = vmatpush1.msra.mxu0 0.0
    %327 = vmatprep.subr.mxu0 0.0
    %328 = vmatpush1.msra.mxu0 0.0
    %329 = vmatprep.subr.mxu0 0.0
    %330 = vmatpush1.msra.mxu0 0.0
    %331 = vmatprep.subr.mxu0 0.0
    %332 = vmatpush1.msra.mxu0 0.0
    %333 = vmatprep.subr.mxu0 0.0
    %334 = vmatpush1.msra.mxu0 0.0
    %335 = vmatprep.subr.mxu0 0.0
    %336 = vmatpush1.msra.mxu0 0.0
    %337 = vmatprep.subr.mxu0 0.0
    %338 = vmatpush1.msra.mxu0 0.0
    %339 = vmatprep.subr.mxu0 0.0
    %340 = vmatpush1.msra.mxu0 0.0
    %341 = vmatprep.subr.mxu0 0.0
    %342 = vmatpush1.msra.mxu0 0.0
    %343 = vmatprep.subr.mxu0 0.0
    %344 = vmatpush1.msra.mxu0 0.0
    %345 = vmatprep.subr.mxu0 0.0
    %346 = vmatpush1.msra.mxu0 0.0
    %347 = vmatprep.subr.mxu0 0.0
    %348 = vmatpush1.msra.mxu0 0.0
    %349 = vmatprep.subr.mxu0 0.0
    %350 = vmatpush1.msra.mxu0 0.0
    %351 = vmatprep.subr.mxu0 0.0
    %352 = vmatpush1.msra.mxu0 0.0
    %353 = vmatprep.mubr.f32.mxu0 0.0
    %354 = vmatmul.mubr.f32.gmra.mrb[0].mxu0 %v287
    %v355 = vpop.f32.mrb[0].mxu0
    %v356 = vadd.f32 0.0, %v355
    %v357 = vpop.f32.mrb[0].mxu0
    %358 = vdwg.mxu0
    %v359 = vadd.f32 %v280, %v356
    %v360 = vxor.u32 %v359, 2147483648
    %v361 = vmul.f32 %v360, 1.442695
    %v362 = vpow.pop %v361
    %v363 = vadd.f32 %v362, 1.0
    %v364 = vrcp.pop %v363
    %v365 = vmul.f32 1.0, %v364
    %v366 = vtanh.pop %v359
    %v367 = vld [vmem:[#allocation5] sm:$0x3]
    %369 = vrot.lane.b32.xlu0 %v367, 32
    %v370 = vpop.permute.xlu0 %369
    %v372 = vmul.f32 %v365, %v370
    %374 = vrot.lane.b32.xlu0 %v366, 64
    %v375 = vpop.permute.xlu0 %374
    %v377 = vmul.f32 %v365, %v375
    %379 = vrot.lane.b32.xlu0 %v377, 32
    %v380 = vpop.permute.xlu0 %379
    %v382 = vadd.f32 %v372, %v380
    %v383 = vtanh.pop %v382
    %385 = vrot.lane.b32.xlu0 %v383, 64
    %v386 = vpop.permute.xlu0 %385
    %v388 = vmul.f32 %v365, %v386
    %390 = vrot.lane.b32.xlu0 %v382, 96
    %v391 = vpop.permute.xlu0 %390
    %393 = vst.msk [vmem:[#allocation5] sm:$0x3] %vm156, %v391
    %395 = vrot.lane.b32.xlu0 %v388, 32
    %v396 = vpop.permute.xlu0 %395
    %398 = vst.msk [vmem:[#allocation4] sm:$0x3] %vm156, %v396
    %399 = vst.msk [vmem:[#allocation2 + $0x2] sm:$0x3] %vm156, %v396
    %v400 = vld [vmem:[#allocation3 + $0x4] sm:$0x3]
    %v401 = vld [vmem:[#allocation4] sm:$0x3]
    %v402 = vld [vmem:[%s2] sm:$0xff]
    %v403 = vld [vmem:[%s2 + $0x8] sm:$0xff]
    %v404 = vld [vmem:[%s2 + $0x10] sm:$0xff]
    %v405 = vld [vmem:[%s2 + $0x18] sm:$0xff]
    %v407 = vsel %vm165, %v401, 0
    %409 = vmatprep.subr.mxu0 0.0
    %410 = vmatpush1.msra.mxu0 %v402
    %411 = vmatprep.subr.mxu0 0.0
    %412 = vmatpush1.msra.mxu0 %v403
    %413 = vmatprep.subr.mxu0 0.0
    %414 = vmatpush1.msra.mxu0 %v404
    %415 = vmatprep.subr.mxu0 0.0
    %416 = vmatpush1.msra.mxu0 %v405
    %417 = vmatprep.subr.mxu0 0.0
    %418 = vmatpush1.msra.mxu0 0.0
    %419 = vmatprep.subr.mxu0 0.0
    %420 = vmatpush1.msra.mxu0 0.0
    %421 = vmatprep.subr.mxu0 0.0
    %422 = vmatpush1.msra.mxu0 0.0
    %423 = vmatprep.subr.mxu0 0.0
    %424 = vmatpush1.msra.mxu0 0.0
    %425 = vmatprep.subr.mxu0 0.0
    %426 = vmatpush1.msra.mxu0 0.0
    %427 = vmatprep.subr.mxu0 0.0
    %428 = vmatpush1.msra.mxu0 0.0
    %429 = vmatprep.subr.mxu0 0.0
    %430 = vmatpush1.msra.mxu0 0.0
    %431 = vmatprep.subr.mxu0 0.0
    %432 = vmatpush1.msra.mxu0 0.0
    %433 = vmatprep.subr.mxu0 0.0
    %434 = vmatpush1.msra.mxu0 0.0
    %435 = vmatprep.subr.mxu0 0.0
    %436 = vmatpush1.msra.mxu0 0.0
    %437 = vmatprep.subr.mxu0 0.0
    %438 = vmatpush1.msra.mxu0 0.0
    %439 = vmatprep.subr.mxu0 0.0
    %440 = vmatpush1.msra.mxu0 0.0
    %441 = vmatprep.subr.mxu0 0.0
    %442 = vmatpush1.msra.mxu0 0.0
    %443 = vmatprep.subr.mxu0 0.0
    %444 = vmatpush1.msra.mxu0 0.0
    %445 = vmatprep.subr.mxu0 0.0
    %446 = vmatpush1.msra.mxu0 0.0
    %447 = vmatprep.subr.mxu0 0.0
    %448 = vmatpush1.msra.mxu0 0.0
    %449 = vmatprep.subr.mxu0 0.0
    %450 = vmatpush1.msra.mxu0 0.0
    %451 = vmatprep.subr.mxu0 0.0
    %452 = vmatpush1.msra.mxu0 0.0
    %453 = vmatprep.subr.mxu0 0.0
    %454 = vmatpush1.msra.mxu0 0.0
    %455 = vmatprep.subr.mxu0 0.0
    %456 = vmatpush1.msra.mxu0 0.0
    %457 = vmatprep.subr.mxu0 0.0
    %458 = vmatpush1.msra.mxu0 0.0
    %459 = vmatprep.subr.mxu0 0.0
    %460 = vmatpush1.msra.mxu0 0.0
    %461 = vmatprep.subr.mxu0 0.0
    %462 = vmatpush1.msra.mxu0 0.0
    %463 = vmatprep.subr.mxu0 0.0
    %464 = vmatpush1.msra.mxu0 0.0
    %465 = vmatprep.subr.mxu0 0.0
    %466 = vmatpush1.msra.mxu0 0.0
    %467 = vmatprep.subr.mxu0 0.0
    %468 = vmatpush1.msra.mxu0 0.0
    %469 = vmatprep.subr.mxu0 0.0
    %470 = vmatpush1.msra.mxu0 0.0
    %471 = vmatprep.subr.mxu0 0.0
    %472 = vmatpush1.msra.mxu0 0.0
    %473 = vmatprep.mubr.f32.mxu0 0.0
    %474 = vmatmul.mubr.f32.gmra.mrb[0].mxu0 %v407
    %v475 = vpop.f32.mrb[0].mxu0
    %v476 = vadd.f32 0.0, %v475
    %v477 = vpop.f32.mrb[0].mxu0
    %478 = vdwg.mxu0
    %v479 = vadd.f32 %v400, %v476
    %v480 = vxor.u32 %v479, 2147483648
    %v481 = vmul.f32 %v480, 1.442695
    %v482 = vpow.pop %v481
    %v483 = vadd.f32 %v482, 1.0
    %v484 = vrcp.pop %v483
    %v485 = vmul.f32 1.0, %v484
    %v486 = vtanh.pop %v479
    %v487 = vld [vmem:[#allocation5] sm:$0x3]
    %489 = vrot.lane.b32.xlu0 %v487, 32
    %v490 = vpop.permute.xlu0 %489
    %v492 = vmul.f32 %v485, %v490
    %494 = vrot.lane.b32.xlu0 %v486, 64
    %v495 = vpop.permute.xlu0 %494
    %v497 = vmul.f32 %v485, %v495
    %499 = vrot.lane.b32.xlu0 %v497, 32
    %v500 = vpop.permute.xlu0 %499
    %v502 = vadd.f32 %v492, %v500
    %v503 = vtanh.pop %v502
    %505 = vrot.lane.b32.xlu0 %v503, 64
    %v506 = vpop.permute.xlu0 %505
    %v508 = vmul.f32 %v485, %v506
    %510 = vrot.lane.b32.xlu0 %v502, 96
    %v511 = vpop.permute.xlu0 %510
    %513 = vst.msk [vmem:[#allocation5] sm:$0x3] %vm156, %v511
    %515 = vrot.lane.b32.xlu0 %v508, 32
    %v516 = vpop.permute.xlu0 %515
    %518 = vst.msk [vmem:[#allocation4] sm:$0x3] %vm156, %v516
    %519 = vst.msk [vmem:[#allocation2 + $0x4] sm:$0x3] %vm156, %v516
    %v520 = vld [vmem:[#allocation3 + $0x6] sm:$0x3]
    %v521 = vld [vmem:[#allocation4] sm:$0x3]
    %v522 = vld [vmem:[%s2] sm:$0xff]
    %v523 = vld [vmem:[%s2 + $0x8] sm:$0xff]
    %v524 = vld [vmem:[%s2 + $0x10] sm:$0xff]
    %v525 = vld [vmem:[%s2 + $0x18] sm:$0xff]
    %v527 = vsel %vm165, %v521, 0
    %529 = vmatprep.subr.mxu0 0.0
    %530 = vmatpush1.msra.mxu0 %v522
    %531 = vmatprep.subr.mxu0 0.0
    %532 = vmatpush1.msra.mxu0 %v523
    %533 = vmatprep.subr.mxu0 0.0
    %534 = vmatpush1.msra.mxu0 %v524
    %535 = vmatprep.subr.mxu0 0.0
    %536 = vmatpush1.msra.mxu0 %v525
    %537 = vmatprep.subr.mxu0 0.0
    %538 = vmatpush1.msra.mxu0 0.0
    %539 = vmatprep.subr.mxu0 0.0
    %540 = vmatpush1.msra.mxu0 0.0
    %541 = vmatprep.subr.mxu0 0.0
    %542 = vmatpush1.msra.mxu0 0.0
    %543 = vmatprep.subr.mxu0 0.0
    %544 = vmatpush1.msra.mxu0 0.0
    %545 = vmatprep.subr.mxu0 0.0
    %546 = vmatpush1.msra.mxu0 0.0
    %547 = vmatprep.subr.mxu0 0.0
    %548 = vmatpush1.msra.mxu0 0.0
    %549 = vmatprep.subr.mxu0 0.0
    %550 = vmatpush1.msra.mxu0 0.0
    %551 = vmatprep.subr.mxu0 0.0
    %552 = vmatpush1.msra.mxu0 0.0
    %553 = vmatprep.subr.mxu0 0.0
    %554 = vmatpush1.msra.mxu0 0.0
    %555 = vmatprep.subr.mxu0 0.0
    %556 = vmatpush1.msra.mxu0 0.0
    %557 = vmatprep.subr.mxu0 0.0
    %558 = vmatpush1.msra.mxu0 0.0
    %559 = vmatprep.subr.mxu0 0.0
    %560 = vmatpush1.msra.mxu0 0.0
    %561 = vmatprep.subr.mxu0 0.0
    %562 = vmatpush1.msra.mxu0 0.0
    %563 = vmatprep.subr.mxu0 0.0
    %564 = vmatpush1.msra.mxu0 0.0
    %565 = vmatprep.subr.mxu0 0.0
    %566 = vmatpush1.msra.mxu0 0.0
    %567 = vmatprep.subr.mxu0 0.0
    %568 = vmatpush1.msra.mxu0 0.0
    %569 = vmatprep.subr.mxu0 0.0
    %570 = vmatpush1.msra.mxu0 0.0
    %571 = vmatprep.subr.mxu0 0.0
    %572 = vmatpush1.msra.mxu0 0.0
    %573 = vmatprep.subr.mxu0 0.0
    %574 = vmatpush1.msra.mxu0 0.0
    %575 = vmatprep.subr.mxu0 0.0
    %576 = vmatpush1.msra.mxu0 0.0
    %577 = vmatprep.subr.mxu0 0.0
    %578 = vmatpush1.msra.mxu0 0.0
    %579 = vmatprep.subr.mxu0 0.0
    %580 = vmatpush1.msra.mxu0 0.0
    %581 = vmatprep.subr.mxu0 0.0
    %582 = vmatpush1.msra.mxu0 0.0
    %583 = vmatprep.subr.mxu0 0.0
    %584 = vmatpush1.msra.mxu0 0.0
    %585 = vmatprep.subr.mxu0 0.0
    %586 = vmatpush1.msra.mxu0 0.0
    %587 = vmatprep.subr.mxu0 0.0
    %588 = vmatpush1.msra.mxu0 0.0
    %589 = vmatprep.subr.mxu0 0.0
    %590 = vmatpush1.msra.mxu0 0.0
    %591 = vmatprep.subr.mxu0 0.0
    %592 = vmatpush1.msra.mxu0 0.0
    %593 = vmatprep.mubr.f32.mxu0 0.0
    %594 = vmatmul.mubr.f32.gmra.mrb[0].mxu0 %v527
    %v595 = vpop.f32.mrb[0].mxu0
    %v596 = vadd.f32 0.0, %v595
    %v597 = vpop.f32.mrb[0].mxu0
    %598 = vdwg.mxu0
    %v599 = vadd.f32 %v520, %v596
    %v600 = vxor.u32 %v599, 2147483648
    %v601 = vmul.f32 %v600, 1.442695
    %v602 = vpow.pop %v601
    %v603 = vadd.f32 %v602, 1.0
    %v604 = vrcp.pop %v603
    %v605 = vmul.f32 1.0, %v604
    %v606 = vtanh.pop %v599
    %v607 = vld [vmem:[#allocation5] sm:$0x3]
    %609 = vrot.lane.b32.xlu0 %v607, 32
    %v610 = vpop.permute.xlu0 %609
    %v612 = vmul.f32 %v605, %v610
    %614 = vrot.lane.b32.xlu0 %v606, 64
    %v615 = vpop.permute.xlu0 %614
    %v617 = vmul.f32 %v605, %v615
    %619 = vrot.lane.b32.xlu0 %v617, 32
    %v620 = vpop.permute.xlu0 %619
    %v622 = vadd.f32 %v612, %v620
    %v623 = vtanh.pop %v622
    %625 = vrot.lane.b32.xlu0 %v623, 64
    %v626 = vpop.permute.xlu0 %625
    %v628 = vmul.f32 %v605, %v626
    %630 = vrot.lane.b32.xlu0 %v622, 96
    %v631 = vpop.permute.xlu0 %630
    %633 = vst.msk [vmem:[#allocation5] sm:$0x3] %vm156, %v631
    %635 = vrot.lane.b32.xlu0 %v628, 32
    %v636 = vpop.permute.xlu0 %635
    %638 = vst.msk [vmem:[#allocation4] sm:$0x3] %vm156, %v636
    %639 = vst.msk [vmem:[#allocation2 + $0x6] sm:$0x3] %vm156, %v636
    %v640 = vld [vmem:[#allocation3 + $0x8] sm:$0x3]
    %v641 = vld [vmem:[#allocation4] sm:$0x3]
    %v642 = vld [vmem:[%s2] sm:$0xff]
    %v643 = vld [vmem:[%s2 + $0x8] sm:$0xff]
    %v644 = vld [vmem:[%s2 + $0x10] sm:$0xff]
    %v645 = vld [vmem:[%s2 + $0x18] sm:$0xff]
    %v647 = vsel %vm165, %v641, 0
    %649 = vmatprep.subr.mxu0 0.0
    %650 = vmatpush1.msra.mxu0 %v642
    %651 = vmatprep.subr.mxu0 0.0
    %652 = vmatpush1.msra.mxu0 %v643
    %653 = vmatprep.subr.mxu0 0.0
    %654 = vmatpush1.msra.mxu0 %v644
    %655 = vmatprep.subr.mxu0 0.0
    %656 = vmatpush1.msra.mxu0 %v645
    %657 = vmatprep.subr.mxu0 0.0
    %658 = vmatpush1.msra.mxu0 0.0
    %659 = vmatprep.subr.mxu0 0.0
    %660 = vmatpush1.msra.mxu0 0.0
    %661 = vmatprep.subr.mxu0 0.0
    %662 = vmatpush1.msra.mxu0 0.0
    %663 = vmatprep.subr.mxu0 0.0
    %664 = vmatpush1.msra.mxu0 0.0
    %665 = vmatprep.subr.mxu0 0.0
    %666 = vmatpush1.msra.mxu0 0.0
    %667 = vmatprep.subr.mxu0 0.0
    %668 = vmatpush1.msra.mxu0 0.0
    %669 = vmatprep.subr.mxu0 0.0
    %670 = vmatpush1.msra.mxu0 0.0
    %671 = vmatprep.subr.mxu0 0.0
    %672 = vmatpush1.msra.mxu0 0.0
    %673 = vmatprep.subr.mxu0 0.0
    %674 = vmatpush1.msra.mxu0 0.0
    %675 = vmatprep.subr.mxu0 0.0
    %676 = vmatpush1.msra.mxu0 0.0
    %677 = vmatprep.subr.mxu0 0.0
    %678 = vmatpush1.msra.mxu0 0.0
    %679 = vmatprep.subr.mxu0 0.0
    %680 = vmatpush1.msra.mxu0 0.0
    %681 = vmatprep.subr.mxu0 0.0
    %682 = vmatpush1.msra.mxu0 0.0
    %683 = vmatprep.subr.mxu0 0.0
    %684 = vmatpush1.msra.mxu0 0.0
    %685 = vmatprep.subr.mxu0 0.0
    %686 = vmatpush1.msra.mxu0 0.0
    %687 = vmatprep.subr.mxu0 0.0
    %688 = vmatpush1.msra.mxu0 0.0
    %689 = vmatprep.subr.mxu0 0.0
    %690 = vmatpush1.msra.mxu0 0.0
    %691 = vmatprep.subr.mxu0 0.0
    %692 = vmatpush1.msra.mxu0 0.0
    %693 = vmatprep.subr.mxu0 0.0
    %694 = vmatpush1.msra.mxu0 0.0
    %695 = vmatprep.subr.mxu0 0.0
    %696 = vmatpush1.msra.mxu0 0.0
    %697 = vmatprep.subr.mxu0 0.0
    %698 = vmatpush1.msra.mxu0 0.0
    %699 = vmatprep.subr.mxu0 0.0
    %700 = vmatpush1.msra.mxu0 0.0
    %701 = vmatprep.subr.mxu0 0.0
    %702 = vmatpush1.msra.mxu0 0.0
    %703 = vmatprep.subr.mxu0 0.0
    %704 = vmatpush1.msra.mxu0 0.0
    %705 = vmatprep.subr.mxu0 0.0
    %706 = vmatpush1.msra.mxu0 0.0
    %707 = vmatprep.subr.mxu0 0.0
    %708 = vmatpush1.msra.mxu0 0.0
    %709 = vmatprep.subr.mxu0 0.0
    %710 = vmatpush1.msra.mxu0 0.0
    %711 = vmatprep.subr.mxu0 0.0
    %712 = vmatpush1.msra.mxu0 0.0
    %713 = vmatprep.mubr.f32.mxu0 0.0
    %714 = vmatmul.mubr.f32.gmra.mrb[0].mxu0 %v647
    %v715 = vpop.f32.mrb[0].mxu0
    %v716 = vadd.f32 0.0, %v715
    %v717 = vpop.f32.mrb[0].mxu0
    %718 = vdwg.mxu0
    %v719 = vadd.f32 %v640, %v716
    %v720 = vxor.u32 %v719, 2147483648
    %v721 = vmul.f32 %v720, 1.442695
    %v722 = vpow.pop %v721
    %v723 = vadd.f32 %v722, 1.0
    %v724 = vrcp.pop %v723
    %v725 = vmul.f32 1.0, %v724
    %v726 = vtanh.pop %v719
    %v727 = vld [vmem:[#allocation5] sm:$0x3]
    %729 = vrot.lane.b32.xlu0 %v727, 32
    %v730 = vpop.permute.xlu0 %729
    %v732 = vmul.f32 %v725, %v730
    %734 = vrot.lane.b32.xlu0 %v726, 64
    %v735 = vpop.permute.xlu0 %734
    %v737 = vmul.f32 %v725, %v735
    %739 = vrot.lane.b32.xlu0 %v737, 32
    %v740 = vpop.permute.xlu0 %739
    %v742 = vadd.f32 %v732, %v740
    %v743 = vtanh.pop %v742
    %745 = vrot.lane.b32.xlu0 %v743, 64
    %v746 = vpop.permute.xlu0 %745
    %v748 = vmul.f32 %v725, %v746
    %750 = vrot.lane.b32.xlu0 %v742, 96
    %v751 = vpop.permute.xlu0 %750
    %753 = vst.msk [vmem:[#allocation5] sm:$0x3] %vm156, %v751
    %755 = vrot.lane.b32.xlu0 %v748, 32
    %v756 = vpop.permute.xlu0 %755
    %758 = vst.msk [vmem:[#allocation4] sm:$0x3] %vm156, %v756
    %759 = vst.msk [vmem:[#allocation2 + $0x8] sm:$0x3] %vm156, %v756
    %v760 = vld [vmem:[#allocation3 + $0xa] sm:$0x3]
    %v761 = vld [vmem:[#allocation4] sm:$0x3]
    %v762 = vld [vmem:[%s2] sm:$0xff]
    %v763 = vld [vmem:[%s2 + $0x8] sm:$0xff]
    %v764 = vld [vmem:[%s2 + $0x10] sm:$0xff]
    %v765 = vld [vmem:[%s2 + $0x18] sm:$0xff]
    %v767 = vsel %vm165, %v761, 0
    %769 = vmatprep.subr.mxu0 0.0
    %770 = vmatpush1.msra.mxu0 %v762
    %771 = vmatprep.subr.mxu0 0.0
    %772 = vmatpush1.msra.mxu0 %v763
    %773 = vmatprep.subr.mxu0 0.0
    %774 = vmatpush1.msra.mxu0 %v764
    %775 = vmatprep.subr.mxu0 0.0
    %776 = vmatpush1.msra.mxu0 %v765
    %777 = vmatprep.subr.mxu0 0.0
    %778 = vmatpush1.msra.mxu0 0.0
    %779 = vmatprep.subr.mxu0 0.0
    %780 = vmatpush1.msra.mxu0 0.0
    %781 = vmatprep.subr.mxu0 0.0
    %782 = vmatpush1.msra.mxu0 0.0
    %783 = vmatprep.subr.mxu0 0.0
    %784 = vmatpush1.msra.mxu0 0.0
    %785 = vmatprep.subr.mxu0 0.0
    %786 = vmatpush1.msra.mxu0 0.0
    %787 = vmatprep.subr.mxu0 0.0
    %788 = vmatpush1.msra.mxu0 0.0
    %789 = vmatprep.subr.mxu0 0.0
    %790 = vmatpush1.msra.mxu0 0.0
    %791 = vmatprep.subr.mxu0 0.0
    %792 = vmatpush1.msra.mxu0 0.0
    %793 = vmatprep.subr.mxu0 0.0
    %794 = vmatpush1.msra.mxu0 0.0
    %795 = vmatprep.subr.mxu0 0.0
    %796 = vmatpush1.msra.mxu0 0.0
    %797 = vmatprep.subr.mxu0 0.0
    %798 = vmatpush1.msra.mxu0 0.0
    %799 = vmatprep.subr.mxu0 0.0
    %800 = vmatpush1.msra.mxu0 0.0
    %801 = vmatprep.subr.mxu0 0.0
    %802 = vmatpush1.msra.mxu0 0.0
    %803 = vmatprep.subr.mxu0 0.0
    %804 = vmatpush1.msra.mxu0 0.0
    %805 = vmatprep.subr.mxu0 0.0
    %806 = vmatpush1.msra.mxu0 0.0
    %807 = vmatprep.subr.mxu0 0.0
    %808 = vmatpush1.msra.mxu0 0.0
    %809 = vmatprep.subr.mxu0 0.0
    %810 = vmatpush1.msra.mxu0 0.0
    %811 = vmatprep.subr.mxu0 0.0
    %812 = vmatpush1.msra.mxu0 0.0
    %813 = vmatprep.subr.mxu0 0.0
    %814 = vmatpush1.msra.mxu0 0.0
    %815 = vmatprep.subr.mxu0 0.0
    %816 = vmatpush1.msra.mxu0 0.0
    %817 = vmatprep.subr.mxu0 0.0
    %818 = vmatpush1.msra.mxu0 0.0
    %819 = vmatprep.subr.mxu0 0.0
    %820 = vmatpush1.msra.mxu0 0.0
    %821 = vmatprep.subr.mxu0 0.0
    %822 = vmatpush1.msra.mxu0 0.0
    %823 = vmatprep.subr.mxu0 0.0
    %824 = vmatpush1.msra.mxu0 0.0
    %825 = vmatprep.subr.mxu0 0.0
    %826 = vmatpush1.msra.mxu0 0.0
    %827 = vmatprep.subr.mxu0 0.0
    %828 = vmatpush1.msra.mxu0 0.0
    %829 = vmatprep.subr.mxu0 0.0
    %830 = vmatpush1.msra.mxu0 0.0
    %831 = vmatprep.subr.mxu0 0.0
    %832 = vmatpush1.msra.mxu0 0.0
    %833 = vmatprep.mubr.f32.mxu0 0.0
    %834 = vmatmul.mubr.f32.gmra.mrb[0].mxu0 %v767
    %v835 = vpop.f32.mrb[0].mxu0
    %v836 = vadd.f32 0.0, %v835
    %v837 = vpop.f32.mrb[0].mxu0
    %838 = vdwg.mxu0
    %v839 = vadd.f32 %v760, %v836
    %v840 = vxor.u32 %v839, 2147483648
    %v841 = vmul.f32 %v840, 1.442695
    %v842 = vpow.pop %v841
    %v843 = vadd.f32 %v842, 1.0
    %v844 = vrcp.pop %v843
    %v845 = vmul.f32 1.0, %v844
    %v846 = vtanh.pop %v839
    %v847 = vld [vmem:[#allocation5] sm:$0x3]
    %849 = vrot.lane.b32.xlu0 %v847, 32
    %v850 = vpop.permute.xlu0 %849
    %v852 = vmul.f32 %v845, %v850
    %854 = vrot.lane.b32.xlu0 %v846, 64
    %v855 = vpop.permute.xlu0 %854
    %v857 = vmul.f32 %v845, %v855
    %859 = vrot.lane.b32.xlu0 %v857, 32
    %v860 = vpop.permute.xlu0 %859
    %v862 = vadd.f32 %v852, %v860
    %v863 = vtanh.pop %v862
    %865 = vrot.lane.b32.xlu0 %v863, 64
    %v866 = vpop.permute.xlu0 %865
    %v868 = vmul.f32 %v845, %v866
    %870 = vrot.lane.b32.xlu0 %v862, 96
    %v871 = vpop.permute.xlu0 %870
    %873 = vst.msk [vmem:[#allocation5] sm:$0x3] %vm156, %v871
    %875 = vrot.lane.b32.xlu0 %v868, 32
    %v876 = vpop.permute.xlu0 %875
    %878 = vst.msk [vmem:[#allocation4] sm:$0x3] %vm156, %v876
    %879 = vst.msk [vmem:[#allocation2 + $0xa] sm:$0x3] %vm156, %v876
    %v880 = vld [vmem:[#allocation3 + $0xc] sm:$0x3]
    %v881 = vld [vmem:[#allocation4] sm:$0x3]
    %v882 = vld [vmem:[%s2] sm:$0xff]
    %v883 = vld [vmem:[%s2 + $0x8] sm:$0xff]
    %v884 = vld [vmem:[%s2 + $0x10] sm:$0xff]
    %v885 = vld [vmem:[%s2 + $0x18] sm:$0xff]
    %v887 = vsel %vm165, %v881, 0
    %889 = vmatprep.subr.mxu0 0.0
    %890 = vmatpush1.msra.mxu0 %v882
    %891 = vmatprep.subr.mxu0 0.0
    %892 = vmatpush1.msra.mxu0 %v883
    %893 = vmatprep.subr.mxu0 0.0
    %894 = vmatpush1.msra.mxu0 %v884
    %895 = vmatprep.subr.mxu0 0.0
    %896 = vmatpush1.msra.mxu0 %v885
    %897 = vmatprep.subr.mxu0 0.0
    %898 = vmatpush1.msra.mxu0 0.0
    %899 = vmatprep.subr.mxu0 0.0
    %900 = vmatpush1.msra.mxu0 0.0
    %901 = vmatprep.subr.mxu0 0.0
    %902 = vmatpush1.msra.mxu0 0.0
    %903 = vmatprep.subr.mxu0 0.0
    %904 = vmatpush1.msra.mxu0 0.0
    %905 = vmatprep.subr.mxu0 0.0
    %906 = vmatpush1.msra.mxu0 0.0
    %907 = vmatprep.subr.mxu0 0.0
    %908 = vmatpush1.msra.mxu0 0.0
    %909 = vmatprep.subr.mxu0 0.0
    %910 = vmatpush1.msra.mxu0 0.0
    %911 = vmatprep.subr.mxu0 0.0
    %912 = vmatpush1.msra.mxu0 0.0
    %913 = vmatprep.subr.mxu0 0.0
    %914 = vmatpush1.msra.mxu0 0.0
    %915 = vmatprep.subr.mxu0 0.0
    %916 = vmatpush1.msra.mxu0 0.0
    %917 = vmatprep.subr.mxu0 0.0
    %918 = vmatpush1.msra.mxu0 0.0
    %919 = vmatprep.subr.mxu0 0.0
    %920 = vmatpush1.msra.mxu0 0.0
    %921 = vmatprep.subr.mxu0 0.0
    %922 = vmatpush1.msra.mxu0 0.0
    %923 = vmatprep.subr.mxu0 0.0
    %924 = vmatpush1.msra.mxu0 0.0
    %925 = vmatprep.subr.mxu0 0.0
    %926 = vmatpush1.msra.mxu0 0.0
    %927 = vmatprep.subr.mxu0 0.0
    %928 = vmatpush1.msra.mxu0 0.0
    %929 = vmatprep.subr.mxu0 0.0
    %930 = vmatpush1.msra.mxu0 0.0
    %931 = vmatprep.subr.mxu0 0.0
    %932 = vmatpush1.msra.mxu0 0.0
    %933 = vmatprep.subr.mxu0 0.0
    %934 = vmatpush1.msra.mxu0 0.0
    %935 = vmatprep.subr.mxu0 0.0
    %936 = vmatpush1.msra.mxu0 0.0
    %937 = vmatprep.subr.mxu0 0.0
    %938 = vmatpush1.msra.mxu0 0.0
    %939 = vmatprep.subr.mxu0 0.0
    %940 = vmatpush1.msra.mxu0 0.0
    %941 = vmatprep.subr.mxu0 0.0
    %942 = vmatpush1.msra.mxu0 0.0
    %943 = vmatprep.subr.mxu0 0.0
    %944 = vmatpush1.msra.mxu0 0.0
    %945 = vmatprep.subr.mxu0 0.0
    %946 = vmatpush1.msra.mxu0 0.0
    %947 = vmatprep.subr.mxu0 0.0
    %948 = vmatpush1.msra.mxu0 0.0
    %949 = vmatprep.subr.mxu0 0.0
    %950 = vmatpush1.msra.mxu0 0.0
    %951 = vmatprep.subr.mxu0 0.0
    %952 = vmatpush1.msra.mxu0 0.0
    %953 = vmatprep.mubr.f32.mxu0 0.0
    %954 = vmatmul.mubr.f32.gmra.mrb[0].mxu0 %v887
    %v955 = vpop.f32.mrb[0].mxu0
    %v956 = vadd.f32 0.0, %v955
    %v957 = vpop.f32.mrb[0].mxu0
    %958 = vdwg.mxu0
    %v959 = vadd.f32 %v880, %v956
    %v960 = vxor.u32 %v959, 2147483648
    %v961 = vmul.f32 %v960, 1.442695
    %v962 = vpow.pop %v961
    %v963 = vadd.f32 %v962, 1.0
    %v964 = vrcp.pop %v963
    %v965 = vmul.f32 1.0, %v964
    %v966 = vtanh.pop %v959
    %v967 = vld [vmem:[#allocation5] sm:$0x3]
    %969 = vrot.lane.b32.xlu0 %v967, 32
    %v970 = vpop.permute.xlu0 %969
    %v972 = vmul.f32 %v965, %v970
    %974 = vrot.lane.b32.xlu0 %v966, 64
    %v975 = vpop.permute.xlu0 %974
    %v977 = vmul.f32 %v965, %v975
    %979 = vrot.lane.b32.xlu0 %v977, 32
    %v980 = vpop.permute.xlu0 %979
    %v982 = vadd.f32 %v972, %v980
    %v983 = vtanh.pop %v982
    %985 = vrot.lane.b32.xlu0 %v983, 64
    %v986 = vpop.permute.xlu0 %985
    %v988 = vmul.f32 %v965, %v986
    %990 = vrot.lane.b32.xlu0 %v982, 96
    %v991 = vpop.permute.xlu0 %990
    %993 = vst.msk [vmem:[#allocation5] sm:$0x3] %vm156, %v991
    %995 = vrot.lane.b32.xlu0 %v988, 32
    %v996 = vpop.permute.xlu0 %995
    %998 = vst.msk [vmem:[#allocation4] sm:$0x3] %vm156, %v996
    %999 = vst.msk [vmem:[#allocation2 + $0xc] sm:$0x3] %vm156, %v996
    %v1000 = vld [vmem:[#allocation3 + $0xe] sm:$0x3]
    %v1001 = vld [vmem:[#allocation4] sm:$0x3]
    %v1002 = vld [vmem:[%s2] sm:$0xff]
    %v1003 = vld [vmem:[%s2 + $0x8] sm:$0xff]
    %v1004 = vld [vmem:[%s2 + $0x10] sm:$0xff]
    %v1005 = vld [vmem:[%s2 + $0x18] sm:$0xff]
    %v1007 = vsel %vm165, %v1001, 0
    %1009 = vmatprep.subr.mxu0 0.0
    %1010 = vmatpush1.msra.mxu0 %v1002
    %1011 = vmatprep.subr.mxu0 0.0
    %1012 = vmatpush1.msra.mxu0 %v1003
    %1013 = vmatprep.subr.mxu0 0.0
    %1014 = vmatpush1.msra.mxu0 %v1004
    %1015 = vmatprep.subr.mxu0 0.0
    %1016 = vmatpush1.msra.mxu0 %v1005
    %1017 = vmatprep.subr.mxu0 0.0
    %1018 = vmatpush1.msra.mxu0 0.0
    %1019 = vmatprep.subr.mxu0 0.0
    %1020 = vmatpush1.msra.mxu0 0.0
    %1021 = vmatprep.subr.mxu0 0.0
    %1022 = vmatpush1.msra.mxu0 0.0
    %1023 = vmatprep.subr.mxu0 0.0
    %1024 = vmatpush1.msra.mxu0 0.0
    %1025 = vmatprep.subr.mxu0 0.0
    %1026 = vmatpush1.msra.mxu0 0.0
    %1027 = vmatprep.subr.mxu0 0.0
    %1028 = vmatpush1.msra.mxu0 0.0
    %1029 = vmatprep.subr.mxu0 0.0
    %1030 = vmatpush1.msra.mxu0 0.0
    %1031 = vmatprep.subr.mxu0 0.0
    %1032 = vmatpush1.msra.mxu0 0.0
    %1033 = vmatprep.subr.mxu0 0.0
    %1034 = vmatpush1.msra.mxu0 0.0
    %1035 = vmatprep.subr.mxu0 0.0
    %1036 = vmatpush1.msra.mxu0 0.0
    %1037 = vmatprep.subr.mxu0 0.0
    %1038 = vmatpush1.msra.mxu0 0.0
    %1039 = vmatprep.subr.mxu0 0.0
    %1040 = vmatpush1.msra.mxu0 0.0
    %1041 = vmatprep.subr.mxu0 0.0
    %1042 = vmatpush1.msra.mxu0 0.0
    %1043 = vmatprep.subr.mxu0 0.0
    %1044 = vmatpush1.msra.mxu0 0.0
    %1045 = vmatprep.subr.mxu0 0.0
    %1046 = vmatpush1.msra.mxu0 0.0
    %1047 = vmatprep.subr.mxu0 0.0
    %1048 = vmatpush1.msra.mxu0 0.0
    %1049 = vmatprep.subr.mxu0 0.0
    %1050 = vmatpush1.msra.mxu0 0.0
    %1051 = vmatprep.subr.mxu0 0.0
    %1052 = vmatpush1.msra.mxu0 0.0
    %1053 = vmatprep.subr.mxu0 0.0
    %1054 = vmatpush1.msra.mxu0 0.0
    %1055 = vmatprep.subr.mxu0 0.0
    %1056 = vmatpush1.msra.mxu0 0.0
    %1057 = vmatprep.subr.mxu0 0.0
    %1058 = vmatpush1.msra.mxu0 0.0
    %1059 = vmatprep.subr.mxu0 0.0
    %1060 = vmatpush1.msra.mxu0 0.0
    %1061 = vmatprep.subr.mxu0 0.0
    %1062 = vmatpush1.msra.mxu0 0.0
    %1063 = vmatprep.subr.mxu0 0.0
    %1064 = vmatpush1.msra.mxu0 0.0
    %1065 = vmatprep.subr.mxu0 0.0
    %1066 = vmatpush1.msra.mxu0 0.0
    %1067 = vmatprep.subr.mxu0 0.0
    %1068 = vmatpush1.msra.mxu0 0.0
    %1069 = vmatprep.subr.mxu0 0.0
    %1070 = vmatpush1.msra.mxu0 0.0
    %1071 = vmatprep.subr.mxu0 0.0
    %1072 = vmatpush1.msra.mxu0 0.0
    %1073 = vmatprep.mubr.f32.mxu0 0.0
    %1074 = vmatmul.mubr.f32.gmra.mrb[0].mxu0 %v1007
    %v1075 = vpop.f32.mrb[0].mxu0
    %v1076 = vadd.f32 0.0, %v1075
    %v1077 = vpop.f32.mrb[0].mxu0
    %1078 = vdwg.mxu0
    %v1079 = vadd.f32 %v1000, %v1076
    %v1080 = vxor.u32 %v1079, 2147483648
    %v1081 = vmul.f32 %v1080, 1.442695
    %v1082 = vpow.pop %v1081
    %v1083 = vadd.f32 %v1082, 1.0
    %v1084 = vrcp.pop %v1083
    %v1085 = vmul.f32 1.0, %v1084
    %v1086 = vtanh.pop %v1079
    %v1087 = vld [vmem:[#allocation5] sm:$0x3]
    %1089 = vrot.lane.b32.xlu0 %v1087, 32
    %v1090 = vpop.permute.xlu0 %1089
    %v1092 = vmul.f32 %v1085, %v1090
    %1094 = vrot.lane.b32.xlu0 %v1086, 64
    %v1095 = vpop.permute.xlu0 %1094
    %v1097 = vmul.f32 %v1085, %v1095
    %1099 = vrot.lane.b32.xlu0 %v1097, 32
    %v1100 = vpop.permute.xlu0 %1099
    %v1102 = vadd.f32 %v1092, %v1100
    %v1103 = vtanh.pop %v1102
    %1105 = vrot.lane.b32.xlu0 %v1103, 64
    %v1106 = vpop.permute.xlu0 %1105
    %v1108 = vmul.f32 %v1085, %v1106
    %1110 = vrot.lane.b32.xlu0 %v1102, 96
    %v1111 = vpop.permute.xlu0 %1110
    %1113 = vst.msk [vmem:[#allocation5] sm:$0x3] %vm156, %v1111
    %1115 = vrot.lane.b32.xlu0 %v1108, 32
    %v1116 = vpop.permute.xlu0 %1115
    %1118 = vst.msk [vmem:[#allocation4] sm:$0x3] %vm156, %v1116
    %1119 = vst.msk [vmem:[#allocation2 + $0xe] sm:$0x3] %vm156, %v1116
    %v1120 = vld [vmem:[#allocation2] sm:$0xff]
    %v1121 = vld [vmem:[#allocation2 + $0x8] sm:$0xff]
    %v1122 = vld [vmem:[%s4] sm:$0xff]
    %v1123 = vld [vmem:[%s4 + $0x8] sm:$0xff]
    %v1124 = vld [vmem:[%s4 + $0x10] sm:$0xff]
    %v1125 = vld [vmem:[%s4 + $0x18] sm:$0xff]
    %v1126 = vld [vmem:[%s6] sm:$0x1]
    %v1128 = vlaneseq
    %v1129 = vshrl.u32 %v1128, 7
    %v1130 = vsub.s32 0, %v1129
    %v1131 = vrot.slane %v1126, %v1130
    %v1134 = vsel %vm165, %v1120, 0
    %v1137 = vsel %vm165, %v1121, 0
    %1139 = vmatprep.subr.mxu0 0.0
    %1140 = vmatpush1.msra.mxu0 %v1122
    %1141 = vmatprep.subr.mxu0 0.0
    %1142 = vmatpush1.msra.mxu0 %v1123
    %1143 = vmatprep.subr.mxu0 0.0
    %1144 = vmatpush1.msra.mxu0 %v1124
    %1145 = vmatprep.subr.mxu0 0.0
    %1146 = vmatpush1.msra.mxu0 %v1125
    %1147 = vmatprep.subr.mxu0 0.0
    %1148 = vmatpush1.msra.mxu0 0.0
    %1149 = vmatprep.subr.mxu0 0.0
    %1150 = vmatpush1.msra.mxu0 0.0
    %1151 = vmatprep.subr.mxu0 0.0
    %1152 = vmatpush1.msra.mxu0 0.0
    %1153 = vmatprep.subr.mxu0 0.0
    %1154 = vmatpush1.msra.mxu0 0.0
    %1155 = vmatprep.subr.mxu0 0.0
    %1156 = vmatpush1.msra.mxu0 0.0
    %1157 = vmatprep.subr.mxu0 0.0
    %1158 = vmatpush1.msra.mxu0 0.0
    %1159 = vmatprep.subr.mxu0 0.0
    %1160 = vmatpush1.msra.mxu0 0.0
    %1161 = vmatprep.subr.mxu0 0.0
    %1162 = vmatpush1.msra.mxu0 0.0
    %1163 = vmatprep.subr.mxu0 0.0
    %1164 = vmatpush1.msra.mxu0 0.0
    %1165 = vmatprep.subr.mxu0 0.0
    %1166 = vmatpush1.msra.mxu0 0.0
    %1167 = vmatprep.subr.mxu0 0.0
    %1168 = vmatpush1.msra.mxu0 0.0
    %1169 = vmatprep.subr.mxu0 0.0
    %1170 = vmatpush1.msra.mxu0 0.0
    %1171 = vmatprep.subr.mxu0 0.0
    %1172 = vmatpush1.msra.mxu0 0.0
    %1173 = vmatprep.subr.mxu0 0.0
    %1174 = vmatpush1.msra.mxu0 0.0
    %1175 = vmatprep.subr.mxu0 0.0
    %1176 = vmatpush1.msra.mxu0 0.0
    %1177 = vmatprep.subr.mxu0 0.0
    %1178 = vmatpush1.msra.mxu0 0.0
    %1179 = vmatprep.subr.mxu0 0.0
    %1180 = vmatpush1.msra.mxu0 0.0
    %1181 = vmatprep.subr.mxu0 0.0
    %1182 = vmatpush1.msra.mxu0 0.0
    %1183 = vmatprep.subr.mxu0 0.0
    %1184 = vmatpush1.msra.mxu0 0.0
    %1185 = vmatprep.subr.mxu0 0.0
    %1186 = vmatpush1.msra.mxu0 0.0
    %1187 = vmatprep.subr.mxu0 0.0
    %1188 = vmatpush1.msra.mxu0 0.0
    %1189 = vmatprep.subr.mxu0 0.0
    %1190 = vmatpush1.msra.mxu0 0.0
    %1191 = vmatprep.subr.mxu0 0.0
    %1192 = vmatpush1.msra.mxu0 0.0
    %1193 = vmatprep.subr.mxu0 0.0
    %1194 = vmatpush1.msra.mxu0 0.0
    %1195 = vmatprep.subr.mxu0 0.0
    %1196 = vmatpush1.msra.mxu0 0.0
    %1197 = vmatprep.subr.mxu0 0.0
    %1198 = vmatpush1.msra.mxu0 0.0
    %1199 = vmatprep.subr.mxu0 0.0
    %1200 = vmatpush1.msra.mxu0 0.0
    %1201 = vmatprep.subr.mxu0 0.0
    %1202 = vmatpush1.msra.mxu0 0.0
    %1203 = vmatprep.mubr.f32.mxu0 0.0
    %1204 = vmatmul.mubr.f32.gmra.mrb[0].mxu0 %v1134
    %v1205 = vpop.f32.mrb[0].mxu0
    %v1206 = vadd.f32 %v1131, %v1205
    %v1207 = vpop.f32.mrb[0].mxu0
    %1208 = vmatprep.mubr.f32.mxu0 0.0
    %1209 = vmatmul.mubr.f32.gmra.mrb[0].mxu0 %v1137
    %v1210 = vpop.f32.mrb[0].mxu0
    %v1211 = vadd.f32 %v1131, %v1210
    %v1212 = vpop.f32.mrb[0].mxu0
    %1213 = vdwg.mxu0
    %1214 = vst [vmem:[#allocation3] sm:$0xff] %v1206
    %1215 = vst [vmem:[#allocation3 + $0x8] sm:$0xff] %v1211
    %1216 = vst.msk [vmem:[#allocation4] sm:$0x3] %vm156, 0.0
    %1217 = vst.msk [vmem:[#allocation5] sm:$0x3] %vm156, 0.0
    %v1218 = vld [vmem:[#allocation3] sm:$0x3]
    %v1219 = vld [vmem:[#allocation4] sm:$0x3]
    %v1220 = vld [vmem:[#allocation9] sm:$0xff]
    %v1221 = vld [vmem:[#allocation9 + $0x8] sm:$0xff]
    %v1222 = vld [vmem:[#allocation9 + $0x10] sm:$0xff]
    %v1223 = vld [vmem:[#allocation9 + $0x18] sm:$0xff]
    %v1225 = vsel %vm165, %v1219, 0
    %1227 = vmatprep.subr.mxu0 0.0
    %1228 = vmatpush1.msra.mxu0 %v1220
    %1229 = vmatprep.subr.mxu0 0.0
    %1230 = vmatpush1.msra.mxu0 %v1221
    %1231 = vmatprep.subr.mxu0 0.0
    %1232 = vmatpush1.msra.mxu0 %v1222
    %1233 = vmatprep.subr.mxu0 0.0
    %1234 = vmatpush1.msra.mxu0 %v1223
    %1235 = vmatprep.subr.mxu0 0.0
    %1236 = vmatpush1.msra.mxu0 0.0
    %1237 = vmatprep.subr.mxu0 0.0
    %1238 = vmatpush1.msra.mxu0 0.0
    %1239 = vmatprep.subr.mxu0 0.0
    %1240 = vmatpush1.msra.mxu0 0.0
    %1241 = vmatprep.subr.mxu0 0.0
    %1242 = vmatpush1.msra.mxu0 0.0
    %1243 = vmatprep.subr.mxu0 0.0
    %1244 = vmatpush1.msra.mxu0 0.0
    %1245 = vmatprep.subr.mxu0 0.0
    %1246 = vmatpush1.msra.mxu0 0.0
    %1247 = vmatprep.subr.mxu0 0.0
    %1248 = vmatpush1.msra.mxu0 0.0
    %1249 = vmatprep.subr.mxu0 0.0
    %1250 = vmatpush1.msra.mxu0 0.0
    %1251 = vmatprep.subr.mxu0 0.0
    %1252 = vmatpush1.msra.mxu0 0.0
    %1253 = vmatprep.subr.mxu0 0.0
    %1254 = vmatpush1.msra.mxu0 0.0
    %1255 = vmatprep.subr.mxu0 0.0
    %1256 = vmatpush1.msra.mxu0 0.0
    %1257 = vmatprep.subr.mxu0 0.0
    %1258 = vmatpush1.msra.mxu0 0.0
    %1259 = vmatprep.subr.mxu0 0.0
    %1260 = vmatpush1.msra.mxu0 0.0
    %1261 = vmatprep.subr.mxu0 0.0
    %1262 = vmatpush1.msra.mxu0 0.0
    %1263 = vmatprep.subr.mxu0 0.0
    %1264 = vmatpush1.msra.mxu0 0.0
    %1265 = vmatprep.subr.mxu0 0.0
    %1266 = vmatpush1.msra.mxu0 0.0
    %1267 = vmatprep.subr.mxu0 0.0
    %1268 = vmatpush1.msra.mxu0 0.0
    %1269 = vmatprep.subr.mxu0 0.0
    %1270 = vmatpush1.msra.mxu0 0.0
    %1271 = vmatprep.subr.mxu0 0.0
    %1272 = vmatpush1.msra.mxu0 0.0
    %1273 = vmatprep.subr.mxu0 0.0
    %1274 = vmatpush1.msra.mxu0 0.0
    %1275 = vmatprep.subr.mxu0 0.0
    %1276 = vmatpush1.msra.mxu0 0.0
    %1277 = vmatprep.subr.mxu0 0.0
    %1278 = vmatpush1.msra.mxu0 0.0
    %1279 = vmatprep.subr.mxu0 0.0
    %1280 = vmatpush1.msra.mxu0 0.0
    %1281 = vmatprep.subr.mxu0 0.0
    %1282 = vmatpush1.msra.mxu0 0.0
    %1283 = vmatprep.subr.mxu0 0.0
    %1284 = vmatpush1.msra.mxu0 0.0
    %1285 = vmatprep.subr.mxu0 0.0
    %1286 = vmatpush1.msra.mxu0 0.0
    %1287 = vmatprep.subr.mxu0 0.0
    %1288 = vmatpush1.msra.mxu0 0.0
    %1289 = vmatprep.subr.mxu0 0.0
    %1290 = vmatpush1.msra.mxu0 0.0
    %1291 = vmatprep.mubr.f32.mxu0 0.0
    %1292 = vmatmul.mubr.f32.gmra.mrb[0].mxu0 %v1225
    %v1293 = vpop.f32.mrb[0].mxu0
    %v1294 = vadd.f32 0.0, %v1293
    %v1295 = vpop.f32.mrb[0].mxu0
    %1296 = vdwg.mxu0
    %v1297 = vadd.f32 %v1218, %v1294
    %v1298 = vxor.u32 %v1297, 2147483648
    %v1299 = vmul.f32 %v1298, 1.442695
    %v1300 = vpow.pop %v1299
    %v1301 = vadd.f32 %v1300, 1.0
    %v1302 = vrcp.pop %v1301
    %v1303 = vmul.f32 1.0, %v1302
    %v1304 = vtanh.pop %v1297
    %v1305 = vld [vmem:[#allocation5] sm:$0x3]
    %1307 = vrot.lane.b32.xlu0 %v1305, 32
    %v1308 = vpop.permute.xlu0 %1307
    %v1310 = vmul.f32 %v1303, %v1308
    %1312 = vrot.lane.b32.xlu0 %v1304, 64
    %v1313 = vpop.permute.xlu0 %1312
    %v1315 = vmul.f32 %v1303, %v1313
    %1317 = vrot.lane.b32.xlu0 %v1315, 32
    %v1318 = vpop.permute.xlu0 %1317
    %v1320 = vadd.f32 %v1310, %v1318
    %v1321 = vtanh.pop %v1320
    %1323 = vrot.lane.b32.xlu0 %v1321, 64
    %v1324 = vpop.permute.xlu0 %1323
    %v1326 = vmul.f32 %v1303, %v1324
    %1328 = vrot.lane.b32.xlu0 %v1320, 96
    %v1329 = vpop.permute.xlu0 %1328
    %1331 = vst.msk [vmem:[#allocation5] sm:$0x3] %vm156, %v1329
    %1333 = vrot.lane.b32.xlu0 %v1326, 32
    %v1334 = vpop.permute.xlu0 %1333
    %1336 = vst.msk [vmem:[#allocation4] sm:$0x3] %vm156, %v1334
    %v1337 = vld [vmem:[#allocation3 + $0x2] sm:$0x3]
    %v1338 = vld [vmem:[#allocation4] sm:$0x3]
    %v1339 = vld [vmem:[#allocation9] sm:$0xff]
    %v1340 = vld [vmem:[#allocation9 + $0x8] sm:$0xff]
    %v1341 = vld [vmem:[#allocation9 + $0x10] sm:$0xff]
    %v1342 = vld [vmem:[#allocation9 + $0x18] sm:$0xff]
    %v1344 = vsel %vm165, %v1338, 0
    %1346 = vmatprep.subr.mxu0 0.0
    %1347 = vmatpush1.msra.mxu0 %v1339
    %1348 = vmatprep.subr.mxu0 0.0
    %1349 = vmatpush1.msra.mxu0 %v1340
    %1350 = vmatprep.subr.mxu0 0.0
    %1351 = vmatpush1.msra.mxu0 %v1341
    %1352 = vmatprep.subr.mxu0 0.0
    %1353 = vmatpush1.msra.mxu0 %v1342
    %1354 = vmatprep.subr.mxu0 0.0
    %1355 = vmatpush1.msra.mxu0 0.0
    %1356 = vmatprep.subr.mxu0 0.0
    %1357 = vmatpush1.msra.mxu0 0.0
    %1358 = vmatprep.subr.mxu0 0.0
    %1359 = vmatpush1.msra.mxu0 0.0
    %1360 = vmatprep.subr.mxu0 0.0
    %1361 = vmatpush1.msra.mxu0 0.0
    %1362 = vmatprep.subr.mxu0 0.0
    %1363 = vmatpush1.msra.mxu0 0.0
    %1364 = vmatprep.subr.mxu0 0.0
    %1365 = vmatpush1.msra.mxu0 0.0
    %1366 = vmatprep.subr.mxu0 0.0
    %1367 = vmatpush1.msra.mxu0 0.0
    %1368 = vmatprep.subr.mxu0 0.0
    %1369 = vmatpush1.msra.mxu0 0.0
    %1370 = vmatprep.subr.mxu0 0.0
    %1371 = vmatpush1.msra.mxu0 0.0
    %1372 = vmatprep.subr.mxu0 0.0
    %1373 = vmatpush1.msra.mxu0 0.0
    %1374 = vmatprep.subr.mxu0 0.0
    %1375 = vmatpush1.msra.mxu0 0.0
    %1376 = vmatprep.subr.mxu0 0.0
    %1377 = vmatpush1.msra.mxu0 0.0
    %1378 = vmatprep.subr.mxu0 0.0
    %1379 = vmatpush1.msra.mxu0 0.0
    %1380 = vmatprep.subr.mxu0 0.0
    %1381 = vmatpush1.msra.mxu0 0.0
    %1382 = vmatprep.subr.mxu0 0.0
    %1383 = vmatpush1.msra.mxu0 0.0
    %1384 = vmatprep.subr.mxu0 0.0
    %1385 = vmatpush1.msra.mxu0 0.0
    %1386 = vmatprep.subr.mxu0 0.0
    %1387 = vmatpush1.msra.mxu0 0.0
    %1388 = vmatprep.subr.mxu0 0.0
    %1389 = vmatpush1.msra.mxu0 0.0
    %1390 = vmatprep.subr.mxu0 0.0
    %1391 = vmatpush1.msra.mxu0 0.0
    %1392 = vmatprep.subr.mxu0 0.0
    %1393 = vmatpush1.msra.mxu0 0.0
    %1394 = vmatprep.subr.mxu0 0.0
    %1395 = vmatpush1.msra.mxu0 0.0
    %1396 = vmatprep.subr.mxu0 0.0
    %1397 = vmatpush1.msra.mxu0 0.0
    %1398 = vmatprep.subr.mxu0 0.0
    %1399 = vmatpush1.msra.mxu0 0.0
    %1400 = vmatprep.subr.mxu0 0.0
    %1401 = vmatpush1.msra.mxu0 0.0
    %1402 = vmatprep.subr.mxu0 0.0
    %1403 = vmatpush1.msra.mxu0 0.0
    %1404 = vmatprep.subr.mxu0 0.0
    %1405 = vmatpush1.msra.mxu0 0.0
    %1406 = vmatprep.subr.mxu0 0.0
    %1407 = vmatpush1.msra.mxu0 0.0
    %1408 = vmatprep.subr.mxu0 0.0
    %1409 = vmatpush1.msra.mxu0 0.0
    %1410 = vmatprep.mubr.f32.mxu0 0.0
    %1411 = vmatmul.mubr.f32.gmra.mrb[0].mxu0 %v1344
    %v1412 = vpop.f32.mrb[0].mxu0
    %v1413 = vadd.f32 0.0, %v1412
    %v1414 = vpop.f32.mrb[0].mxu0
    %1415 = vdwg.mxu0
    %v1416 = vadd.f32 %v1337, %v1413
    %v1417 = vxor.u32 %v1416, 2147483648
    %v1418 = vmul.f32 %v1417, 1.442695
    %v1419 = vpow.pop %v1418
    %v1420 = vadd.f32 %v1419, 1.0
    %v1421 = vrcp.pop %v1420
    %v1422 = vmul.f32 1.0, %v1421
    %v1423 = vtanh.pop %v1416
    %v1424 = vld [vmem:[#allocation5] sm:$0x3]
    %1426 = vrot.lane.b32.xlu0 %v1424, 32
    %v1427 = vpop.permute.xlu0 %1426
    %v1429 = vmul.f32 %v1422, %v1427
    %1431 = vrot.lane.b32.xlu0 %v1423, 64
    %v1432 = vpop.permute.xlu0 %1431
    %v1434 = vmul.f32 %v1422, %v1432
    %1436 = vrot.lane.b32.xlu0 %v1434, 32
    %v1437 = vpop.permute.xlu0 %1436
    %v1439 = vadd.f32 %v1429, %v1437
    %v1440 = vtanh.pop %v1439
    %1442 = vrot.lane.b32.xlu0 %v1440, 64
    %v1443 = vpop.permute.xlu0 %1442
    %v1445 = vmul.f32 %v1422, %v1443
    %1447 = vrot.lane.b32.xlu0 %v1439, 96
    %v1448 = vpop.permute.xlu0 %1447
    %1450 = vst.msk [vmem:[#allocation5] sm:$0x3] %vm156, %v1448
    %1452 = vrot.lane.b32.xlu0 %v1445, 32
    %v1453 = vpop.permute.xlu0 %1452
    %1455 = vst.msk [vmem:[#allocation4] sm:$0x3] %vm156, %v1453
    %v1456 = vld [vmem:[#allocation3 + $0x4] sm:$0x3]
    %v1457 = vld [vmem:[#allocation4] sm:$0x3]
    %v1458 = vld [vmem:[#allocation9] sm:$0xff]
    %v1459 = vld [vmem:[#allocation9 + $0x8] sm:$0xff]
    %v1460 = vld [vmem:[#allocation9 + $0x10] sm:$0xff]
    %v1461 = vld [vmem:[#allocation9 + $0x18] sm:$0xff]
    %v1463 = vsel %vm165, %v1457, 0
    %1465 = vmatprep.subr.mxu0 0.0
    %1466 = vmatpush1.msra.mxu0 %v1458
    %1467 = vmatprep.subr.mxu0 0.0
    %1468 = vmatpush1.msra.mxu0 %v1459
    %1469 = vmatprep.subr.mxu0 0.0
    %1470 = vmatpush1.msra.mxu0 %v1460
    %1471 = vmatprep.subr.mxu0 0.0
    %1472 = vmatpush1.msra.mxu0 %v1461
    %1473 = vmatprep.subr.mxu0 0.0
    %1474 = vmatpush1.msra.mxu0 0.0
    %1475 = vmatprep.subr.mxu0 0.0
    %1476 = vmatpush1.msra.mxu0 0.0
    %1477 = vmatprep.subr.mxu0 0.0
    %1478 = vmatpush1.msra.mxu0 0.0
    %1479 = vmatprep.subr.mxu0 0.0
    %1480 = vmatpush1.msra.mxu0 0.0
    %1481 = vmatprep.subr.mxu0 0.0
    %1482 = vmatpush1.msra.mxu0 0.0
    %1483 = vmatprep.subr.mxu0 0.0
    %1484 = vmatpush1.msra.mxu0 0.0
    %1485 = vmatprep.subr.mxu0 0.0
    %1486 = vmatpush1.msra.mxu0 0.0
    %1487 = vmatprep.subr.mxu0 0.0
    %1488 = vmatpush1.msra.mxu0 0.0
    %1489 = vmatprep.subr.mxu0 0.0
    %1490 = vmatpush1.msra.mxu0 0.0
    %1491 = vmatprep.subr.mxu0 0.0
    %1492 = vmatpush1.msra.mxu0 0.0
    %1493 = vmatprep.subr.mxu0 0.0
    %1494 = vmatpush1.msra.mxu0 0.0
    %1495 = vmatprep.subr.mxu0 0.0
    %1496 = vmatpush1.msra.mxu0 0.0
    %1497 = vmatprep.subr.mxu0 0.0
    %1498 = vmatpush1.msra.mxu0 0.0
    %1499 = vmatprep.subr.mxu0 0.0
    %1500 = vmatpush1.msra.mxu0 0.0
    %1501 = vmatprep.subr.mxu0 0.0
    %1502 = vmatpush1.msra.mxu0 0.0
    %1503 = vmatprep.subr.mxu0 0.0
    %1504 = vmatpush1.msra.mxu0 0.0
    %1505 = vmatprep.subr.mxu0 0.0
    %1506 = vmatpush1.msra.mxu0 0.0
    %1507 = vmatprep.subr.mxu0 0.0
    %1508 = vmatpush1.msra.mxu0 0.0
    %1509 = vmatprep.subr.mxu0 0.0
    %1510 = vmatpush1.msra.mxu0 0.0
    %1511 = vmatprep.subr.mxu0 0.0
    %1512 = vmatpush1.msra.mxu0 0.0
    %1513 = vmatprep.subr.mxu0 0.0
    %1514 = vmatpush1.msra.mxu0 0.0
    %1515 = vmatprep.subr.mxu0 0.0
    %1516 = vmatpush1.msra.mxu0 0.0
    %1517 = vmatprep.subr.mxu0 0.0
    %1518 = vmatpush1.msra.mxu0 0.0
    %1519 = vmatprep.subr.mxu0 0.0
    %1520 = vmatpush1.msra.mxu0 0.0
    %1521 = vmatprep.subr.mxu0 0.0
    %1522 = vmatpush1.msra.mxu0 0.0
    %1523 = vmatprep.subr.mxu0 0.0
    %1524 = vmatpush1.msra.mxu0 0.0
    %1525 = vmatprep.subr.mxu0 0.0
    %1526 = vmatpush1.msra.mxu0 0.0
    %1527 = vmatprep.subr.mxu0 0.0
    %1528 = vmatpush1.msra.mxu0 0.0
    %1529 = vmatprep.mubr.f32.mxu0 0.0
    %1530 = vmatmul.mubr.f32.gmra.mrb[0].mxu0 %v1463
    %v1531 = vpop.f32.mrb[0].mxu0
    %v1532 = vadd.f32 0.0, %v1531
    %v1533 = vpop.f32.mrb[0].mxu0
    %1534 = vdwg.mxu0
    %v1535 = vadd.f32 %v1456, %v1532
    %v1536 = vxor.u32 %v1535, 2147483648
    %v1537 = vmul.f32 %v1536, 1.442695
    %v1538 = vpow.pop %v1537
    %v1539 = vadd.f32 %v1538, 1.0
    %v1540 = vrcp.pop %v1539
    %v1541 = vmul.f32 1.0, %v1540
    %v1542 = vtanh.pop %v1535
    %v1543 = vld [vmem:[#allocation5] sm:$0x3]
    %1545 = vrot.lane.b32.xlu0 %v1543, 32
    %v1546 = vpop.permute.xlu0 %1545
    %v1548 = vmul.f32 %v1541, %v1546
    %1550 = vrot.lane.b32.xlu0 %v1542, 64
    %v1551 = vpop.permute.xlu0 %1550
    %v1553 = vmul.f32 %v1541, %v1551
    %1555 = vrot.lane.b32.xlu0 %v1553, 32
    %v1556 = vpop.permute.xlu0 %1555
    %v1558 = vadd.f32 %v1548, %v1556
    %v1559 = vtanh.pop %v1558
    %1561 = vrot.lane.b32.xlu0 %v1559, 64
    %v1562 = vpop.permute.xlu0 %1561
    %v1564 = vmul.f32 %v1541, %v1562
    %1566 = vrot.lane.b32.xlu0 %v1558, 96
    %v1567 = vpop.permute.xlu0 %1566
    %1569 = vst.msk [vmem:[#allocation5] sm:$0x3] %vm156, %v1567
    %1571 = vrot.lane.b32.xlu0 %v1564, 32
    %v1572 = vpop.permute.xlu0 %1571
    %1574 = vst.msk [vmem:[#allocation4] sm:$0x3] %vm156, %v1572
    %v1575 = vld [vmem:[#allocation3 + $0x6] sm:$0x3]
    %v1576 = vld [vmem:[#allocation4] sm:$0x3]
    %v1577 = vld [vmem:[#allocation9] sm:$0xff]
    %v1578 = vld [vmem:[#allocation9 + $0x8] sm:$0xff]
    %v1579 = vld [vmem:[#allocation9 + $0x10] sm:$0xff]
    %v1580 = vld [vmem:[#allocation9 + $0x18] sm:$0xff]
    %v1582 = vsel %vm165, %v1576, 0
    %1584 = vmatprep.subr.mxu0 0.0
    %1585 = vmatpush1.msra.mxu0 %v1577
    %1586 = vmatprep.subr.mxu0 0.0
    %1587 = vmatpush1.msra.mxu0 %v1578
    %1588 = vmatprep.subr.mxu0 0.0
    %1589 = vmatpush1.msra.mxu0 %v1579
    %1590 = vmatprep.subr.mxu0 0.0
    %1591 = vmatpush1.msra.mxu0 %v1580
    %1592 = vmatprep.subr.mxu0 0.0
    %1593 = vmatpush1.msra.mxu0 0.0
    %1594 = vmatprep.subr.mxu0 0.0
    %1595 = vmatpush1.msra.mxu0 0.0
    %1596 = vmatprep.subr.mxu0 0.0
    %1597 = vmatpush1.msra.mxu0 0.0
    %1598 = vmatprep.subr.mxu0 0.0
    %1599 = vmatpush1.msra.mxu0 0.0
    %1600 = vmatprep.subr.mxu0 0.0
    %1601 = vmatpush1.msra.mxu0 0.0
    %1602 = vmatprep.subr.mxu0 0.0
    %1603 = vmatpush1.msra.mxu0 0.0
    %1604 = vmatprep.subr.mxu0 0.0
    %1605 = vmatpush1.msra.mxu0 0.0
    %1606 = vmatprep.subr.mxu0 0.0
    %1607 = vmatpush1.msra.mxu0 0.0
    %1608 = vmatprep.subr.mxu0 0.0
    %1609 = vmatpush1.msra.mxu0 0.0
    %1610 = vmatprep.subr.mxu0 0.0
    %1611 = vmatpush1.msra.mxu0 0.0
    %1612 = vmatprep.subr.mxu0 0.0
    %1613 = vmatpush1.msra.mxu0 0.0
    %1614 = vmatprep.subr.mxu0 0.0
    %1615 = vmatpush1.msra.mxu0 0.0
    %1616 = vmatprep.subr.mxu0 0.0
    %1617 = vmatpush1.msra.mxu0 0.0
    %1618 = vmatprep.subr.mxu0 0.0
    %1619 = vmatpush1.msra.mxu0 0.0
    %1620 = vmatprep.subr.mxu0 0.0
    %1621 = vmatpush1.msra.mxu0 0.0
    %1622 = vmatprep.subr.mxu0 0.0
    %1623 = vmatpush1.msra.mxu0 0.0
    %1624 = vmatprep.subr.mxu0 0.0
    %1625 = vmatpush1.msra.mxu0 0.0
    %1626 = vmatprep.subr.mxu0 0.0
    %1627 = vmatpush1.msra.mxu0 0.0
    %1628 = vmatprep.subr.mxu0 0.0
    %1629 = vmatpush1.msra.mxu0 0.0
    %1630 = vmatprep.subr.mxu0 0.0
    %1631 = vmatpush1.msra.mxu0 0.0
    %1632 = vmatprep.subr.mxu0 0.0
    %1633 = vmatpush1.msra.mxu0 0.0
    %1634 = vmatprep.subr.mxu0 0.0
    %1635 = vmatpush1.msra.mxu0 0.0
    %1636 = vmatprep.subr.mxu0 0.0
    %1637 = vmatpush1.msra.mxu0 0.0
    %1638 = vmatprep.subr.mxu0 0.0
    %1639 = vmatpush1.msra.mxu0 0.0
    %1640 = vmatprep.subr.mxu0 0.0
    %1641 = vmatpush1.msra.mxu0 0.0
    %1642 = vmatprep.subr.mxu0 0.0
    %1643 = vmatpush1.msra.mxu0 0.0
    %1644 = vmatprep.subr.mxu0 0.0
    %1645 = vmatpush1.msra.mxu0 0.0
    %1646 = vmatprep.subr.mxu0 0.0
    %1647 = vmatpush1.msra.mxu0 0.0
    %1648 = vmatprep.mubr.f32.mxu0 0.0
    %1649 = vmatmul.mubr.f32.gmra.mrb[0].mxu0 %v1582
    %v1650 = vpop.f32.mrb[0].mxu0
    %v1651 = vadd.f32 0.0, %v1650
    %v1652 = vpop.f32.mrb[0].mxu0
    %1653 = vdwg.mxu0
    %v1654 = vadd.f32 %v1575, %v1651
    %v1655 = vxor.u32 %v1654, 2147483648
    %v1656 = vmul.f32 %v1655, 1.442695
    %v1657 = vpow.pop %v1656
    %v1658 = vadd.f32 %v1657, 1.0
    %v1659 = vrcp.pop %v1658
    %v1660 = vmul.f32 1.0, %v1659
    %v1661 = vtanh.pop %v1654
    %v1662 = vld [vmem:[#allocation5] sm:$0x3]
    %1664 = vrot.lane.b32.xlu0 %v1662, 32
    %v1665 = vpop.permute.xlu0 %1664
    %v1667 = vmul.f32 %v1660, %v1665
    %1669 = vrot.lane.b32.xlu0 %v1661, 64
    %v1670 = vpop.permute.xlu0 %1669
    %v1672 = vmul.f32 %v1660, %v1670
    %1674 = vrot.lane.b32.xlu0 %v1672, 32
    %v1675 = vpop.permute.xlu0 %1674
    %v1677 = vadd.f32 %v1667, %v1675
    %v1678 = vtanh.pop %v1677
    %1680 = vrot.lane.b32.xlu0 %v1678, 64
    %v1681 = vpop.permute.xlu0 %1680
    %v1683 = vmul.f32 %v1660, %v1681
    %1685 = vrot.lane.b32.xlu0 %v1677, 96
    %v1686 = vpop.permute.xlu0 %1685
    %1688 = vst.msk [vmem:[#allocation5] sm:$0x3] %vm156, %v1686
    %1690 = vrot.lane.b32.xlu0 %v1683, 32
    %v1691 = vpop.permute.xlu0 %1690
    %1693 = vst.msk [vmem:[#allocation4] sm:$0x3] %vm156, %v1691
    %v1694 = vld [vmem:[#allocation3 + $0x8] sm:$0x3]
    %v1695 = vld [vmem:[#allocation4] sm:$0x3]
    %v1696 = vld [vmem:[#allocation9] sm:$0xff]
    %v1697 = vld [vmem:[#allocation9 + $0x8] sm:$0xff]
    %v1698 = vld [vmem:[#allocation9 + $0x10] sm:$0xff]
    %v1699 = vld [vmem:[#allocation9 + $0x18] sm:$0xff]
    %v1701 = vsel %vm165, %v1695, 0
    %1703 = vmatprep.subr.mxu0 0.0
    %1704 = vmatpush1.msra.mxu0 %v1696
    %1705 = vmatprep.subr.mxu0 0.0
    %1706 = vmatpush1.msra.mxu0 %v1697
    %1707 = vmatprep.subr.mxu0 0.0
    %1708 = vmatpush1.msra.mxu0 %v1698
    %1709 = vmatprep.subr.mxu0 0.0
    %1710 = vmatpush1.msra.mxu0 %v1699
    %1711 = vmatprep.subr.mxu0 0.0
    %1712 = vmatpush1.msra.mxu0 0.0
    %1713 = vmatprep.subr.mxu0 0.0
    %1714 = vmatpush1.msra.mxu0 0.0
    %1715 = vmatprep.subr.mxu0 0.0
    %1716 = vmatpush1.msra.mxu0 0.0
    %1717 = vmatprep.subr.mxu0 0.0
    %1718 = vmatpush1.msra.mxu0 0.0
    %1719 = vmatprep.subr.mxu0 0.0
    %1720 = vmatpush1.msra.mxu0 0.0
    %1721 = vmatprep.subr.mxu0 0.0
    %1722 = vmatpush1.msra.mxu0 0.0
    %1723 = vmatprep.subr.mxu0 0.0
    %1724 = vmatpush1.msra.mxu0 0.0
    %1725 = vmatprep.subr.mxu0 0.0
    %1726 = vmatpush1.msra.mxu0 0.0
    %1727 = vmatprep.subr.mxu0 0.0
    %1728 = vmatpush1.msra.mxu0 0.0
    %1729 = vmatprep.subr.mxu0 0.0
    %1730 = vmatpush1.msra.mxu0 0.0
    %1731 = vmatprep.subr.mxu0 0.0
    %1732 = vmatpush1.msra.mxu0 0.0
    %1733 = vmatprep.subr.mxu0 0.0
    %1734 = vmatpush1.msra.mxu0 0.0
    %1735 = vmatprep.subr.mxu0 0.0
    %1736 = vmatpush1.msra.mxu0 0.0
    %1737 = vmatprep.subr.mxu0 0.0
    %1738 = vmatpush1.msra.mxu0 0.0
    %1739 = vmatprep.subr.mxu0 0.0
    %1740 = vmatpush1.msra.mxu0 0.0
    %1741 = vmatprep.subr.mxu0 0.0
    %1742 = vmatpush1.msra.mxu0 0.0
    %1743 = vmatprep.subr.mxu0 0.0
    %1744 = vmatpush1.msra.mxu0 0.0
    %1745 = vmatprep.subr.mxu0 0.0
    %1746 = vmatpush1.msra.mxu0 0.0
    %1747 = vmatprep.subr.mxu0 0.0
    %1748 = vmatpush1.msra.mxu0 0.0
    %1749 = vmatprep.subr.mxu0 0.0
    %1750 = vmatpush1.msra.mxu0 0.0
    %1751 = vmatprep.subr.mxu0 0.0
    %1752 = vmatpush1.msra.mxu0 0.0
    %1753 = vmatprep.subr.mxu0 0.0
    %1754 = vmatpush1.msra.mxu0 0.0
    %1755 = vmatprep.subr.mxu0 0.0
    %1756 = vmatpush1.msra.mxu0 0.0
    %1757 = vmatprep.subr.mxu0 0.0
    %1758 = vmatpush1.msra.mxu0 0.0
    %1759 = vmatprep.subr.mxu0 0.0
    %1760 = vmatpush1.msra.mxu0 0.0
    %1761 = vmatprep.subr.mxu0 0.0
    %1762 = vmatpush1.msra.mxu0 0.0
    %1763 = vmatprep.subr.mxu0 0.0
    %1764 = vmatpush1.msra.mxu0 0.0
    %1765 = vmatprep.subr.mxu0 0.0
    %1766 = vmatpush1.msra.mxu0 0.0
    %1767 = vmatprep.mubr.f32.mxu0 0.0
    %1768 = vmatmul.mubr.f32.gmra.mrb[0].mxu0 %v1701
    %v1769 = vpop.f32.mrb[0].mxu0
    %v1770 = vadd.f32 0.0, %v1769
    %v1771 = vpop.f32.mrb[0].mxu0
    %1772 = vdwg.mxu0
    %v1773 = vadd.f32 %v1694, %v1770
    %v1774 = vxor.u32 %v1773, 2147483648
    %v1775 = vmul.f32 %v1774, 1.442695
    %v1776 = vpow.pop %v1775
    %v1777 = vadd.f32 %v1776, 1.0
    %v1778 = vrcp.pop %v1777
    %v1779 = vmul.f32 1.0, %v1778
    %v1780 = vtanh.pop %v1773
    %v1781 = vld [vmem:[#allocation5] sm:$0x3]
    %1783 = vrot.lane.b32.xlu0 %v1781, 32
    %v1784 = vpop.permute.xlu0 %1783
    %v1786 = vmul.f32 %v1779, %v1784
    %1788 = vrot.lane.b32.xlu0 %v1780, 64
    %v1789 = vpop.permute.xlu0 %1788
    %v1791 = vmul.f32 %v1779, %v1789
    %1793 = vrot.lane.b32.xlu0 %v1791, 32
    %v1794 = vpop.permute.xlu0 %1793
    %v1796 = vadd.f32 %v1786, %v1794
    %v1797 = vtanh.pop %v1796
    %1799 = vrot.lane.b32.xlu0 %v1797, 64
    %v1800 = vpop.permute.xlu0 %1799
    %v1802 = vmul.f32 %v1779, %v1800
    %1804 = vrot.lane.b32.xlu0 %v1796, 96
    %v1805 = vpop.permute.xlu0 %1804
    %1807 = vst.msk [vmem:[#allocation5] sm:$0x3] %vm156, %v1805
    %1809 = vrot.lane.b32.xlu0 %v1802, 32
    %v1810 = vpop.permute.xlu0 %1809
    %1812 = vst.msk [vmem:[#allocation4] sm:$0x3] %vm156, %v1810
    %v1813 = vld [vmem:[#allocation3 + $0xa] sm:$0x3]
    %v1814 = vld [vmem:[#allocation4] sm:$0x3]
    %v1815 = vld [vmem:[#allocation9] sm:$0xff]
    %v1816 = vld [vmem:[#allocation9 + $0x8] sm:$0xff]
    %v1817 = vld [vmem:[#allocation9 + $0x10] sm:$0xff]
    %v1818 = vld [vmem:[#allocation9 + $0x18] sm:$0xff]
    %v1820 = vsel %vm165, %v1814, 0
    %1822 = vmatprep.subr.mxu0 0.0
    %1823 = vmatpush1.msra.mxu0 %v1815
    %1824 = vmatprep.subr.mxu0 0.0
    %1825 = vmatpush1.msra.mxu0 %v1816
    %1826 = vmatprep.subr.mxu0 0.0
    %1827 = vmatpush1.msra.mxu0 %v1817
    %1828 = vmatprep.subr.mxu0 0.0
    %1829 = vmatpush1.msra.mxu0 %v1818
    %1830 = vmatprep.subr.mxu0 0.0
    %1831 = vmatpush1.msra.mxu0 0.0
    %1832 = vmatprep.subr.mxu0 0.0
    %1833 = vmatpush1.msra.mxu0 0.0
    %1834 = vmatprep.subr.mxu0 0.0
    %1835 = vmatpush1.msra.mxu0 0.0
    %1836 = vmatprep.subr.mxu0 0.0
    %1837 = vmatpush1.msra.mxu0 0.0
    %1838 = vmatprep.subr.mxu0 0.0
    %1839 = vmatpush1.msra.mxu0 0.0
    %1840 = vmatprep.subr.mxu0 0.0
    %1841 = vmatpush1.msra.mxu0 0.0
    %1842 = vmatprep.subr.mxu0 0.0
    %1843 = vmatpush1.msra.mxu0 0.0
    %1844 = vmatprep.subr.mxu0 0.0
    %1845 = vmatpush1.msra.mxu0 0.0
    %1846 = vmatprep.subr.mxu0 0.0
    %1847 = vmatpush1.msra.mxu0 0.0
    %1848 = vmatprep.subr.mxu0 0.0
    %1849 = vmatpush1.msra.mxu0 0.0
    %1850 = vmatprep.subr.mxu0 0.0
    %1851 = vmatpush1.msra.mxu0 0.0
    %1852 = vmatprep.subr.mxu0 0.0
    %1853 = vmatpush1.msra.mxu0 0.0
    %1854 = vmatprep.subr.mxu0 0.0
    %1855 = vmatpush1.msra.mxu0 0.0
    %1856 = vmatprep.subr.mxu0 0.0
    %1857 = vmatpush1.msra.mxu0 0.0
    %1858 = vmatprep.subr.mxu0 0.0
    %1859 = vmatpush1.msra.mxu0 0.0
    %1860 = vmatprep.subr.mxu0 0.0
    %1861 = vmatpush1.msra.mxu0 0.0
    %1862 = vmatprep.subr.mxu0 0.0
    %1863 = vmatpush1.msra.mxu0 0.0
    %1864 = vmatprep.subr.mxu0 0.0
    %1865 = vmatpush1.msra.mxu0 0.0
    %1866 = vmatprep.subr.mxu0 0.0
    %1867 = vmatpush1.msra.mxu0 0.0
    %1868 = vmatprep.subr.mxu0 0.0
    %1869 = vmatpush1.msra.mxu0 0.0
    %1870 = vmatprep.subr.mxu0 0.0
    %1871 = vmatpush1.msra.mxu0 0.0
    %1872 = vmatprep.subr.mxu0 0.0
    %1873 = vmatpush1.msra.mxu0 0.0
    %1874 = vmatprep.subr.mxu0 0.0
    %1875 = vmatpush1.msra.mxu0 0.0
    %1876 = vmatprep.subr.mxu0 0.0
    %1877 = vmatpush1.msra.mxu0 0.0
    %1878 = vmatprep.subr.mxu0 0.0
    %1879 = vmatpush1.msra.mxu0 0.0
    %1880 = vmatprep.subr.mxu0 0.0
    %1881 = vmatpush1.msra.mxu0 0.0
    %1882 = vmatprep.subr.mxu0 0.0
    %1883 = vmatpush1.msra.mxu0 0.0
    %1884 = vmatprep.subr.mxu0 0.0
    %1885 = vmatpush1.msra.mxu0 0.0
    %1886 = vmatprep.mubr.f32.mxu0 0.0
    %1887 = vmatmul.mubr.f32.gmra.mrb[0].mxu0 %v1820
    %v1888 = vpop.f32.mrb[0].mxu0
    %v1889 = vadd.f32 0.0, %v1888
    %v1890 = vpop.f32.mrb[0].mxu0
    %1891 = vdwg.mxu0
    %v1892 = vadd.f32 %v1813, %v1889
    %v1893 = vxor.u32 %v1892, 2147483648
    %v1894 = vmul.f32 %v1893, 1.442695
    %v1895 = vpow.pop %v1894
    %v1896 = vadd.f32 %v1895, 1.0
    %v1897 = vrcp.pop %v1896
    %v1898 = vmul.f32 1.0, %v1897
    %v1899 = vtanh.pop %v1892
    %v1900 = vld [vmem:[#allocation5] sm:$0x3]
    %1902 = vrot.lane.b32.xlu0 %v1900, 32
    %v1903 = vpop.permute.xlu0 %1902
    %v1905 = vmul.f32 %v1898, %v1903
    %1907 = vrot.lane.b32.xlu0 %v1899, 64
    %v1908 = vpop.permute.xlu0 %1907
    %v1910 = vmul.f32 %v1898, %v1908
    %1912 = vrot.lane.b32.xlu0 %v1910, 32
    %v1913 = vpop.permute.xlu0 %1912
    %v1915 = vadd.f32 %v1905, %v1913
    %v1916 = vtanh.pop %v1915
    %1918 = vrot.lane.b32.xlu0 %v1916, 64
    %v1919 = vpop.permute.xlu0 %1918
    %v1921 = vmul.f32 %v1898, %v1919
    %1923 = vrot.lane.b32.xlu0 %v1915, 96
    %v1924 = vpop.permute.xlu0 %1923
    %1926 = vst.msk [vmem:[#allocation5] sm:$0x3] %vm156, %v1924
    %1928 = vrot.lane.b32.xlu0 %v1921, 32
    %v1929 = vpop.permute.xlu0 %1928
    %1931 = vst.msk [vmem:[#allocation4] sm:$0x3] %vm156, %v1929
    %v1932 = vld [vmem:[#allocation3 + $0xc] sm:$0x3]
    %v1933 = vld [vmem:[#allocation4] sm:$0x3]
    %v1934 = vld [vmem:[#allocation9] sm:$0xff]
    %v1935 = vld [vmem:[#allocation9 + $0x8] sm:$0xff]
    %v1936 = vld [vmem:[#allocation9 + $0x10] sm:$0xff]
    %v1937 = vld [vmem:[#allocation9 + $0x18] sm:$0xff]
    %v1939 = vsel %vm165, %v1933, 0
    %1941 = vmatprep.subr.mxu0 0.0
    %1942 = vmatpush1.msra.mxu0 %v1934
    %1943 = vmatprep.subr.mxu0 0.0
    %1944 = vmatpush1.msra.mxu0 %v1935
    %1945 = vmatprep.subr.mxu0 0.0
    %1946 = vmatpush1.msra.mxu0 %v1936
    %1947 = vmatprep.subr.mxu0 0.0
    %1948 = vmatpush1.msra.mxu0 %v1937
    %1949 = vmatprep.subr.mxu0 0.0
    %1950 = vmatpush1.msra.mxu0 0.0
    %1951 = vmatprep.subr.mxu0 0.0
    %1952 = vmatpush1.msra.mxu0 0.0
    %1953 = vmatprep.subr.mxu0 0.0
    %1954 = vmatpush1.msra.mxu0 0.0
    %1955 = vmatprep.subr.mxu0 0.0
    %1956 = vmatpush1.msra.mxu0 0.0
    %1957 = vmatprep.subr.mxu0 0.0
    %1958 = vmatpush1.msra.mxu0 0.0
    %1959 = vmatprep.subr.mxu0 0.0
    %1960 = vmatpush1.msra.mxu0 0.0
    %1961 = vmatprep.subr.mxu0 0.0
    %1962 = vmatpush1.msra.mxu0 0.0
    %1963 = vmatprep.subr.mxu0 0.0
    %1964 = vmatpush1.msra.mxu0 0.0
    %1965 = vmatprep.subr.mxu0 0.0
    %1966 = vmatpush1.msra.mxu0 0.0
    %1967 = vmatprep.subr.mxu0 0.0
    %1968 = vmatpush1.msra.mxu0 0.0
    %1969 = vmatprep.subr.mxu0 0.0
    %1970 = vmatpush1.msra.mxu0 0.0
    %1971 = vmatprep.subr.mxu0 0.0
    %1972 = vmatpush1.msra.mxu0 0.0
    %1973 = vmatprep.subr.mxu0 0.0
    %1974 = vmatpush1.msra.mxu0 0.0
    %1975 = vmatprep.subr.mxu0 0.0
    %1976 = vmatpush1.msra.mxu0 0.0
    %1977 = vmatprep.subr.mxu0 0.0
    %1978 = vmatpush1.msra.mxu0 0.0
    %1979 = vmatprep.subr.mxu0 0.0
    %1980 = vmatpush1.msra.mxu0 0.0
    %1981 = vmatprep.subr.mxu0 0.0
    %1982 = vmatpush1.msra.mxu0 0.0
    %1983 = vmatprep.subr.mxu0 0.0
    %1984 = vmatpush1.msra.mxu0 0.0
    %1985 = vmatprep.subr.mxu0 0.0
    %1986 = vmatpush1.msra.mxu0 0.0
    %1987 = vmatprep.subr.mxu0 0.0
    %1988 = vmatpush1.msra.mxu0 0.0
    %1989 = vmatprep.subr.mxu0 0.0
    %1990 = vmatpush1.msra.mxu0 0.0
    %1991 = vmatprep.subr.mxu0 0.0
    %1992 = vmatpush1.msra.mxu0 0.0
    %1993 = vmatprep.subr.mxu0 0.0
    %1994 = vmatpush1.msra.mxu0 0.0
    %1995 = vmatprep.subr.mxu0 0.0
    %1996 = vmatpush1.msra.mxu0 0.0
    %1997 = vmatprep.subr.mxu0 0.0
    %1998 = vmatpush1.msra.mxu0 0.0
    %1999 = vmatprep.subr.mxu0 0.0
    %2000 = vmatpush1.msra.mxu0 0.0
    %2001 = vmatprep.subr.mxu0 0.0
    %2002 = vmatpush1.msra.mxu0 0.0
    %2003 = vmatprep.subr.mxu0 0.0
    %2004 = vmatpush1.msra.mxu0 0.0
    %2005 = vmatprep.mubr.f32.mxu0 0.0
    %2006 = vmatmul.mubr.f32.gmra.mrb[0].mxu0 %v1939
    %v2007 = vpop.f32.mrb[0].mxu0
    %v2008 = vadd.f32 0.0, %v2007
    %v2009 = vpop.f32.mrb[0].mxu0
    %2010 = vdwg.mxu0
    %v2011 = vadd.f32 %v1932, %v2008
    %v2012 = vxor.u32 %v2011, 2147483648
    %v2013 = vmul.f32 %v2012, 1.442695
    %v2014 = vpow.pop %v2013
    %v2015 = vadd.f32 %v2014, 1.0
    %v2016 = vrcp.pop %v2015
    %v2017 = vmul.f32 1.0, %v2016
    %v2018 = vtanh.pop %v2011
    %v2019 = vld [vmem:[#allocation5] sm:$0x3]
    %2021 = vrot.lane.b32.xlu0 %v2019, 32
    %v2022 = vpop.permute.xlu0 %2021
    %v2024 = vmul.f32 %v2017, %v2022
    %2026 = vrot.lane.b32.xlu0 %v2018, 64
    %v2027 = vpop.permute.xlu0 %2026
    %v2029 = vmul.f32 %v2017, %v2027
    %2031 = vrot.lane.b32.xlu0 %v2029, 32
    %v2032 = vpop.permute.xlu0 %2031
    %v2034 = vadd.f32 %v2024, %v2032
    %v2035 = vtanh.pop %v2034
    %2037 = vrot.lane.b32.xlu0 %v2035, 64
    %v2038 = vpop.permute.xlu0 %2037
    %v2040 = vmul.f32 %v2017, %v2038
    %2042 = vrot.lane.b32.xlu0 %v2034, 96
    %v2043 = vpop.permute.xlu0 %2042
    %2045 = vst.msk [vmem:[#allocation5] sm:$0x3] %vm156, %v2043
    %2047 = vrot.lane.b32.xlu0 %v2040, 32
    %v2048 = vpop.permute.xlu0 %2047
    %2050 = vst.msk [vmem:[#allocation4] sm:$0x3] %vm156, %v2048
    %v2051 = vld [vmem:[#allocation3 + $0xe] sm:$0x3]
    %v2052 = vld [vmem:[#allocation4] sm:$0x3]
    %v2053 = vld [vmem:[#allocation9] sm:$0xff]
    %v2054 = vld [vmem:[#allocation9 + $0x8] sm:$0xff]
    %v2055 = vld [vmem:[#allocation9 + $0x10] sm:$0xff]
    %v2056 = vld [vmem:[#allocation9 + $0x18] sm:$0xff]
    %v2058 = vsel %vm165, %v2052, 0
    %2060 = vmatprep.subr.mxu0 0.0
    %2061 = vmatpush1.msra.mxu0 %v2053
    %2062 = vmatprep.subr.mxu0 0.0
    %2063 = vmatpush1.msra.mxu0 %v2054
    %2064 = vmatprep.subr.mxu0 0.0
    %2065 = vmatpush1.msra.mxu0 %v2055
    %2066 = vmatprep.subr.mxu0 0.0
    %2067 = vmatpush1.msra.mxu0 %v2056
    %2068 = vmatprep.subr.mxu0 0.0
    %2069 = vmatpush1.msra.mxu0 0.0
    %2070 = vmatprep.subr.mxu0 0.0
    %2071 = vmatpush1.msra.mxu0 0.0
    %2072 = vmatprep.subr.mxu0 0.0
    %2073 = vmatpush1.msra.mxu0 0.0
    %2074 = vmatprep.subr.mxu0 0.0
    %2075 = vmatpush1.msra.mxu0 0.0
    %2076 = vmatprep.subr.mxu0 0.0
    %2077 = vmatpush1.msra.mxu0 0.0
    %2078 = vmatprep.subr.mxu0 0.0
    %2079 = vmatpush1.msra.mxu0 0.0
    %2080 = vmatprep.subr.mxu0 0.0
    %2081 = vmatpush1.msra.mxu0 0.0
    %2082 = vmatprep.subr.mxu0 0.0
    %2083 = vmatpush1.msra.mxu0 0.0
    %2084 = vmatprep.subr.mxu0 0.0
    %2085 = vmatpush1.msra.mxu0 0.0
    %2086 = vmatprep.subr.mxu0 0.0
    %2087 = vmatpush1.msra.mxu0 0.0
    %2088 = vmatprep.subr.mxu0 0.0
    %2089 = vmatpush1.msra.mxu0 0.0
    %2090 = vmatprep.subr.mxu0 0.0
    %2091 = vmatpush1.msra.mxu0 0.0
    %2092 = vmatprep.subr.mxu0 0.0
    %2093 = vmatpush1.msra.mxu0 0.0
    %2094 = vmatprep.subr.mxu0 0.0
    %2095 = vmatpush1.msra.mxu0 0.0
    %2096 = vmatprep.subr.mxu0 0.0
    %2097 = vmatpush1.msra.mxu0 0.0
    %2098 = vmatprep.subr.mxu0 0.0
    %2099 = vmatpush1.msra.mxu0 0.0
    %2100 = vmatprep.subr.mxu0 0.0
    %2101 = vmatpush1.msra.mxu0 0.0
    %2102 = vmatprep.subr.mxu0 0.0
    %2103 = vmatpush1.msra.mxu0 0.0
    %2104 = vmatprep.subr.mxu0 0.0
    %2105 = vmatpush1.msra.mxu0 0.0
    %2106 = vmatprep.subr.mxu0 0.0
    %2107 = vmatpush1.msra.mxu0 0.0
    %2108 = vmatprep.subr.mxu0 0.0
    %2109 = vmatpush1.msra.mxu0 0.0
    %2110 = vmatprep.subr.mxu0 0.0
    %2111 = vmatpush1.msra.mxu0 0.0
    %2112 = vmatprep.subr.mxu0 0.0
    %2113 = vmatpush1.msra.mxu0 0.0
    %2114 = vmatprep.subr.mxu0 0.0
    %2115 = vmatpush1.msra.mxu0 0.0
    %2116 = vmatprep.subr.mxu0 0.0
    %2117 = vmatpush1.msra.mxu0 0.0
    %2118 = vmatprep.subr.mxu0 0.0
    %2119 = vmatpush1.msra.mxu0 0.0
    %2120 = vmatprep.subr.mxu0 0.0
    %2121 = vmatpush1.msra.mxu0 0.0
    %2122 = vmatprep.subr.mxu0 0.0
    %2123 = vmatpush1.msra.mxu0 0.0
    %2124 = vmatprep.mubr.f32.mxu0 0.0
    %2125 = vmatmul.mubr.f32.gmra.mrb[0].mxu0 %v2058
    %v2126 = vpop.f32.mrb[0].mxu0
    %v2127 = vadd.f32 0.0, %v2126
    %v2128 = vpop.f32.mrb[0].mxu0
    %2129 = vdwg.mxu0
    %v2130 = vadd.f32 %v2051, %v2127
    %v2131 = vxor.u32 %v2130, 2147483648
    %v2132 = vmul.f32 %v2131, 1.442695
    %v2133 = vpow.pop %v2132
    %v2134 = vadd.f32 %v2133, 1.0
    %v2135 = vrcp.pop %v2134
    %v2136 = vmul.f32 1.0, %v2135
    %v2137 = vtanh.pop %v2130
    %v2138 = vld [vmem:[#allocation5] sm:$0x3]
    %2140 = vrot.lane.b32.xlu0 %v2138, 32
    %v2141 = vpop.permute.xlu0 %2140
    %v2143 = vmul.f32 %v2136, %v2141
    %2145 = vrot.lane.b32.xlu0 %v2137, 64
    %v2146 = vpop.permute.xlu0 %2145
    %v2148 = vmul.f32 %v2136, %v2146
    %2150 = vrot.lane.b32.xlu0 %v2148, 32
    %v2151 = vpop.permute.xlu0 %2150
    %v2153 = vadd.f32 %v2143, %v2151
    %v2154 = vtanh.pop %v2153
    %2156 = vrot.lane.b32.xlu0 %v2154, 64
    %v2157 = vpop.permute.xlu0 %2156
    %v2159 = vmul.f32 %v2136, %v2157
    %2161 = vrot.lane.b32.xlu0 %v2153, 96
    %v2162 = vpop.permute.xlu0 %2161
    %2164 = vst.msk [vmem:[#allocation5] sm:$0x3] %vm156, %v2162
    %2166 = vrot.lane.b32.xlu0 %v2159, 32
    %v2167 = vpop.permute.xlu0 %2166
    %2169 = vst.msk [vmem:[#allocation4] sm:$0x3] %vm156, %v2167
    %v2170 = vld [vmem:[#allocation4] sm:$0x3]
    %v2171 = vld [vmem:[%s7] sm:$0xff]
    %v2172 = vld [vmem:[%s7 + $0x8] sm:$0xff]
    %v2173 = vld [vmem:[%s7 + $0x10] sm:$0xff]
    %v2174 = vld [vmem:[%s7 + $0x18] sm:$0xff]
    %v2175 = vld [vmem:[%s8] sm:$0x1]
    %v2177 = vlaneseq
    %v2178 = vshrl.u32 %v2177, 7
    %v2179 = vsub.s32 0, %v2178
    %v2180 = vrot.slane %v2175, %v2179
    %v2183 = vsel %vm165, %v2170, 0
    %2185 = vmatprep.subr.mxu0 0.0
    %2186 = vmatpush1.msra.mxu0 %v2171
    %2187 = vmatprep.subr.mxu0 0.0
    %2188 = vmatpush1.msra.mxu0 %v2172
    %2189 = vmatprep.subr.mxu0 0.0
    %2190 = vmatpush1.msra.mxu0 %v2173
    %2191 = vmatprep.subr.mxu0 0.0
    %2192 = vmatpush1.msra.mxu0 %v2174
    %2193 = vmatprep.subr.mxu0 0.0
    %2194 = vmatpush1.msra.mxu0 0.0
    %2195 = vmatprep.subr.mxu0 0.0
    %2196 = vmatpush1.msra.mxu0 0.0
    %2197 = vmatprep.subr.mxu0 0.0
    %2198 = vmatpush1.msra.mxu0 0.0
    %2199 = vmatprep.subr.mxu0 0.0
    %2200 = vmatpush1.msra.mxu0 0.0
    %2201 = vmatprep.subr.mxu0 0.0
    %2202 = vmatpush1.msra.mxu0 0.0
    %2203 = vmatprep.subr.mxu0 0.0
    %2204 = vmatpush1.msra.mxu0 0.0
    %2205 = vmatprep.subr.mxu0 0.0
    %2206 = vmatpush1.msra.mxu0 0.0
    %2207 = vmatprep.subr.mxu0 0.0
    %2208 = vmatpush1.msra.mxu0 0.0
    %2209 = vmatprep.subr.mxu0 0.0
    %2210 = vmatpush1.msra.mxu0 0.0
    %2211 = vmatprep.subr.mxu0 0.0
    %2212 = vmatpush1.msra.mxu0 0.0
    %2213 = vmatprep.subr.mxu0 0.0
    %2214 = vmatpush1.msra.mxu0 0.0
    %2215 = vmatprep.subr.mxu0 0.0
    %2216 = vmatpush1.msra.mxu0 0.0
    %2217 = vmatprep.subr.mxu0 0.0
    %2218 = vmatpush1.msra.mxu0 0.0
    %2219 = vmatprep.subr.mxu0 0.0
    %2220 = vmatpush1.msra.mxu0 0.0
    %2221 = vmatprep.subr.mxu0 0.0
    %2222 = vmatpush1.msra.mxu0 0.0
    %2223 = vmatprep.subr.mxu0 0.0
    %2224 = vmatpush1.msra.mxu0 0.0
    %2225 = vmatprep.subr.mxu0 0.0
    %2226 = vmatpush1.msra.mxu0 0.0
    %2227 = vmatprep.subr.mxu0 0.0
    %2228 = vmatpush1.msra.mxu0 0.0
    %2229 = vmatprep.subr.mxu0 0.0
    %2230 = vmatpush1.msra.mxu0 0.0
    %2231 = vmatprep.subr.mxu0 0.0
    %2232 = vmatpush1.msra.mxu0 0.0
    %2233 = vmatprep.subr.mxu0 0.0
    %2234 = vmatpush1.msra.mxu0 0.0
    %2235 = vmatprep.subr.mxu0 0.0
    %2236 = vmatpush1.msra.mxu0 0.0
    %2237 = vmatprep.subr.mxu0 0.0
    %2238 = vmatpush1.msra.mxu0 0.0
    %2239 = vmatprep.subr.mxu0 0.0
    %2240 = vmatpush1.msra.mxu0 0.0
    %2241 = vmatprep.subr.mxu0 0.0
    %2242 = vmatpush1.msra.mxu0 0.0
    %2243 = vmatprep.subr.mxu0 0.0
    %2244 = vmatpush1.msra.mxu0 0.0
    %2245 = vmatprep.subr.mxu0 0.0
    %2246 = vmatpush1.msra.mxu0 0.0
    %2247 = vmatprep.subr.mxu0 0.0
    %2248 = vmatpush1.msra.mxu0 0.0
    %2249 = vmatprep.mubr.f32.mxu0 0.0
    %2250 = vmatmul.mubr.f32.gmra.mrb[0].mxu0 %v2183
    %v2251 = vpop.f32.mrb[0].mxu0
    %v2252 = vadd.f32 %v2180, %v2251
    %v2253 = vpop.f32.mrb[0].mxu0
    %2254 = vdwg.mxu0
    %vm2255 = vcmask 25600
    %2256 = vst.msk [vmem:[#allocation11] sm:$0x3] %vm2255, %v2252
    // Predicated region
    $region46: #{stacked_lstm_forward.1} parent=1 // pred_check
      _
    $region47: #{stacked_lstm_forward.1} parent=1 // pred_check_branch
      %2258 = sbr.rel (0) target = $region49
    $region48: #{stacked_lstm_forward.1} parent=1 // pred_region
      %s2260 = ssub.s32 32, 32
      %2261 = vsyncadd [#allocation8], %s2260
      %s2263 = sshll.u32 [#allocation11], 4
      %s2264 = int_to_ptr.vmem [resolvable:$true] %s2263
      %2266 = dma.vmem_to_hbm [thread:$0]  %s2264, 32, %s9, [#allocation8]
    $region49: #{stacked_lstm_forward.1} parent=1 // pred_fallthru
      _
    // Predicated region
    $region50: #{stacked_lstm_forward.1} parent=1 // pred_check
      _
    $region51: #{stacked_lstm_forward.1} parent=1 // pred_check_branch
      %2268 = sbr.rel (0) target = $region53
    $region52: #{stacked_lstm_forward.1} parent=1 // pred_region
      %2269 = dma.done [#allocation8], 32
    $region53: #{stacked_lstm_forward.1} parent=1 // pred_fallthru
      _
    %2270 = vsyncpa [#allocation7], 1
    %2271 = vsyncpa [#allocation10], 1
    %2272 = vsyncpa [#allocation8], 1

</llo_original>
